<compile_context>
chip_gen: v7x
topology: tpu7x:2x2x1
jax: 0.10.0
libtpu: 0.0.40
codegen_flags: <defaults>
</compile_context>

<pallas_src>
import jax
import jax.numpy as jnp
from jax.experimental import pallas as pl
from jax.experimental.pallas import tpu as pltpu


# --------------------------------------------------------------------------- #
# Kernel
# --------------------------------------------------------------------------- #
def bottleneck_kernel(x_ref, w1_ref, s1_ref, b1_ref,
                      w2_ref, s2_ref, b2_ref,
                      w3_ref, s3_ref, b3_ref,
                      o_ref):
    # x_ref : (1, H+2, W+2, Cp)  f32   full (pre-padded) image, same block for
    #                                  every row tile of a given image
    # o_ref : (1, TH, W, Cp)     f32   one output row tile
    _, th, W, cp = o_ref.shape
    wp = w1_ref.shape[1]

    r = pl.program_id(1)
    n_r = pl.num_programs(1)
    row0 = pl.multiple_of(r * th, th)          # window start (padded coords)

    # ---- conv1 (1x1) + bn1 + relu over the (TH+2, W+2) halo window ---------
    xw = x_ref[0, pl.ds(row0, th + 2), :, :]                   # (TH+2, W+2, Cp) f32
    nwin = (th + 2) * (W + 2)
    h1 = jnp.dot(xw.reshape(nwin, cp).astype(jnp.bfloat16), w1_ref[...],
                 preferred_element_type=jnp.float32)           # (nwin, Wp) f32
    h1 = jnp.maximum(h1 * s1_ref[...] + b1_ref[...], 0.0)
    h1 = h1.reshape(th + 2, W + 2, wp)

    # zero the conv2 zero-padding positions: left/right columns always, the
    # top/bottom halo row only on the image-boundary tiles.
    row_lo = jnp.where(r == 0, 1, 0)
    row_hi = jnp.where(r == n_r - 1, th, th + 1)
    rows = jax.lax.broadcasted_iota(jnp.int32, (th + 2, W + 2, wp), 0)
    cols = jax.lax.broadcasted_iota(jnp.int32, (th + 2, W + 2, wp), 1)
    valid = (cols >= 1) & (cols <= W) & (rows >= row_lo) & (rows <= row_hi)
    h1b = jnp.where(valid, h1, 0.0).astype(jnp.bfloat16)       # (TH+2, W+2, Wp)

    # ---- conv2 (3x3, stride 1, pad 1) + bn2 + relu --------------------------
    acc = jnp.zeros((th * W, wp), jnp.float32)
    for dy in range(3):
        for dx in range(3):
            patch = h1b[dy:dy + th, dx:dx + W, :].reshape(th * W, wp)
            acc = acc + jnp.dot(patch, w2_ref[dy, dx],
                                preferred_element_type=jnp.float32)
    h2 = jnp.maximum(acc * s2_ref[...] + b2_ref[...], 0.0)     # (TH*W, Wp) f32

    # ---- conv3 (1x1) + bn3 + residual add + relu ----------------------------
    h3 = jnp.dot(h2.astype(jnp.bfloat16), w3_ref[...],
                 preferred_element_type=jnp.float32)           # (TH*W, Cp)
    h3 = h3 * s3_ref[...] + b3_ref[...]

    # residual: re-read the interior of the resident input block (keeps the
    # identity out of the live range of the three matmul stages).
    xi = x_ref[0, pl.ds(row0 + 1, th), :, :]                   # (TH, W+2, Cp) f32
    ident = xi[:, 1:W + 1, :].reshape(th * W, cp)
    out = jnp.maximum(h3 + ident, 0.0)
    o_ref[0] = out.reshape(th, W, cp)


# --------------------------------------------------------------------------- #
# Wrapper
# --------------------------------------------------------------------------- #
def _round_up(x, m):
    return (x + m - 1) // m * m


def _pick_tile_h(H, W):
    # a divisor of H giving a reasonably sized matmul M-dim per tile.
    for th in (8, 16, 32, 64):
        if H % th == 0 and th * W >= 128:
            return th
    return H


def bottleneck_forward_nhwc(x_nhwc, params):
    """x_nhwc: (N, H, W, Cin) f32.  Returns (N, H, W, Cin) f32."""
    w1, s1, b1, w2, s2, b2, w3, s3, b3 = params
    N, H, W, cin = x_nhwc.shape
    width = w1.shape[1]
    cout = w3.shape[1]
    if cout != cin:
        raise ValueError("identity residual requires planes*4 == inplanes "
                         "(downsample branch not implemented)")

    LANE = 128
    cp = _round_up(cin, LANE)     # padded in/out channels
    wp = _round_up(width, LANE)   # padded bottleneck width
    th = _pick_tile_h(H, W)
    n_row_tiles = H // th

    f32, bf16 = jnp.float32, jnp.bfloat16

    # spatially (+1 ring) and channel-padded input; stays f32 (exact residual),
    # cast to bf16 inside the kernel only for the MXU.
    xpad = jnp.zeros((N, H + 2, W + 2, cp), f32)
    xpad = xpad.at[:, 1:H + 1, 1:W + 1, :cin].set(x_nhwc.astype(f32))

    # channel-padded bf16 weights, f32 folded-BN scale/bias.
    w1p = jnp.zeros((cp, wp), bf16).at[:cin, :width].set(w1.astype(bf16))
    w2p = jnp.zeros((3, 3, wp, wp), bf16).at[:, :, :width, :width].set(w2.astype(bf16))
    w3p = jnp.zeros((wp, cp), bf16).at[:width, :cout].set(w3.astype(bf16))
    s1p = jnp.zeros((1, wp), f32).at[:, :width].set(s1.astype(f32))
    b1p = jnp.zeros((1, wp), f32).at[:, :width].set(b1.astype(f32))
    s2p = jnp.zeros((1, wp), f32).at[:, :width].set(s2.astype(f32))
    b2p = jnp.zeros((1, wp), f32).at[:, :width].set(b2.astype(f32))
    s3p = jnp.zeros((1, cp), f32).at[:, :cout].set(s3.astype(f32))
    b3p = jnp.zeros((1, cp), f32).at[:, :cout].set(b3.astype(f32))

    def const_spec(a):
        nd = a.ndim
        return pl.BlockSpec(a.shape, lambda i, r, _nd=nd: (0,) * _nd)

    y = pl.pallas_call(
        bottleneck_kernel,
        out_shape=jax.ShapeDtypeStruct((N, H, W, cp), f32),
        grid_spec=pltpu.PrefetchScalarGridSpec(
            num_scalar_prefetch=0,
            grid=(N, n_row_tiles),
            in_specs=[
                # full padded image per batch index; block index is constant in
                # the row-tile axis -> fetched once per image, windows sliced
                # in-kernel with pl.ds.
                pl.BlockSpec((1, H + 2, W + 2, cp), lambda i, r: (i, 0, 0, 0)),
                const_spec(w1p), const_spec(s1p), const_spec(b1p),
                const_spec(w2p), const_spec(s2p), const_spec(b2p),
                const_spec(w3p), const_spec(s3p), const_spec(b3p),
            ],
            out_specs=pl.BlockSpec((1, th, W, cp), lambda i, r: (i, r, 0, 0)),
        ),
        compiler_params=pltpu.CompilerParams(
            dimension_semantics=("parallel", "parallel"),
            vmem_limit_bytes=48 * 1024 * 1024),
    )(xpad, w1p, s1p, b1p, w2p, s2p, b2p, w3p, s3p, b3p)

    return y[..., :cout]


def bottleneck_forward_nchw(x_nchw, params):
    x_nhwc = jnp.transpose(x_nchw, (0, 2, 3, 1))
    y_nhwc = bottleneck_forward_nhwc(x_nhwc, params)
    return jnp.transpose(y_nhwc, (0, 3, 1, 2))


# --------------------------------------------------------------------------- #
# Pure-JAX reference (bf16-rounded weights to match the kernel's quantization)
# --------------------------------------------------------------------------- #
def ref_forward_nhwc(x, params):
    w1, s1, b1, w2, s2, b2, w3, s3, b3 = params
    rb = lambda w: w.astype(jnp.bfloat16).astype(jnp.float32)
    dn = ('NHWC', 'HWIO', 'NHWC')
    cvec = lambda v: v.reshape(1, 1, 1, -1)
    hi = jax.lax.Precision.HIGHEST
    h = jax.lax.conv_general_dilated(x, rb(w1).reshape(1, 1, *w1.shape), (1, 1),
                                     'VALID', dimension_numbers=dn, precision=hi)
    h = jnp.maximum(h * cvec(s1) + cvec(b1), 0.0)
    h = jax.lax.conv_general_dilated(h, rb(w2), (1, 1), ((1, 1), (1, 1)),
                                     dimension_numbers=dn, precision=hi)
    h = jnp.maximum(h * cvec(s2) + cvec(b2), 0.0)
    h = jax.lax.conv_general_dilated(h, rb(w3).reshape(1, 1, *w3.shape), (1, 1),
                                     'VALID', dimension_numbers=dn, precision=hi)
    h = h * cvec(s3) + cvec(b3)
    return jnp.maximum(h + x, 0.0)


def make_params(key, inplanes, planes, base_width=64, groups=1, eps=1e-5):
    width = int(planes * (base_width / 64.0)) * groups
    out_planes = planes * 4  # expansion
    ks = jax.random.split(key, 12)

    def bn_fold(kg, kb, km, kv, c):
        gamma = 1.0 + 0.1 * jax.random.normal(kg, (c,), jnp.float32)
        beta = 0.1 * jax.random.normal(kb, (c,), jnp.float32)
        mean = 0.1 * jax.random.normal(km, (c,), jnp.float32)
        var = jnp.abs(jax.random.normal(kv, (c,), jnp.float32)) + 0.5
        scale = gamma / jnp.sqrt(var + eps)
        bias = beta - mean * scale
        return scale.reshape(1, c), bias.reshape(1, c)

    w1 = 0.2 * jax.random.normal(ks[0], (inplanes, width), jnp.float32)
    s1, b1 = bn_fold(ks[1], ks[2], ks[3], ks[4], width)
    w2 = 0.2 * jax.random.normal(ks[5], (3, 3, width, width), jnp.float32)
    s2, b2 = bn_fold(ks[6], ks[7], ks[8], ks[9], width)
    w3 = 0.2 * jax.random.normal(ks[10], (width, out_planes), jnp.float32)
    s3, b3 = bn_fold(ks[11], ks[0], ks[1], ks[2], out_planes)
    return (w1, s1, b1, w2, s2, b2, w3, s3, b3)


if __name__ == "__main__":
    # Bottleneck(inplanes=64, planes=16) -> width=16, out channels=64,
    # stride=1, downsample=None (identity residual is well-defined).
    N, Cin, H, W = 2, 64, 16, 16
    planes = 16

    key = jax.random.PRNGKey(0)
    kx, kp = jax.random.split(key)
    x_nchw = jax.random.normal(kx, (N, Cin, H, W), jnp.float32)
    params = make_params(kp, Cin, planes)

    fwd = jax.jit(bottleneck_forward_nchw)
    out = jax.block_until_ready(fwd(x_nchw, params))

    # correctness check vs. pure-JAX reference (bf16 matmul inputs in the
    # kernel => loosened tolerance, f32 accumulation preserved).
    x_nhwc = jnp.transpose(x_nchw, (0, 2, 3, 1))
    ref = jnp.transpose(ref_forward_nhwc(x_nhwc, params), (0, 3, 1, 2))
    assert out.shape == (N, Cin, H, W)
    err = float(jnp.max(jnp.abs(out - ref)))
    scale = float(jnp.max(jnp.abs(ref))) + 1.0
    assert err <= 0.05 * scale, (err, scale)

    print("KERNEL_OK")
</pallas_src>

<mosaic_0001>
module attributes {stable_mosaic.version = 11 : i64} {
  func.func @bottleneck_kernel(%arg0: i32, %arg1: i32, %arg2: memref<1x18x18x128xf32, #tpu.memory_space<vmem>>, %arg3: memref<128x128xbf16, #tpu.memory_space<vmem>>, %arg4: memref<1x128xf32, #tpu.memory_space<vmem>>, %arg5: memref<1x128xf32, #tpu.memory_space<vmem>>, %arg6: memref<3x3x128x128xbf16, #tpu.memory_space<vmem>>, %arg7: memref<1x128xf32, #tpu.memory_space<vmem>>, %arg8: memref<1x128xf32, #tpu.memory_space<vmem>>, %arg9: memref<128x128xbf16, #tpu.memory_space<vmem>>, %arg10: memref<1x128xf32, #tpu.memory_space<vmem>>, %arg11: memref<1x128xf32, #tpu.memory_space<vmem>>, %arg12: memref<1x8x16x128xf32, #tpu.memory_space<vmem>>) attributes {dimension_semantics = [#tpu.dimension_semantics<parallel>, #tpu.dimension_semantics<parallel>], iteration_bounds = array<i64: 2, 2>, scalar_prefetch = 0 : i64, scratch_operands = 0 : i64, tpu.core_type = #tpu.core_type<tc>, window_params = [{transform_indices = @transform_0, window_bounds = array<i64: 1, 18, 18, 128>}, {pipeline_mode = #tpu.pipeline_mode<synchronous>, transform_indices = @transform_1, window_bounds = array<i64: 128, 128>}, {pipeline_mode = #tpu.pipeline_mode<synchronous>, transform_indices = @transform_2, window_bounds = array<i64: 1, 128>}, {pipeline_mode = #tpu.pipeline_mode<synchronous>, transform_indices = @transform_3, window_bounds = array<i64: 1, 128>}, {pipeline_mode = #tpu.pipeline_mode<synchronous>, transform_indices = @transform_4, window_bounds = array<i64: 3, 3, 128, 128>}, {pipeline_mode = #tpu.pipeline_mode<synchronous>, transform_indices = @transform_5, window_bounds = array<i64: 1, 128>}, {pipeline_mode = #tpu.pipeline_mode<synchronous>, transform_indices = @transform_6, window_bounds = array<i64: 1, 128>}, {pipeline_mode = #tpu.pipeline_mode<synchronous>, transform_indices = @transform_7, window_bounds = array<i64: 128, 128>}, {pipeline_mode = #tpu.pipeline_mode<synchronous>, transform_indices = @transform_8, window_bounds = array<i64: 1, 128>}, {pipeline_mode = #tpu.pipeline_mode<synchronous>, transform_indices = @transform_9, window_bounds = array<i64: 1, 128>}, {transform_indices = @transform_10, window_bounds = array<i64: 1, 8, 16, 128>}]} {
    %c8_i32 = arith.constant 8 : i32
    %0 = arith.muli %arg1, %c8_i32 : i32
    %1 = tpu.assume_multiple %0, 8 : i32
    %c0 = arith.constant 0 : index
    %2 = arith.index_cast %1 : i32 to index
    %c0_0 = arith.constant 0 : index
    %c0_1 = arith.constant 0 : index
    %3 = vector.load %arg2[%c0, %2, %c0_0, %c0_1] : memref<1x18x18x128xf32, #tpu.memory_space<vmem>>, vector<1x10x18x128xf32>
    %4 = vector.shape_cast %3 : vector<1x10x18x128xf32> to vector<10x18x128xf32>
    %5 = vector.shape_cast %4 : vector<10x18x128xf32> to vector<180x128xf32>
    %6 = arith.truncf %5 : vector<180x128xf32> to vector<180x128xbf16>
    %c0_2 = arith.constant 0 : index
    %c0_3 = arith.constant 0 : index
    %7 = vector.load %arg3[%c0_2, %c0_3] : memref<128x128xbf16, #tpu.memory_space<vmem>>, vector<128x128xbf16>
    %cst = arith.constant dense<0.000000e+00> : vector<180x128xf32>
    %8 = tpu.matmul %6, %7, %cst {dimension_numbers = #tpu.dot_dimension_numbers<[1], [0], [0], [1], [0, 0, 1, 1], [], []>} : vector<180x128xbf16>, vector<128x128xbf16>, vector<180x128xf32> -> vector<180x128xf32>
    %c0_4 = arith.constant 0 : index
    %c0_5 = arith.constant 0 : index
    %9 = vector.load %arg4[%c0_4, %c0_5] : memref<1x128xf32, #tpu.memory_space<vmem>>, vector<1x128xf32>
    %10 = vector.broadcast %9 : vector<1x128xf32> to vector<180x128xf32>
    %11 = arith.mulf %8, %10 : vector<180x128xf32>
    %c0_6 = arith.constant 0 : index
    %c0_7 = arith.constant 0 : index
    %12 = vector.load %arg5[%c0_6, %c0_7] : memref<1x128xf32, #tpu.memory_space<vmem>>, vector<1x128xf32>
    %13 = vector.broadcast %12 : vector<1x128xf32> to vector<180x128xf32>
    %14 = arith.addf %11, %13 : vector<180x128xf32>
    %cst_8 = arith.constant 0.000000e+00 : f32
    %15 = vector.broadcast %cst_8 : f32 to vector<180x128xf32>
    %16 = arith.maximumf %14, %15 : vector<180x128xf32>
    %17 = vector.shape_cast %16 : vector<180x128xf32> to vector<10x18x128xf32>
    %c0_i32 = arith.constant 0 : i32
    %18 = arith.cmpi eq, %arg1, %c0_i32 : i32
    %c1_i32 = arith.constant 1 : i32
    %c0_i32_9 = arith.constant 0 : i32
    %19 = arith.select %18, %c1_i32, %c0_i32_9 : i32
    %c1_i32_10 = arith.constant 1 : i32
    %20 = arith.cmpi eq, %arg1, %c1_i32_10 : i32
    %c8_i32_11 = arith.constant 8 : i32
    %c9_i32 = arith.constant 9 : i32
    %21 = arith.select %20, %c8_i32_11, %c9_i32 : i32
    %22 = tpu.iota {dimensions = array<i32: 0>} : vector<10x18x128xi32>
    %23 = tpu.iota {dimensions = array<i32: 1>} : vector<10x18x128xi32>
    %c1_i32_12 = arith.constant 1 : i32
    %24 = vector.broadcast %c1_i32_12 : i32 to vector<10x18x128xi32>
    %25 = arith.cmpi sge, %23, %24 : vector<10x18x128xi32>
    %c16_i32 = arith.constant 16 : i32
    %26 = vector.broadcast %c16_i32 : i32 to vector<10x18x128xi32>
    %27 = arith.cmpi sle, %23, %26 : vector<10x18x128xi32>
    %28 = arith.andi %25, %27 : vector<10x18x128xi1>
    %29 = vector.broadcast %19 : i32 to vector<10x18x128xi32>
    %30 = arith.cmpi sge, %22, %29 : vector<10x18x128xi32>
    %31 = arith.andi %28, %30 : vector<10x18x128xi1>
    %32 = vector.broadcast %21 : i32 to vector<10x18x128xi32>
    %33 = arith.cmpi sle, %22, %32 : vector<10x18x128xi32>
    %34 = arith.andi %31, %33 : vector<10x18x128xi1>
    %cst_13 = arith.constant 0.000000e+00 : f32
    %35 = vector.broadcast %cst_13 : f32 to vector<10x18x128xf32>
    %36 = arith.select %34, %17, %35 : vector<10x18x128xi1>, vector<10x18x128xf32>
    %37 = arith.truncf %36 : vector<10x18x128xf32> to vector<10x18x128xbf16>
    %cst_14 = arith.constant 0.000000e+00 : f32
    %38 = vector.broadcast %cst_14 : f32 to vector<128x128xf32>
    %39 = vector.extract_strided_slice %37 {offsets = [0, 0, 0], sizes = [8, 16, 128], strides = [1, 1, 1]} : vector<10x18x128xbf16> to vector<8x16x128xbf16>
    %40 = vector.shape_cast %39 : vector<8x16x128xbf16> to vector<128x128xbf16>
    %c0_15 = arith.constant 0 : index
    %c0_16 = arith.constant 0 : index
    %c0_17 = arith.constant 0 : index
    %c0_18 = arith.constant 0 : index
    %41 = vector.load %arg6[%c0_15, %c0_16, %c0_17, %c0_18] : memref<3x3x128x128xbf16, #tpu.memory_space<vmem>>, vector<1x1x128x128xbf16>
    %42 = vector.shape_cast %41 : vector<1x1x128x128xbf16> to vector<128x128xbf16>
    %cst_19 = arith.constant dense<0.000000e+00> : vector<128x128xf32>
    %43 = tpu.matmul %40, %42, %cst_19 {dimension_numbers = #tpu.dot_dimension_numbers<[1], [0], [0], [1], [0, 0, 1, 1], [], []>} : vector<128x128xbf16>, vector<128x128xbf16>, vector<128x128xf32> -> vector<128x128xf32>
    %44 = arith.addf %38, %43 : vector<128x128xf32>
    %45 = vector.extract_strided_slice %37 {offsets = [0, 1, 0], sizes = [8, 16, 128], strides = [1, 1, 1]} : vector<10x18x128xbf16> to vector<8x16x128xbf16>
    %46 = vector.shape_cast %45 : vector<8x16x128xbf16> to vector<128x128xbf16>
    %c0_20 = arith.constant 0 : index
    %c1 = arith.constant 1 : index
    %c0_21 = arith.constant 0 : index
    %c0_22 = arith.constant 0 : index
    %47 = vector.load %arg6[%c0_20, %c1, %c0_21, %c0_22] : memref<3x3x128x128xbf16, #tpu.memory_space<vmem>>, vector<1x1x128x128xbf16>
    %48 = vector.shape_cast %47 : vector<1x1x128x128xbf16> to vector<128x128xbf16>
    %cst_23 = arith.constant dense<0.000000e+00> : vector<128x128xf32>
    %49 = tpu.matmul %46, %48, %cst_23 {dimension_numbers = #tpu.dot_dimension_numbers<[1], [0], [0], [1], [0, 0, 1, 1], [], []>} : vector<128x128xbf16>, vector<128x128xbf16>, vector<128x128xf32> -> vector<128x128xf32>
    %50 = arith.addf %44, %49 : vector<128x128xf32>
    %51 = vector.extract_strided_slice %37 {offsets = [0, 2, 0], sizes = [8, 16, 128], strides = [1, 1, 1]} : vector<10x18x128xbf16> to vector<8x16x128xbf16>
    %52 = vector.shape_cast %51 : vector<8x16x128xbf16> to vector<128x128xbf16>
    %c0_24 = arith.constant 0 : index
    %c2 = arith.constant 2 : index
    %c0_25 = arith.constant 0 : index
    %c0_26 = arith.constant 0 : index
    %53 = vector.load %arg6[%c0_24, %c2, %c0_25, %c0_26] : memref<3x3x128x128xbf16, #tpu.memory_space<vmem>>, vector<1x1x128x128xbf16>
    %54 = vector.shape_cast %53 : vector<1x1x128x128xbf16> to vector<128x128xbf16>
    %cst_27 = arith.constant dense<0.000000e+00> : vector<128x128xf32>
    %55 = tpu.matmul %52, %54, %cst_27 {dimension_numbers = #tpu.dot_dimension_numbers<[1], [0], [0], [1], [0, 0, 1, 1], [], []>} : vector<128x128xbf16>, vector<128x128xbf16>, vector<128x128xf32> -> vector<128x128xf32>
    %56 = arith.addf %50, %55 : vector<128x128xf32>
    %57 = vector.extract_strided_slice %37 {offsets = [1, 0, 0], sizes = [8, 16, 128], strides = [1, 1, 1]} : vector<10x18x128xbf16> to vector<8x16x128xbf16>
    %58 = vector.shape_cast %57 : vector<8x16x128xbf16> to vector<128x128xbf16>
    %c1_28 = arith.constant 1 : index
    %c0_29 = arith.constant 0 : index
    %c0_30 = arith.constant 0 : index
    %c0_31 = arith.constant 0 : index
    %59 = vector.load %arg6[%c1_28, %c0_29, %c0_30, %c0_31] : memref<3x3x128x128xbf16, #tpu.memory_space<vmem>>, vector<1x1x128x128xbf16>
    %60 = vector.shape_cast %59 : vector<1x1x128x128xbf16> to vector<128x128xbf16>
    %cst_32 = arith.constant dense<0.000000e+00> : vector<128x128xf32>
    %61 = tpu.matmul %58, %60, %cst_32 {dimension_numbers = #tpu.dot_dimension_numbers<[1], [0], [0], [1], [0, 0, 1, 1], [], []>} : vector<128x128xbf16>, vector<128x128xbf16>, vector<128x128xf32> -> vector<128x128xf32>
    %62 = arith.addf %56, %61 : vector<128x128xf32>
    %63 = vector.extract_strided_slice %37 {offsets = [1, 1, 0], sizes = [8, 16, 128], strides = [1, 1, 1]} : vector<10x18x128xbf16> to vector<8x16x128xbf16>
    %64 = vector.shape_cast %63 : vector<8x16x128xbf16> to vector<128x128xbf16>
    %c1_33 = arith.constant 1 : index
    %c1_34 = arith.constant 1 : index
    %c0_35 = arith.constant 0 : index
    %c0_36 = arith.constant 0 : index
    %65 = vector.load %arg6[%c1_33, %c1_34, %c0_35, %c0_36] : memref<3x3x128x128xbf16, #tpu.memory_space<vmem>>, vector<1x1x128x128xbf16>
    %66 = vector.shape_cast %65 : vector<1x1x128x128xbf16> to vector<128x128xbf16>
    %cst_37 = arith.constant dense<0.000000e+00> : vector<128x128xf32>
    %67 = tpu.matmul %64, %66, %cst_37 {dimension_numbers = #tpu.dot_dimension_numbers<[1], [0], [0], [1], [0, 0, 1, 1], [], []>} : vector<128x128xbf16>, vector<128x128xbf16>, vector<128x128xf32> -> vector<128x128xf32>
    %68 = arith.addf %62, %67 : vector<128x128xf32>
    %69 = vector.extract_strided_slice %37 {offsets = [1, 2, 0], sizes = [8, 16, 128], strides = [1, 1, 1]} : vector<10x18x128xbf16> to vector<8x16x128xbf16>
    %70 = vector.shape_cast %69 : vector<8x16x128xbf16> to vector<128x128xbf16>
    %c1_38 = arith.constant 1 : index
    %c2_39 = arith.constant 2 : index
    %c0_40 = arith.constant 0 : index
    %c0_41 = arith.constant 0 : index
    %71 = vector.load %arg6[%c1_38, %c2_39, %c0_40, %c0_41] : memref<3x3x128x128xbf16, #tpu.memory_space<vmem>>, vector<1x1x128x128xbf16>
    %72 = vector.shape_cast %71 : vector<1x1x128x128xbf16> to vector<128x128xbf16>
    %cst_42 = arith.constant dense<0.000000e+00> : vector<128x128xf32>
    %73 = tpu.matmul %70, %72, %cst_42 {dimension_numbers = #tpu.dot_dimension_numbers<[1], [0], [0], [1], [0, 0, 1, 1], [], []>} : vector<128x128xbf16>, vector<128x128xbf16>, vector<128x128xf32> -> vector<128x128xf32>
    %74 = arith.addf %68, %73 : vector<128x128xf32>
    %75 = vector.extract_strided_slice %37 {offsets = [2, 0, 0], sizes = [8, 16, 128], strides = [1, 1, 1]} : vector<10x18x128xbf16> to vector<8x16x128xbf16>
    %76 = vector.shape_cast %75 : vector<8x16x128xbf16> to vector<128x128xbf16>
    %c2_43 = arith.constant 2 : index
    %c0_44 = arith.constant 0 : index
    %c0_45 = arith.constant 0 : index
    %c0_46 = arith.constant 0 : index
    %77 = vector.load %arg6[%c2_43, %c0_44, %c0_45, %c0_46] : memref<3x3x128x128xbf16, #tpu.memory_space<vmem>>, vector<1x1x128x128xbf16>
    %78 = vector.shape_cast %77 : vector<1x1x128x128xbf16> to vector<128x128xbf16>
    %cst_47 = arith.constant dense<0.000000e+00> : vector<128x128xf32>
    %79 = tpu.matmul %76, %78, %cst_47 {dimension_numbers = #tpu.dot_dimension_numbers<[1], [0], [0], [1], [0, 0, 1, 1], [], []>} : vector<128x128xbf16>, vector<128x128xbf16>, vector<128x128xf32> -> vector<128x128xf32>
    %80 = arith.addf %74, %79 : vector<128x128xf32>
    %81 = vector.extract_strided_slice %37 {offsets = [2, 1, 0], sizes = [8, 16, 128], strides = [1, 1, 1]} : vector<10x18x128xbf16> to vector<8x16x128xbf16>
    %82 = vector.shape_cast %81 : vector<8x16x128xbf16> to vector<128x128xbf16>
    %c2_48 = arith.constant 2 : index
    %c1_49 = arith.constant 1 : index
    %c0_50 = arith.constant 0 : index
    %c0_51 = arith.constant 0 : index
    %83 = vector.load %arg6[%c2_48, %c1_49, %c0_50, %c0_51] : memref<3x3x128x128xbf16, #tpu.memory_space<vmem>>, vector<1x1x128x128xbf16>
    %84 = vector.shape_cast %83 : vector<1x1x128x128xbf16> to vector<128x128xbf16>
    %cst_52 = arith.constant dense<0.000000e+00> : vector<128x128xf32>
    %85 = tpu.matmul %82, %84, %cst_52 {dimension_numbers = #tpu.dot_dimension_numbers<[1], [0], [0], [1], [0, 0, 1, 1], [], []>} : vector<128x128xbf16>, vector<128x128xbf16>, vector<128x128xf32> -> vector<128x128xf32>
    %86 = arith.addf %80, %85 : vector<128x128xf32>
    %87 = vector.extract_strided_slice %37 {offsets = [2, 2, 0], sizes = [8, 16, 128], strides = [1, 1, 1]} : vector<10x18x128xbf16> to vector<8x16x128xbf16>
    %88 = vector.shape_cast %87 : vector<8x16x128xbf16> to vector<128x128xbf16>
    %c2_53 = arith.constant 2 : index
    %c2_54 = arith.constant 2 : index
    %c0_55 = arith.constant 0 : index
    %c0_56 = arith.constant 0 : index
    %89 = vector.load %arg6[%c2_53, %c2_54, %c0_55, %c0_56] : memref<3x3x128x128xbf16, #tpu.memory_space<vmem>>, vector<1x1x128x128xbf16>
    %90 = vector.shape_cast %89 : vector<1x1x128x128xbf16> to vector<128x128xbf16>
    %cst_57 = arith.constant dense<0.000000e+00> : vector<128x128xf32>
    %91 = tpu.matmul %88, %90, %cst_57 {dimension_numbers = #tpu.dot_dimension_numbers<[1], [0], [0], [1], [0, 0, 1, 1], [], []>} : vector<128x128xbf16>, vector<128x128xbf16>, vector<128x128xf32> -> vector<128x128xf32>
    %92 = arith.addf %86, %91 : vector<128x128xf32>
    %c0_58 = arith.constant 0 : index
    %c0_59 = arith.constant 0 : index
    %93 = vector.load %arg7[%c0_58, %c0_59] : memref<1x128xf32, #tpu.memory_space<vmem>>, vector<1x128xf32>
    %94 = vector.broadcast %93 : vector<1x128xf32> to vector<128x128xf32>
    %95 = arith.mulf %92, %94 : vector<128x128xf32>
    %c0_60 = arith.constant 0 : index
    %c0_61 = arith.constant 0 : index
    %96 = vector.load %arg8[%c0_60, %c0_61] : memref<1x128xf32, #tpu.memory_space<vmem>>, vector<1x128xf32>
    %97 = vector.broadcast %96 : vector<1x128xf32> to vector<128x128xf32>
    %98 = arith.addf %95, %97 : vector<128x128xf32>
    %cst_62 = arith.constant 0.000000e+00 : f32
    %99 = vector.broadcast %cst_62 : f32 to vector<128x128xf32>
    %100 = arith.maximumf %98, %99 : vector<128x128xf32>
    %101 = arith.truncf %100 : vector<128x128xf32> to vector<128x128xbf16>
    %c0_63 = arith.constant 0 : index
    %c0_64 = arith.constant 0 : index
    %102 = vector.load %arg9[%c0_63, %c0_64] : memref<128x128xbf16, #tpu.memory_space<vmem>>, vector<128x128xbf16>
    %cst_65 = arith.constant dense<0.000000e+00> : vector<128x128xf32>
    %103 = tpu.matmul %101, %102, %cst_65 {dimension_numbers = #tpu.dot_dimension_numbers<[1], [0], [0], [1], [0, 0, 1, 1], [], []>} : vector<128x128xbf16>, vector<128x128xbf16>, vector<128x128xf32> -> vector<128x128xf32>
    %c0_66 = arith.constant 0 : index
    %c0_67 = arith.constant 0 : index
    %104 = vector.load %arg10[%c0_66, %c0_67] : memref<1x128xf32, #tpu.memory_space<vmem>>, vector<1x128xf32>
    %105 = vector.broadcast %104 : vector<1x128xf32> to vector<128x128xf32>
    %106 = arith.mulf %103, %105 : vector<128x128xf32>
    %c0_68 = arith.constant 0 : index
    %c0_69 = arith.constant 0 : index
    %107 = vector.load %arg11[%c0_68, %c0_69] : memref<1x128xf32, #tpu.memory_space<vmem>>, vector<1x128xf32>
    %108 = vector.broadcast %107 : vector<1x128xf32> to vector<128x128xf32>
    %109 = arith.addf %106, %108 : vector<128x128xf32>
    %c1_i32_70 = arith.constant 1 : i32
    %110 = arith.addi %1, %c1_i32_70 : i32
    %c0_71 = arith.constant 0 : index
    %111 = arith.index_cast %110 : i32 to index
    %c0_72 = arith.constant 0 : index
    %c0_73 = arith.constant 0 : index
    %112 = vector.load %arg2[%c0_71, %111, %c0_72, %c0_73] : memref<1x18x18x128xf32, #tpu.memory_space<vmem>>, vector<1x8x18x128xf32>
    %113 = vector.shape_cast %112 : vector<1x8x18x128xf32> to vector<8x18x128xf32>
    %114 = vector.extract_strided_slice %113 {offsets = [0, 1, 0], sizes = [8, 16, 128], strides = [1, 1, 1]} : vector<8x18x128xf32> to vector<8x16x128xf32>
    %115 = vector.shape_cast %114 : vector<8x16x128xf32> to vector<128x128xf32>
    %116 = arith.addf %109, %115 : vector<128x128xf32>
    %cst_74 = arith.constant 0.000000e+00 : f32
    %117 = vector.broadcast %cst_74 : f32 to vector<128x128xf32>
    %118 = arith.maximumf %116, %117 : vector<128x128xf32>
    %119 = vector.shape_cast %118 : vector<128x128xf32> to vector<8x16x128xf32>
    %c0_75 = arith.constant 0 : index
    %c0_76 = arith.constant 0 : index
    %c0_77 = arith.constant 0 : index
    %c0_78 = arith.constant 0 : index
    %120 = vector.load %arg12[%c0_75, %c0_76, %c0_77, %c0_78] : memref<1x8x16x128xf32, #tpu.memory_space<vmem>>, vector<1x8x16x128xf32>
    %121 = vector.shape_cast %120 : vector<1x8x16x128xf32> to vector<8x16x128xf32>
    %122 = vector.shape_cast %119 : vector<8x16x128xf32> to vector<1x8x16x128xf32>
    tpu.vector_store %arg12[%c0_75, %c0_76, %c0_77, %c0_78], %122 {strides = array<i32>} : memref<1x8x16x128xf32, #tpu.memory_space<vmem>>, vector<1x8x16x128xf32>,
    return
  }
  func.func @transform_0(%arg0: i32, %arg1: i32) -> (i32, i32, i32, i32) {
    %c0_i32 = arith.constant 0 : i32
    %c0_i32_0 = arith.constant 0 : i32
    %c0_i32_1 = arith.constant 0 : i32
    %c0_i32_2 = arith.constant 0 : i32
    return %arg0, %c0_i32, %c0_i32_0, %c0_i32_1 : i32, i32, i32, i32
  }
  func.func @transform_1(%arg0: i32, %arg1: i32) -> (i32, i32) {
    %c0_i32 = arith.constant 0 : i32
    %c0_i32_0 = arith.constant 0 : i32
    %c0_i32_1 = arith.constant 0 : i32
    return %c0_i32, %c0_i32_0 : i32, i32
  }
  func.func @transform_2(%arg0: i32, %arg1: i32) -> (i32, i32) {
    %c0_i32 = arith.constant 0 : i32
    %c0_i32_0 = arith.constant 0 : i32
    %c0_i32_1 = arith.constant 0 : i32
    return %c0_i32, %c0_i32_0 : i32, i32
  }
  func.func @transform_3(%arg0: i32, %arg1: i32) -> (i32, i32) {
    %c0_i32 = arith.constant 0 : i32
    %c0_i32_0 = arith.constant 0 : i32
    %c0_i32_1 = arith.constant 0 : i32
    return %c0_i32, %c0_i32_0 : i32, i32
  }
  func.func @transform_4(%arg0: i32, %arg1: i32) -> (i32, i32, i32, i32) {
    %c0_i32 = arith.constant 0 : i32
    %c0_i32_0 = arith.constant 0 : i32
    %c0_i32_1 = arith.constant 0 : i32
    %c0_i32_2 = arith.constant 0 : i32
    %c0_i32_3 = arith.constant 0 : i32
    return %c0_i32, %c0_i32_0, %c0_i32_1, %c0_i32_2 : i32, i32, i32, i32
  }
  func.func @transform_5(%arg0: i32, %arg1: i32) -> (i32, i32) {
    %c0_i32 = arith.constant 0 : i32
    %c0_i32_0 = arith.constant 0 : i32
    %c0_i32_1 = arith.constant 0 : i32
    return %c0_i32, %c0_i32_0 : i32, i32
  }
  func.func @transform_6(%arg0: i32, %arg1: i32) -> (i32, i32) {
    %c0_i32 = arith.constant 0 : i32
    %c0_i32_0 = arith.constant 0 : i32
    %c0_i32_1 = arith.constant 0 : i32
    return %c0_i32, %c0_i32_0 : i32, i32
  }
  func.func @transform_7(%arg0: i32, %arg1: i32) -> (i32, i32) {
    %c0_i32 = arith.constant 0 : i32
    %c0_i32_0 = arith.constant 0 : i32
    %c0_i32_1 = arith.constant 0 : i32
    return %c0_i32, %c0_i32_0 : i32, i32
  }
  func.func @transform_8(%arg0: i32, %arg1: i32) -> (i32, i32) {
    %c0_i32 = arith.constant 0 : i32
    %c0_i32_0 = arith.constant 0 : i32
    %c0_i32_1 = arith.constant 0 : i32
    return %c0_i32, %c0_i32_0 : i32, i32
  }
  func.func @transform_9(%arg0: i32, %arg1: i32) -> (i32, i32) {
    %c0_i32 = arith.constant 0 : i32
    %c0_i32_0 = arith.constant 0 : i32
    %c0_i32_1 = arith.constant 0 : i32
    return %c0_i32, %c0_i32_0 : i32, i32
  }
  func.func @transform_10(%arg0: i32, %arg1: i32) -> (i32, i32, i32, i32) {
    %c0_i32 = arith.constant 0 : i32
    %c0_i32_0 = arith.constant 0 : i32
    %c0_i32_1 = arith.constant 0 : i32
    return %arg0, %arg1, %c0_i32, %c0_i32_0 : i32, i32, i32, i32
  }
}

</mosaic_0001>

<llo_original>
// kernel: bottleneck_forward_nchw.1
$region0: #{bottleneck_forward_nchw.1}
  #allocation0 [shape = 'u32[]', space=smem, size = 0x4, offset = 0x4, fixed_abs, tag = 'smem constant byte address 0x4 - core index']
  #allocation1 [shape = 'u32[144,128]{1,0:T(1,128)}', space=vmem, size = 0x12000, scoped, tag = 'internal scratch']
  %s0 = inlined_call_operand.vmem [shape: f32[2,18,18,128], index: 0, kind: input, shape index: {}]
  %s1 = inlined_call_operand.vmem [shape: bf16[128,128], index: 1, kind: input, shape index: {}]
  %s2 = inlined_call_operand.vmem [shape: f32[1,128], index: 2, kind: input, shape index: {}]
  %s3 = inlined_call_operand.vmem [shape: f32[1,128], index: 3, kind: input, shape index: {}]
  %s4 = inlined_call_operand.vmem [shape: bf16[3,3,128,128], index: 4, kind: input, shape index: {}]
  %s5 = inlined_call_operand.vmem [shape: f32[1,128], index: 5, kind: input, shape index: {}]
  %s6 = inlined_call_operand.vmem [shape: f32[1,128], index: 6, kind: input, shape index: {}]
  %s7 = inlined_call_operand.vmem [shape: bf16[128,128], index: 7, kind: input, shape index: {}]
  %s8 = inlined_call_operand.vmem [shape: f32[1,128], index: 8, kind: input, shape index: {}]
  %s9 = inlined_call_operand.vmem [shape: f32[1,128], index: 9, kind: input, shape index: {}]
  %s10 = inlined_call_operand.vmem [shape: f32[2,16,16,128], index: 10, kind: output, shape index: {}]
  %s11 = sld [smem:[#allocation0]]
  $region73: #{bottleneck_forward_nchw.1} parent=0
    _
  %s13 = ssub.s32 1, %s11
  %s14 = scalar_select 0, %s13, %s11
  loop: start=0, step=1, limit=6
  $region2: #{bottleneck_forward_nchw.1} parent=0 // loop_pre_header
    _
  $region3: #{bottleneck_forward_nchw.1} parent=0 // loop_header
    %s16 = sphi 0, %s20
    %p17 = scmp.ge.s32.totalorder %s16, 6
    %s23 = sphi 0, %s35
    %s24 = sphi 0, %s31
    %s25 = sphi 0, %s23
    %s26 = sphi 0, %s24
    %s27 = sphi 0, %s25
    %s28 = sphi 0, %s26
    %s38 = sphi 0, %s40
    %s41 = sphi 0, %s38
    %s42 = sphi 0, %s41
    %s58 = sphi 0, %s42
    %s62 = sphi 0, %s62
    %s64 = sphi 0, %s62
    %s65 = sphi 0, %s64
    %s79 = sphi 0, %s65
    %s83 = sphi 0, %s83
    %s85 = sphi 0, %s83
    %s86 = sphi 0, %s85
    %s100 = sphi 0, %s86
    %s104 = sphi 0, %s104
    %s106 = sphi 0, %s104
    %s107 = sphi 0, %s106
    %s121 = sphi 0, %s107
    %s125 = sphi 0, %s125
    %s127 = sphi 0, %s125
    %s128 = sphi 0, %s127
    %s142 = sphi 0, %s128
    %s146 = sphi 0, %s146
    %s148 = sphi 0, %s146
    %s149 = sphi 0, %s148
    %s163 = sphi 0, %s149
    %s167 = sphi 0, %s167
    %s169 = sphi 0, %s167
    %s170 = sphi 0, %s169
    %s184 = sphi 0, %s170
    %s188 = sphi 0, %s188
    %s190 = sphi 0, %s188
    %s191 = sphi 0, %s190
    %s205 = sphi 0, %s191
    %s209 = sphi 0, %s209
    %s211 = sphi 0, %s209
    %s212 = sphi 0, %s211
    %s226 = sphi 0, %s212
    %s230 = sphi 0, %s230
    %s232 = sphi 0, %s230
    %s233 = sphi 0, %s232
    %s247 = sphi 0, %s233
    %s255 = sphi 0, %s257
    %s258 = sphi 0, %s255
    %s259 = sphi 0, %s258
    %s275 = sphi 0, %s259
  $region4: #{bottleneck_forward_nchw.1} parent=0 // loop_header_branch
    %19 = sbr.rel (%p17) target = $region8
  $region5: #{bottleneck_forward_nchw.1} parent=0 // loop_body
    %s21 = ssub.s32 %s16, 1
    %s22 = ssub.s32 %s16, 2
    %s29 = sadd.s32 1, %s24
    %p30 = scmp.ge.s32.totalorder %s29, 2
    %s31 = scalar_select %p30, 0, %s29
    %s32 = sadd.s32 1, %s23
    %s33 = scalar_select %p30, %s32, %s23
    %p34 = scmp.ge.s32.totalorder %s33, 2
    %s35 = scalar_select %p34, 0, %s33
    %s36 = ssub.s32 %s23, %s35
    %p37 = scmp.eq.s32.totalorder %s36, 0
    %s39 = sadd.s32 %s38, 1
    %s40 = scalar_select %p37, %s38, %s39
    %p43 = pneg %p37
    %p44 = scmp.eq.s32.totalorder %s16, 3
    %p45 = por %p43, %p44
    %p46 = scmp.ne.s32.totalorder %s38, %s41
    %p47 = scmp.eq.s32.totalorder %s16, 0
    %p48 = por %p46, %p47
    %p49 = scmp.ne.s32.totalorder %s38, %s41
    %p50 = scmp.eq.s32.totalorder %s21, 3
    %p51 = por %p49, %p50
    %p52 = scmp.ne.s32.totalorder %s41, %s42
    %p53 = scmp.eq.s32.totalorder %s21, 0
    %p54 = por %p52, %p53
    %p55 = scmp.ne.s32.totalorder %s41, %s42
    %p56 = scmp.eq.s32.totalorder %s22, 3
    %p57 = por %p55, %p56
    %p59 = scmp.ne.s32.totalorder %s42, %s58
    %p60 = scmp.eq.s32.totalorder %s22, 0
    %p61 = por %p59, %p60
    %s63 = sadd.s32 %s62, 1
    %p66 = scmp.eq.s32.totalorder %s16, 3
    %p67 = scmp.ne.s32.totalorder %s62, %s64
    %p68 = scmp.eq.s32.totalorder %s16, 0
    %p69 = por %p67, %p68
    %p70 = scmp.ne.s32.totalorder %s62, %s64
    %p71 = scmp.eq.s32.totalorder %s21, 3
    %p72 = por %p70, %p71
    %p73 = scmp.ne.s32.totalorder %s64, %s65
    %p74 = scmp.eq.s32.totalorder %s21, 0
    %p75 = por %p73, %p74
    %p76 = scmp.ne.s32.totalorder %s64, %s65
    %p77 = scmp.eq.s32.totalorder %s22, 3
    %p78 = por %p76, %p77
    %p80 = scmp.ne.s32.totalorder %s65, %s79
    %p81 = scmp.eq.s32.totalorder %s22, 0
    %p82 = por %p80, %p81
    %s84 = sadd.s32 %s83, 1
    %p87 = scmp.eq.s32.totalorder %s16, 3
    %p88 = scmp.ne.s32.totalorder %s83, %s85
    %p89 = scmp.eq.s32.totalorder %s16, 0
    %p90 = por %p88, %p89
    %p91 = scmp.ne.s32.totalorder %s83, %s85
    %p92 = scmp.eq.s32.totalorder %s21, 3
    %p93 = por %p91, %p92
    %p94 = scmp.ne.s32.totalorder %s85, %s86
    %p95 = scmp.eq.s32.totalorder %s21, 0
    %p96 = por %p94, %p95
    %p97 = scmp.ne.s32.totalorder %s85, %s86
    %p98 = scmp.eq.s32.totalorder %s22, 3
    %p99 = por %p97, %p98
    %p101 = scmp.ne.s32.totalorder %s86, %s100
    %p102 = scmp.eq.s32.totalorder %s22, 0
    %p103 = por %p101, %p102
    %s105 = sadd.s32 %s104, 1
    %p108 = scmp.eq.s32.totalorder %s16, 3
    %p109 = scmp.ne.s32.totalorder %s104, %s106
    %p110 = scmp.eq.s32.totalorder %s16, 0
    %p111 = por %p109, %p110
    %p112 = scmp.ne.s32.totalorder %s104, %s106
    %p113 = scmp.eq.s32.totalorder %s21, 3
    %p114 = por %p112, %p113
    %p115 = scmp.ne.s32.totalorder %s106, %s107
    %p116 = scmp.eq.s32.totalorder %s21, 0
    %p117 = por %p115, %p116
    %p118 = scmp.ne.s32.totalorder %s106, %s107
    %p119 = scmp.eq.s32.totalorder %s22, 3
    %p120 = por %p118, %p119
    %p122 = scmp.ne.s32.totalorder %s107, %s121
    %p123 = scmp.eq.s32.totalorder %s22, 0
    %p124 = por %p122, %p123
    %s126 = sadd.s32 %s125, 1
    %p129 = scmp.eq.s32.totalorder %s16, 3
    %p130 = scmp.ne.s32.totalorder %s125, %s127
    %p131 = scmp.eq.s32.totalorder %s16, 0
    %p132 = por %p130, %p131
    %p133 = scmp.ne.s32.totalorder %s125, %s127
    %p134 = scmp.eq.s32.totalorder %s21, 3
    %p135 = por %p133, %p134
    %p136 = scmp.ne.s32.totalorder %s127, %s128
    %p137 = scmp.eq.s32.totalorder %s21, 0
    %p138 = por %p136, %p137
    %p139 = scmp.ne.s32.totalorder %s127, %s128
    %p140 = scmp.eq.s32.totalorder %s22, 3
    %p141 = por %p139, %p140
    %p143 = scmp.ne.s32.totalorder %s128, %s142
    %p144 = scmp.eq.s32.totalorder %s22, 0
    %p145 = por %p143, %p144
    %s147 = sadd.s32 %s146, 1
    %p150 = scmp.eq.s32.totalorder %s16, 3
    %p151 = scmp.ne.s32.totalorder %s146, %s148
    %p152 = scmp.eq.s32.totalorder %s16, 0
    %p153 = por %p151, %p152
    %p154 = scmp.ne.s32.totalorder %s146, %s148
    %p155 = scmp.eq.s32.totalorder %s21, 3
    %p156 = por %p154, %p155
    %p157 = scmp.ne.s32.totalorder %s148, %s149
    %p158 = scmp.eq.s32.totalorder %s21, 0
    %p159 = por %p157, %p158
    %p160 = scmp.ne.s32.totalorder %s148, %s149
    %p161 = scmp.eq.s32.totalorder %s22, 3
    %p162 = por %p160, %p161
    %p164 = scmp.ne.s32.totalorder %s149, %s163
    %p165 = scmp.eq.s32.totalorder %s22, 0
    %p166 = por %p164, %p165
    %s168 = sadd.s32 %s167, 1
    %p171 = scmp.eq.s32.totalorder %s16, 3
    %p172 = scmp.ne.s32.totalorder %s167, %s169
    %p173 = scmp.eq.s32.totalorder %s16, 0
    %p174 = por %p172, %p173
    %p175 = scmp.ne.s32.totalorder %s167, %s169
    %p176 = scmp.eq.s32.totalorder %s21, 3
    %p177 = por %p175, %p176
    %p178 = scmp.ne.s32.totalorder %s169, %s170
    %p179 = scmp.eq.s32.totalorder %s21, 0
    %p180 = por %p178, %p179
    %p181 = scmp.ne.s32.totalorder %s169, %s170
    %p182 = scmp.eq.s32.totalorder %s22, 3
    %p183 = por %p181, %p182
    %p185 = scmp.ne.s32.totalorder %s170, %s184
    %p186 = scmp.eq.s32.totalorder %s22, 0
    %p187 = por %p185, %p186
    %s189 = sadd.s32 %s188, 1
    %p192 = scmp.eq.s32.totalorder %s16, 3
    %p193 = scmp.ne.s32.totalorder %s188, %s190
    %p194 = scmp.eq.s32.totalorder %s16, 0
    %p195 = por %p193, %p194
    %p196 = scmp.ne.s32.totalorder %s188, %s190
    %p197 = scmp.eq.s32.totalorder %s21, 3
    %p198 = por %p196, %p197
    %p199 = scmp.ne.s32.totalorder %s190, %s191
    %p200 = scmp.eq.s32.totalorder %s21, 0
    %p201 = por %p199, %p200
    %p202 = scmp.ne.s32.totalorder %s190, %s191
    %p203 = scmp.eq.s32.totalorder %s22, 3
    %p204 = por %p202, %p203
    %p206 = scmp.ne.s32.totalorder %s191, %s205
    %p207 = scmp.eq.s32.totalorder %s22, 0
    %p208 = por %p206, %p207
    %s210 = sadd.s32 %s209, 1
    %p213 = scmp.eq.s32.totalorder %s16, 3
    %p214 = scmp.ne.s32.totalorder %s209, %s211
    %p215 = scmp.eq.s32.totalorder %s16, 0
    %p216 = por %p214, %p215
    %p217 = scmp.ne.s32.totalorder %s209, %s211
    %p218 = scmp.eq.s32.totalorder %s21, 3
    %p219 = por %p217, %p218
    %p220 = scmp.ne.s32.totalorder %s211, %s212
    %p221 = scmp.eq.s32.totalorder %s21, 0
    %p222 = por %p220, %p221
    %p223 = scmp.ne.s32.totalorder %s211, %s212
    %p224 = scmp.eq.s32.totalorder %s22, 3
    %p225 = por %p223, %p224
    %p227 = scmp.ne.s32.totalorder %s212, %s226
    %p228 = scmp.eq.s32.totalorder %s22, 0
    %p229 = por %p227, %p228
    %s231 = sadd.s32 %s230, 1
    %p234 = scmp.eq.s32.totalorder %s16, 3
    %p235 = scmp.ne.s32.totalorder %s230, %s232
    %p236 = scmp.eq.s32.totalorder %s16, 0
    %p237 = por %p235, %p236
    %p238 = scmp.ne.s32.totalorder %s230, %s232
    %p239 = scmp.eq.s32.totalorder %s21, 3
    %p240 = por %p238, %p239
    %p241 = scmp.ne.s32.totalorder %s232, %s233
    %p242 = scmp.eq.s32.totalorder %s21, 0
    %p243 = por %p241, %p242
    %p244 = scmp.ne.s32.totalorder %s232, %s233
    %p245 = scmp.eq.s32.totalorder %s22, 3
    %p246 = por %p244, %p245
    %p248 = scmp.ne.s32.totalorder %s233, %s247
    %p249 = scmp.eq.s32.totalorder %s22, 0
    %p250 = por %p248, %p249
    %s251 = ssub.s32 %s23, %s35
    %s252 = ssub.s32 %s24, %s31
    %s253 = sor.u32 %s251, %s252
    %p254 = scmp.eq.s32.totalorder %s253, 0
    %s256 = sadd.s32 %s255, 1
    %s257 = scalar_select %p254, %s255, %s256
    %p260 = pneg %p254
    %p261 = scmp.eq.s32.totalorder %s16, 3
    %p262 = por %p260, %p261
    %p263 = scmp.ne.s32.totalorder %s255, %s258
    %p264 = scmp.eq.s32.totalorder %s16, 0
    %p265 = por %p263, %p264
    %p266 = scmp.ne.s32.totalorder %s255, %s258
    %p267 = scmp.eq.s32.totalorder %s21, 3
    %p268 = por %p266, %p267
    %p269 = scmp.ne.s32.totalorder %s258, %s259
    %p270 = scmp.eq.s32.totalorder %s21, 0
    %p271 = por %p269, %p270
    %p272 = scmp.ne.s32.totalorder %s258, %s259
    %p273 = scmp.eq.s32.totalorder %s22, 3
    %p274 = por %p272, %p273
    %p276 = scmp.ne.s32.totalorder %s259, %s275
    %p277 = scmp.eq.s32.totalorder %s22, 0
    %p278 = por %p276, %p277
    %p279 = scmp.le.s32.totalorder 1, %s16
    %p280 = scmp.lt.s32.totalorder %s16, 5
    %p281 = pnand %p279, %p280
    %p282 = pneg %p281
    // Predicated region
    $region9: #{bottleneck_forward_nchw.1} parent=5 // pred_check
      _
    $region10: #{bottleneck_forward_nchw.1} parent=5 // pred_check_branch
      %284 = sbr.rel (%p281) target = $region12
    $region11: #{bottleneck_forward_nchw.1} parent=5 // pred_region
      %s285 = ssub.s32 %s16, 1
      // Predicated region
      $region13: #{bottleneck_forward_nchw.1} parent=11 // pred_check
        %p286 = pneg %p75
      $region14: #{bottleneck_forward_nchw.1} parent=11 // pred_check_branch
        %288 = sbr.rel (%p286) target = $region16
      $region15: #{bottleneck_forward_nchw.1} parent=11 // pred_region
        _
      $region16: #{bottleneck_forward_nchw.1} parent=11 // pred_fallthru
        _
      // Predicated region
      $region17: #{bottleneck_forward_nchw.1} parent=11 // pred_check
        %p289 = pneg %p96
      $region18: #{bottleneck_forward_nchw.1} parent=11 // pred_check_branch
        %291 = sbr.rel (%p289) target = $region20
      $region19: #{bottleneck_forward_nchw.1} parent=11 // pred_region
        _
      $region20: #{bottleneck_forward_nchw.1} parent=11 // pred_fallthru
        _
      // Predicated region
      $region21: #{bottleneck_forward_nchw.1} parent=11 // pred_check
        %p292 = pneg %p117
      $region22: #{bottleneck_forward_nchw.1} parent=11 // pred_check_branch
        %294 = sbr.rel (%p292) target = $region24
      $region23: #{bottleneck_forward_nchw.1} parent=11 // pred_region
        _
      $region24: #{bottleneck_forward_nchw.1} parent=11 // pred_fallthru
        _
      // Predicated region
      $region25: #{bottleneck_forward_nchw.1} parent=11 // pred_check
        %p295 = pneg %p138
      $region26: #{bottleneck_forward_nchw.1} parent=11 // pred_check_branch
        %297 = sbr.rel (%p295) target = $region28
      $region27: #{bottleneck_forward_nchw.1} parent=11 // pred_region
        _
      $region28: #{bottleneck_forward_nchw.1} parent=11 // pred_fallthru
        _
      // Predicated region
      $region29: #{bottleneck_forward_nchw.1} parent=11 // pred_check
        %p298 = pneg %p159
      $region30: #{bottleneck_forward_nchw.1} parent=11 // pred_check_branch
        %300 = sbr.rel (%p298) target = $region32
      $region31: #{bottleneck_forward_nchw.1} parent=11 // pred_region
        _
      $region32: #{bottleneck_forward_nchw.1} parent=11 // pred_fallthru
        _
      // Predicated region
      $region33: #{bottleneck_forward_nchw.1} parent=11 // pred_check
        %p301 = pneg %p180
      $region34: #{bottleneck_forward_nchw.1} parent=11 // pred_check_branch
        %303 = sbr.rel (%p301) target = $region36
      $region35: #{bottleneck_forward_nchw.1} parent=11 // pred_region
        _
      $region36: #{bottleneck_forward_nchw.1} parent=11 // pred_fallthru
        _
      // Predicated region
      $region37: #{bottleneck_forward_nchw.1} parent=11 // pred_check
        %p304 = pneg %p201
      $region38: #{bottleneck_forward_nchw.1} parent=11 // pred_check_branch
        %306 = sbr.rel (%p304) target = $region40
      $region39: #{bottleneck_forward_nchw.1} parent=11 // pred_region
        _
      $region40: #{bottleneck_forward_nchw.1} parent=11 // pred_fallthru
        _
      // Predicated region
      $region41: #{bottleneck_forward_nchw.1} parent=11 // pred_check
        %p307 = pneg %p222
      $region42: #{bottleneck_forward_nchw.1} parent=11 // pred_check_branch
        %309 = sbr.rel (%p307) target = $region44
      $region43: #{bottleneck_forward_nchw.1} parent=11 // pred_region
        _
      $region44: #{bottleneck_forward_nchw.1} parent=11 // pred_fallthru
        _
      // Predicated region
      $region45: #{bottleneck_forward_nchw.1} parent=11 // pred_check
        %p310 = pneg %p243
      $region46: #{bottleneck_forward_nchw.1} parent=11 // pred_check_branch
        %312 = sbr.rel (%p310) target = $region48
      $region47: #{bottleneck_forward_nchw.1} parent=11 // pred_region
        _
      $region48: #{bottleneck_forward_nchw.1} parent=11 // pred_fallthru
        _
    $region12: #{bottleneck_forward_nchw.1} parent=5 // pred_fallthru
      _
    %p313 = scmp.lt.s32.totalorder %s16, 4
    // Predicated region
    $region49: #{bottleneck_forward_nchw.1} parent=5 // pred_check
      %p314 = pneg %p313
    $region50: #{bottleneck_forward_nchw.1} parent=5 // pred_check_branch
      %316 = sbr.rel (%p314) target = $region52
    $region51: #{bottleneck_forward_nchw.1} parent=5 // pred_region
      // Predicated region
      $region53: #{bottleneck_forward_nchw.1} parent=51 // pred_check
        %p317 = pneg %p48
      $region54: #{bottleneck_forward_nchw.1} parent=51 // pred_check_branch
        %319 = sbr.rel (%p317) target = $region56
      $region55: #{bottleneck_forward_nchw.1} parent=51 // pred_region
        %p320 = scmp.lt.s32.totalorder %s23, 1
        %s321 = scalar_select %p320, %s23, 1
        %s322 = smul.addr %s321, 54
        %s323 = smul.addr %s322, 8
        %s324 = scalar_lea.vmem %s0, %s323
      $region56: #{bottleneck_forward_nchw.1} parent=51 // pred_fallthru
        _
    $region52: #{bottleneck_forward_nchw.1} parent=5 // pred_fallthru
      _
    %p325 = scmp.le.s32.totalorder 1, %s16
    %p326 = scmp.lt.s32.totalorder %s16, 5
    %p327 = pnand %p325, %p326
    %p328 = pneg %p327
    // Predicated region
    $region57: #{bottleneck_forward_nchw.1} parent=5 // pred_check
      _
    $region58: #{bottleneck_forward_nchw.1} parent=5 // pred_check_branch
      %330 = sbr.rel (%p327) target = $region60
    $region59: #{bottleneck_forward_nchw.1} parent=5 // pred_region
      %s331 = ssub.s32 %s16, 1
      %p332 = scmp.lt.s32.totalorder %s25, 1
      %s333 = scalar_select %p332, %s25, 1
      %s334 = smul.addr %s333, 54
      %s335 = smul.addr %s334, 8
      %s336 = scalar_lea.vmem %s0, %s335
      %p337 = pneg %p54
      %p338 = pneg %p51
      %p339 = pneg %p75
      %p340 = pneg %p72
      %p341 = pneg %p96
      %p342 = pneg %p93
      %p343 = pneg %p117
      %p344 = pneg %p114
      %p345 = pneg %p138
      %p346 = pneg %p135
      %p347 = pneg %p159
      %p348 = pneg %p156
      %p349 = pneg %p180
      %p350 = pneg %p177
      %p351 = pneg %p201
      %p352 = pneg %p198
      %p353 = pneg %p222
      %p354 = pneg %p219
      %p355 = pneg %p243
      %p356 = pneg %p240
      %p357 = pneg %p271
      %p358 = pneg %p268
      %s359 = smul.u32 8, %s26
      %p360 = scmp.lt.s32.totalorder %s25, 1
      %s361 = scalar_select %p360, %s25, 1
      %p362 = scmp.lt.s32.totalorder %s359, 15
      %s363 = scalar_select %p362, %s359, 15
      %s364 = smul.addr %s363, 2
      %s365 = smul.addr %s361, 32
      %s366 = sadd.s32 %s364, %s365
      %s367 = smul.addr %s366, 8
      %s368 = scalar_lea.vmem %s10, %s367
      %p369 = scmp.lt.s32.totalorder %s25, 1
      %s370 = scalar_select %p369, %s25, 1
      %s371 = smul.addr %s370, 54
      %s372 = smul.addr %s371, 8
      %s373 = scalar_lea.vmem %s0, %s372
      %s374 = smul.u32 8, %s26
      %p375 = scmp.lt.s32.totalorder %s25, 1
      %s376 = scalar_select %p375, %s25, 1
      %p377 = scmp.lt.s32.totalorder %s374, 15
      %s378 = scalar_select %p377, %s374, 15
      %s379 = smul.addr %s378, 2
      %s380 = smul.addr %s376, 32
      %s381 = sadd.s32 %s379, %s380
      %s382 = smul.addr %s381, 8
      %s383 = scalar_lea.vmem %s10, %s382
      %s384 = smul.u32 8, %s26
      %s386 = smul.u32 %s26, 8
      %s387 = smul.u32 %s386, 24
      %s388 = scalar_lea.vmem %s373, %s387
      %v389 = vld [vmem:[%s388] sm:$0xff]
      %v390 = vld [vmem:[%s388 + $0x8] sm:$0xff]
      %v391 = vld [vmem:[%s388 + $0x10] sm:$0x3]
      %v392 = vld [vmem:[%s388 + $0x18] sm:$0xff]
      %v393 = vld [vmem:[%s388 + $0x20] sm:$0xff]
      %v394 = vld [vmem:[%s388 + $0x28] sm:$0x3]
      %v395 = vld [vmem:[%s388 + $0x30] sm:$0xff]
      %v396 = vld [vmem:[%s388 + $0x38] sm:$0xff]
      %v397 = vld [vmem:[%s388 + $0x40] sm:$0x3]
      %v398 = vld [vmem:[%s388 + $0x48] sm:$0xff]
      %v399 = vld [vmem:[%s388 + $0x50] sm:$0xff]
      %v400 = vld [vmem:[%s388 + $0x58] sm:$0x3]
      %v401 = vld [vmem:[%s388 + $0x60] sm:$0xff]
      %v402 = vld [vmem:[%s388 + $0x68] sm:$0xff]
      %v403 = vld [vmem:[%s388 + $0x70] sm:$0x3]
      %v404 = vld [vmem:[%s388 + $0x78] sm:$0xff]
      %v405 = vld [vmem:[%s388 + $0x80] sm:$0xff]
      %v406 = vld [vmem:[%s388 + $0x88] sm:$0x3]
      %v407 = vld [vmem:[%s388 + $0x90] sm:$0xff]
      %v408 = vld [vmem:[%s388 + $0x98] sm:$0xff]
      %v409 = vld [vmem:[%s388 + $0xa0] sm:$0x3]
      %v410 = vld [vmem:[%s388 + $0xa8] sm:$0xff]
      %v411 = vld [vmem:[%s388 + $0xb0] sm:$0xff]
      %v412 = vld [vmem:[%s388 + $0xb8] sm:$0x3]
      %v413 = vld [vmem:[%s388 + $0xc0] sm:$0xff]
      %v414 = vld [vmem:[%s388 + $0xc8] sm:$0xff]
      %v415 = vld [vmem:[%s388 + $0xd0] sm:$0x3]
      %v416 = vld [vmem:[%s388 + $0xd8] sm:$0xff]
      %v417 = vld [vmem:[%s388 + $0xe0] sm:$0xff]
      %v418 = vld [vmem:[%s388 + $0xe8] sm:$0x3]
      %v449 = vcombine.high %v389, %v389
      %v451 = vunpack.c.l.s4 1983009808
      %v452 = vunpack.c.0.s8 %v451
      %v453 = vlaneseq
      %v454 = vshrl.u32 %v453, 7
      %v455 = vsub.s32 %v452, %v454
      %v456 = vrot.slane %v389, %v455
      %v458 = vunpack.c.l.s4 1983009808
      %v459 = vunpack.c.0.s8 %v458
      %v460 = vlaneseq
      %v461 = vshrl.u32 %v460, 7
      %v462 = vsub.s32 %v459, %v461
      %v463 = vrot.slane %v449, %v462
      %v464 = vcombine.high %v456, %v456
      %v465 = vcombine.high %v463, %v463
      %v466 = vcombine.high %v390, %v390
      %v468 = vunpack.c.l.s4 1983009808
      %v469 = vunpack.c.0.s8 %v468
      %v470 = vlaneseq
      %v471 = vshrl.u32 %v470, 7
      %v472 = vsub.s32 %v469, %v471
      %v473 = vrot.slane %v390, %v472
      %v475 = vunpack.c.l.s4 1983009808
      %v476 = vunpack.c.0.s8 %v475
      %v477 = vlaneseq
      %v478 = vshrl.u32 %v477, 7
      %v479 = vsub.s32 %v476, %v478
      %v480 = vrot.slane %v466, %v479
      %v481 = vcombine.high %v473, %v473
      %v482 = vcombine.high %v480, %v480
      %v484 = vunpack.c.l.s4 1983009808
      %v485 = vunpack.c.0.s8 %v484
      %v486 = vlaneseq
      %v487 = vshrl.u32 %v486, 7
      %v488 = vsub.s32 %v485, %v487
      %v489 = vrot.slane %v391, %v488
      %v490 = vcombine.high %v392, %v392
      %v492 = vunpack.c.l.s4 1983009808
      %v493 = vunpack.c.0.s8 %v492
      %v494 = vlaneseq
      %v495 = vshrl.u32 %v494, 7
      %v496 = vsub.s32 %v493, %v495
      %v497 = vrot.slane %v392, %v496
      %v499 = vunpack.c.l.s4 1983009808
      %v500 = vunpack.c.0.s8 %v499
      %v501 = vlaneseq
      %v502 = vshrl.u32 %v501, 7
      %v503 = vsub.s32 %v500, %v502
      %v504 = vrot.slane %v490, %v503
      %v505 = vcombine.high %v497, %v497
      %v506 = vcombine.high %v504, %v504
      %v507 = vcombine.high %v393, %v393
      %v509 = vunpack.c.l.s4 1983009808
      %v510 = vunpack.c.0.s8 %v509
      %v511 = vlaneseq
      %v512 = vshrl.u32 %v511, 7
      %v513 = vsub.s32 %v510, %v512
      %v514 = vrot.slane %v393, %v513
      %v516 = vunpack.c.l.s4 1983009808
      %v517 = vunpack.c.0.s8 %v516
      %v518 = vlaneseq
      %v519 = vshrl.u32 %v518, 7
      %v520 = vsub.s32 %v517, %v519
      %v521 = vrot.slane %v507, %v520
      %v522 = vcombine.high %v514, %v514
      %v523 = vcombine.high %v521, %v521
      %v525 = vunpack.c.l.s4 1983009808
      %v526 = vunpack.c.0.s8 %v525
      %v527 = vlaneseq
      %v528 = vshrl.u32 %v527, 7
      %v529 = vsub.s32 %v526, %v528
      %v530 = vrot.slane %v394, %v529
      %v531 = vcombine.high %v395, %v395
      %v533 = vunpack.c.l.s4 1983009808
      %v534 = vunpack.c.0.s8 %v533
      %v535 = vlaneseq
      %v536 = vshrl.u32 %v535, 7
      %v537 = vsub.s32 %v534, %v536
      %v538 = vrot.slane %v395, %v537
      %v540 = vunpack.c.l.s4 1983009808
      %v541 = vunpack.c.0.s8 %v540
      %v542 = vlaneseq
      %v543 = vshrl.u32 %v542, 7
      %v544 = vsub.s32 %v541, %v543
      %v545 = vrot.slane %v531, %v544
      %v546 = vcombine.high %v538, %v538
      %v547 = vcombine.high %v545, %v545
      %v548 = vcombine.high %v396, %v396
      %v550 = vunpack.c.l.s4 1983009808
      %v551 = vunpack.c.0.s8 %v550
      %v552 = vlaneseq
      %v553 = vshrl.u32 %v552, 7
      %v554 = vsub.s32 %v551, %v553
      %v555 = vrot.slane %v396, %v554
      %v557 = vunpack.c.l.s4 1983009808
      %v558 = vunpack.c.0.s8 %v557
      %v559 = vlaneseq
      %v560 = vshrl.u32 %v559, 7
      %v561 = vsub.s32 %v558, %v560
      %v562 = vrot.slane %v548, %v561
      %v563 = vcombine.high %v555, %v555
      %v564 = vcombine.high %v562, %v562
      %v566 = vunpack.c.l.s4 1983009808
      %v567 = vunpack.c.0.s8 %v566
      %v568 = vlaneseq
      %v569 = vshrl.u32 %v568, 7
      %v570 = vsub.s32 %v567, %v569
      %v571 = vrot.slane %v397, %v570
      %v572 = vcombine.high %v398, %v398
      %v574 = vunpack.c.l.s4 1983009808
      %v575 = vunpack.c.0.s8 %v574
      %v576 = vlaneseq
      %v577 = vshrl.u32 %v576, 7
      %v578 = vsub.s32 %v575, %v577
      %v579 = vrot.slane %v398, %v578
      %v581 = vunpack.c.l.s4 1983009808
      %v582 = vunpack.c.0.s8 %v581
      %v583 = vlaneseq
      %v584 = vshrl.u32 %v583, 7
      %v585 = vsub.s32 %v582, %v584
      %v586 = vrot.slane %v572, %v585
      %v587 = vcombine.high %v579, %v579
      %v588 = vcombine.high %v586, %v586
      %v589 = vcombine.high %v399, %v399
      %v591 = vunpack.c.l.s4 1983009808
      %v592 = vunpack.c.0.s8 %v591
      %v593 = vlaneseq
      %v594 = vshrl.u32 %v593, 7
      %v595 = vsub.s32 %v592, %v594
      %v596 = vrot.slane %v399, %v595
      %v598 = vunpack.c.l.s4 1983009808
      %v599 = vunpack.c.0.s8 %v598
      %v600 = vlaneseq
      %v601 = vshrl.u32 %v600, 7
      %v602 = vsub.s32 %v599, %v601
      %v603 = vrot.slane %v589, %v602
      %v604 = vcombine.high %v596, %v596
      %v605 = vcombine.high %v603, %v603
      %v607 = vunpack.c.l.s4 1983009808
      %v608 = vunpack.c.0.s8 %v607
      %v609 = vlaneseq
      %v610 = vshrl.u32 %v609, 7
      %v611 = vsub.s32 %v608, %v610
      %v612 = vrot.slane %v400, %v611
      %v613 = vcombine.high %v401, %v401
      %v615 = vunpack.c.l.s4 1983009808
      %v616 = vunpack.c.0.s8 %v615
      %v617 = vlaneseq
      %v618 = vshrl.u32 %v617, 7
      %v619 = vsub.s32 %v616, %v618
      %v620 = vrot.slane %v401, %v619
      %v622 = vunpack.c.l.s4 1983009808
      %v623 = vunpack.c.0.s8 %v622
      %v624 = vlaneseq
      %v625 = vshrl.u32 %v624, 7
      %v626 = vsub.s32 %v623, %v625
      %v627 = vrot.slane %v613, %v626
      %v628 = vcombine.high %v620, %v620
      %v629 = vcombine.high %v627, %v627
      %v630 = vcombine.high %v402, %v402
      %v632 = vunpack.c.l.s4 1983009808
      %v633 = vunpack.c.0.s8 %v632
      %v634 = vlaneseq
      %v635 = vshrl.u32 %v634, 7
      %v636 = vsub.s32 %v633, %v635
      %v637 = vrot.slane %v402, %v636
      %v639 = vunpack.c.l.s4 1983009808
      %v640 = vunpack.c.0.s8 %v639
      %v641 = vlaneseq
      %v642 = vshrl.u32 %v641, 7
      %v643 = vsub.s32 %v640, %v642
      %v644 = vrot.slane %v630, %v643
      %v645 = vcombine.high %v637, %v637
      %v646 = vcombine.high %v644, %v644
      %v648 = vunpack.c.l.s4 1983009808
      %v649 = vunpack.c.0.s8 %v648
      %v650 = vlaneseq
      %v651 = vshrl.u32 %v650, 7
      %v652 = vsub.s32 %v649, %v651
      %v653 = vrot.slane %v403, %v652
      %v654 = vcombine.high %v404, %v404
      %v656 = vunpack.c.l.s4 1983009808
      %v657 = vunpack.c.0.s8 %v656
      %v658 = vlaneseq
      %v659 = vshrl.u32 %v658, 7
      %v660 = vsub.s32 %v657, %v659
      %v661 = vrot.slane %v404, %v660
      %v663 = vunpack.c.l.s4 1983009808
      %v664 = vunpack.c.0.s8 %v663
      %v665 = vlaneseq
      %v666 = vshrl.u32 %v665, 7
      %v667 = vsub.s32 %v664, %v666
      %v668 = vrot.slane %v654, %v667
      %v669 = vcombine.high %v661, %v661
      %v670 = vcombine.high %v668, %v668
      %v671 = vcombine.high %v405, %v405
      %v673 = vunpack.c.l.s4 1983009808
      %v674 = vunpack.c.0.s8 %v673
      %v675 = vlaneseq
      %v676 = vshrl.u32 %v675, 7
      %v677 = vsub.s32 %v674, %v676
      %v678 = vrot.slane %v405, %v677
      %v680 = vunpack.c.l.s4 1983009808
      %v681 = vunpack.c.0.s8 %v680
      %v682 = vlaneseq
      %v683 = vshrl.u32 %v682, 7
      %v684 = vsub.s32 %v681, %v683
      %v685 = vrot.slane %v671, %v684
      %v686 = vcombine.high %v678, %v678
      %v687 = vcombine.high %v685, %v685
      %v689 = vunpack.c.l.s4 1983009808
      %v690 = vunpack.c.0.s8 %v689
      %v691 = vlaneseq
      %v692 = vshrl.u32 %v691, 7
      %v693 = vsub.s32 %v690, %v692
      %v694 = vrot.slane %v406, %v693
      %v695 = vcombine.high %v407, %v407
      %v697 = vunpack.c.l.s4 1983009808
      %v698 = vunpack.c.0.s8 %v697
      %v699 = vlaneseq
      %v700 = vshrl.u32 %v699, 7
      %v701 = vsub.s32 %v698, %v700
      %v702 = vrot.slane %v407, %v701
      %v704 = vunpack.c.l.s4 1983009808
      %v705 = vunpack.c.0.s8 %v704
      %v706 = vlaneseq
      %v707 = vshrl.u32 %v706, 7
      %v708 = vsub.s32 %v705, %v707
      %v709 = vrot.slane %v695, %v708
      %v710 = vcombine.high %v702, %v702
      %v711 = vcombine.high %v709, %v709
      %v712 = vcombine.high %v408, %v408
      %v714 = vunpack.c.l.s4 1983009808
      %v715 = vunpack.c.0.s8 %v714
      %v716 = vlaneseq
      %v717 = vshrl.u32 %v716, 7
      %v718 = vsub.s32 %v715, %v717
      %v719 = vrot.slane %v408, %v718
      %v721 = vunpack.c.l.s4 1983009808
      %v722 = vunpack.c.0.s8 %v721
      %v723 = vlaneseq
      %v724 = vshrl.u32 %v723, 7
      %v725 = vsub.s32 %v722, %v724
      %v726 = vrot.slane %v712, %v725
      %v727 = vcombine.high %v719, %v719
      %v728 = vcombine.high %v726, %v726
      %v730 = vunpack.c.l.s4 1983009808
      %v731 = vunpack.c.0.s8 %v730
      %v732 = vlaneseq
      %v733 = vshrl.u32 %v732, 7
      %v734 = vsub.s32 %v731, %v733
      %v735 = vrot.slane %v409, %v734
      %v736 = vcombine.high %v410, %v410
      %v738 = vunpack.c.l.s4 1983009808
      %v739 = vunpack.c.0.s8 %v738
      %v740 = vlaneseq
      %v741 = vshrl.u32 %v740, 7
      %v742 = vsub.s32 %v739, %v741
      %v743 = vrot.slane %v410, %v742
      %v745 = vunpack.c.l.s4 1983009808
      %v746 = vunpack.c.0.s8 %v745
      %v747 = vlaneseq
      %v748 = vshrl.u32 %v747, 7
      %v749 = vsub.s32 %v746, %v748
      %v750 = vrot.slane %v736, %v749
      %v751 = vcombine.high %v743, %v743
      %v752 = vcombine.high %v750, %v750
      %v753 = vcombine.high %v411, %v411
      %v755 = vunpack.c.l.s4 1983009808
      %v756 = vunpack.c.0.s8 %v755
      %v757 = vlaneseq
      %v758 = vshrl.u32 %v757, 7
      %v759 = vsub.s32 %v756, %v758
      %v760 = vrot.slane %v411, %v759
      %v762 = vunpack.c.l.s4 1983009808
      %v763 = vunpack.c.0.s8 %v762
      %v764 = vlaneseq
      %v765 = vshrl.u32 %v764, 7
      %v766 = vsub.s32 %v763, %v765
      %v767 = vrot.slane %v753, %v766
      %v768 = vcombine.high %v760, %v760
      %v769 = vcombine.high %v767, %v767
      %v771 = vunpack.c.l.s4 1983009808
      %v772 = vunpack.c.0.s8 %v771
      %v773 = vlaneseq
      %v774 = vshrl.u32 %v773, 7
      %v775 = vsub.s32 %v772, %v774
      %v776 = vrot.slane %v412, %v775
      %v777 = vcombine.high %v413, %v413
      %v779 = vunpack.c.l.s4 1983009808
      %v780 = vunpack.c.0.s8 %v779
      %v781 = vlaneseq
      %v782 = vshrl.u32 %v781, 7
      %v783 = vsub.s32 %v780, %v782
      %v784 = vrot.slane %v413, %v783
      %v786 = vunpack.c.l.s4 1983009808
      %v787 = vunpack.c.0.s8 %v786
      %v788 = vlaneseq
      %v789 = vshrl.u32 %v788, 7
      %v790 = vsub.s32 %v787, %v789
      %v791 = vrot.slane %v777, %v790
      %v792 = vcombine.high %v784, %v784
      %v793 = vcombine.high %v791, %v791
      %v794 = vcombine.high %v414, %v414
      %v796 = vunpack.c.l.s4 1983009808
      %v797 = vunpack.c.0.s8 %v796
      %v798 = vlaneseq
      %v799 = vshrl.u32 %v798, 7
      %v800 = vsub.s32 %v797, %v799
      %v801 = vrot.slane %v414, %v800
      %v803 = vunpack.c.l.s4 1983009808
      %v804 = vunpack.c.0.s8 %v803
      %v805 = vlaneseq
      %v806 = vshrl.u32 %v805, 7
      %v807 = vsub.s32 %v804, %v806
      %v808 = vrot.slane %v794, %v807
      %v809 = vcombine.high %v801, %v801
      %v810 = vcombine.high %v808, %v808
      %v812 = vunpack.c.l.s4 1983009808
      %v813 = vunpack.c.0.s8 %v812
      %v814 = vlaneseq
      %v815 = vshrl.u32 %v814, 7
      %v816 = vsub.s32 %v813, %v815
      %v817 = vrot.slane %v415, %v816
      %v818 = vcombine.high %v416, %v416
      %v820 = vunpack.c.l.s4 1983009808
      %v821 = vunpack.c.0.s8 %v820
      %v822 = vlaneseq
      %v823 = vshrl.u32 %v822, 7
      %v824 = vsub.s32 %v821, %v823
      %v825 = vrot.slane %v416, %v824
      %v827 = vunpack.c.l.s4 1983009808
      %v828 = vunpack.c.0.s8 %v827
      %v829 = vlaneseq
      %v830 = vshrl.u32 %v829, 7
      %v831 = vsub.s32 %v828, %v830
      %v832 = vrot.slane %v818, %v831
      %v833 = vcombine.high %v825, %v825
      %v834 = vcombine.high %v832, %v832
      %v835 = vcombine.high %v417, %v417
      %v837 = vunpack.c.l.s4 1983009808
      %v838 = vunpack.c.0.s8 %v837
      %v839 = vlaneseq
      %v840 = vshrl.u32 %v839, 7
      %v841 = vsub.s32 %v838, %v840
      %v842 = vrot.slane %v417, %v841
      %v844 = vunpack.c.l.s4 1983009808
      %v845 = vunpack.c.0.s8 %v844
      %v846 = vlaneseq
      %v847 = vshrl.u32 %v846, 7
      %v848 = vsub.s32 %v845, %v847
      %v849 = vrot.slane %v835, %v848
      %v850 = vcombine.high %v842, %v842
      %v851 = vcombine.high %v849, %v849
      %v853 = vunpack.c.l.s4 1983009808
      %v854 = vunpack.c.0.s8 %v853
      %v855 = vlaneseq
      %v856 = vshrl.u32 %v855, 7
      %v857 = vsub.s32 %v854, %v856
      %v858 = vrot.slane %v418, %v857
      %v859 = vcombine.low %v456, %v464
      %v860 = vcombine.low %v463, %v465
      %v862 = vunpack.c.l.s4 1983009808
      %v863 = vunpack.c.0.s8 %v862
      %v864 = vlaneseq
      %v865 = vshrl.u32 %v864, 7
      %v866 = vsub.s32 %v863, %v865
      %v867 = vrot.slane %v859, %v866
      %v869 = vunpack.c.l.s4 1983009808
      %v870 = vunpack.c.0.s8 %v869
      %v871 = vlaneseq
      %v872 = vshrl.u32 %v871, 7
      %v873 = vsub.s32 %v870, %v872
      %v874 = vrot.slane %v860, %v873
      %v875 = vcombine.low %v867, %v874
      %v876 = vcombine.low %v473, %v481
      %v877 = vcombine.low %v480, %v482
      %v879 = vunpack.c.l.s4 1983009808
      %v880 = vunpack.c.0.s8 %v879
      %v881 = vlaneseq
      %v882 = vshrl.u32 %v881, 7
      %v883 = vsub.s32 %v880, %v882
      %v884 = vrot.slane %v876, %v883
      %v886 = vunpack.c.l.s4 1983009808
      %v887 = vunpack.c.0.s8 %v886
      %v888 = vlaneseq
      %v889 = vshrl.u32 %v888, 7
      %v890 = vsub.s32 %v887, %v889
      %v891 = vrot.slane %v877, %v890
      %v892 = vcombine.low %v884, %v891
      %v893 = vcombine.low %v489, %v497
      %v894 = vcombine.low %v505, %v504
      %v896 = vunpack.c.l.s4 1983009808
      %v897 = vunpack.c.0.s8 %v896
      %v898 = vlaneseq
      %v899 = vshrl.u32 %v898, 7
      %v900 = vsub.s32 %v897, %v899
      %v901 = vrot.slane %v893, %v900
      %v903 = vunpack.c.l.s4 1983009808
      %v904 = vunpack.c.0.s8 %v903
      %v905 = vlaneseq
      %v906 = vshrl.u32 %v905, 7
      %v907 = vsub.s32 %v904, %v906
      %v908 = vrot.slane %v894, %v907
      %v909 = vcombine.low %v901, %v908
      %v910 = vcombine.low %v506, %v514
      %v911 = vcombine.low %v522, %v521
      %v913 = vunpack.c.l.s4 1983009808
      %v914 = vunpack.c.0.s8 %v913
      %v915 = vlaneseq
      %v916 = vshrl.u32 %v915, 7
      %v917 = vsub.s32 %v914, %v916
      %v918 = vrot.slane %v910, %v917
      %v920 = vunpack.c.l.s4 1983009808
      %v921 = vunpack.c.0.s8 %v920
      %v922 = vlaneseq
      %v923 = vshrl.u32 %v922, 7
      %v924 = vsub.s32 %v921, %v923
      %v925 = vrot.slane %v911, %v924
      %v926 = vcombine.low %v918, %v925
      %v927 = vcombine.low %v523, %v530
      %v928 = vcombine.low %v538, %v546
      %v930 = vunpack.c.l.s4 1983009808
      %v931 = vunpack.c.0.s8 %v930
      %v932 = vlaneseq
      %v933 = vshrl.u32 %v932, 7
      %v934 = vsub.s32 %v931, %v933
      %v935 = vrot.slane %v927, %v934
      %v937 = vunpack.c.l.s4 1983009808
      %v938 = vunpack.c.0.s8 %v937
      %v939 = vlaneseq
      %v940 = vshrl.u32 %v939, 7
      %v941 = vsub.s32 %v938, %v940
      %v942 = vrot.slane %v928, %v941
      %v943 = vcombine.low %v935, %v942
      %v944 = vcombine.low %v545, %v547
      %v945 = vcombine.low %v555, %v563
      %v947 = vunpack.c.l.s4 1983009808
      %v948 = vunpack.c.0.s8 %v947
      %v949 = vlaneseq
      %v950 = vshrl.u32 %v949, 7
      %v951 = vsub.s32 %v948, %v950
      %v952 = vrot.slane %v944, %v951
      %v954 = vunpack.c.l.s4 1983009808
      %v955 = vunpack.c.0.s8 %v954
      %v956 = vlaneseq
      %v957 = vshrl.u32 %v956, 7
      %v958 = vsub.s32 %v955, %v957
      %v959 = vrot.slane %v945, %v958
      %v960 = vcombine.low %v952, %v959
      %v961 = vcombine.low %v562, %v564
      %v962 = vcombine.low %v571, %v579
      %v964 = vunpack.c.l.s4 1983009808
      %v965 = vunpack.c.0.s8 %v964
      %v966 = vlaneseq
      %v967 = vshrl.u32 %v966, 7
      %v968 = vsub.s32 %v965, %v967
      %v969 = vrot.slane %v961, %v968
      %v971 = vunpack.c.l.s4 1983009808
      %v972 = vunpack.c.0.s8 %v971
      %v973 = vlaneseq
      %v974 = vshrl.u32 %v973, 7
      %v975 = vsub.s32 %v972, %v974
      %v976 = vrot.slane %v962, %v975
      %v977 = vcombine.low %v969, %v976
      %v978 = vcombine.low %v587, %v586
      %v979 = vcombine.low %v588, %v596
      %v981 = vunpack.c.l.s4 1983009808
      %v982 = vunpack.c.0.s8 %v981
      %v983 = vlaneseq
      %v984 = vshrl.u32 %v983, 7
      %v985 = vsub.s32 %v982, %v984
      %v986 = vrot.slane %v978, %v985
      %v988 = vunpack.c.l.s4 1983009808
      %v989 = vunpack.c.0.s8 %v988
      %v990 = vlaneseq
      %v991 = vshrl.u32 %v990, 7
      %v992 = vsub.s32 %v989, %v991
      %v993 = vrot.slane %v979, %v992
      %v994 = vcombine.low %v986, %v993
      %v995 = vcombine.low %v604, %v603
      %v996 = vcombine.low %v605, %v612
      %v998 = vunpack.c.l.s4 1983009808
      %v999 = vunpack.c.0.s8 %v998
      %v1000 = vlaneseq
      %v1001 = vshrl.u32 %v1000, 7
      %v1002 = vsub.s32 %v999, %v1001
      %v1003 = vrot.slane %v995, %v1002
      %v1005 = vunpack.c.l.s4 1983009808
      %v1006 = vunpack.c.0.s8 %v1005
      %v1007 = vlaneseq
      %v1008 = vshrl.u32 %v1007, 7
      %v1009 = vsub.s32 %v1006, %v1008
      %v1010 = vrot.slane %v996, %v1009
      %v1011 = vcombine.low %v1003, %v1010
      %v1012 = vcombine.low %v620, %v628
      %v1013 = vcombine.low %v627, %v629
      %v1015 = vunpack.c.l.s4 1983009808
      %v1016 = vunpack.c.0.s8 %v1015
      %v1017 = vlaneseq
      %v1018 = vshrl.u32 %v1017, 7
      %v1019 = vsub.s32 %v1016, %v1018
      %v1020 = vrot.slane %v1012, %v1019
      %v1022 = vunpack.c.l.s4 1983009808
      %v1023 = vunpack.c.0.s8 %v1022
      %v1024 = vlaneseq
      %v1025 = vshrl.u32 %v1024, 7
      %v1026 = vsub.s32 %v1023, %v1025
      %v1027 = vrot.slane %v1013, %v1026
      %v1028 = vcombine.low %v1020, %v1027
      %v1029 = vcombine.low %v637, %v645
      %v1030 = vcombine.low %v644, %v646
      %v1032 = vunpack.c.l.s4 1983009808
      %v1033 = vunpack.c.0.s8 %v1032
      %v1034 = vlaneseq
      %v1035 = vshrl.u32 %v1034, 7
      %v1036 = vsub.s32 %v1033, %v1035
      %v1037 = vrot.slane %v1029, %v1036
      %v1039 = vunpack.c.l.s4 1983009808
      %v1040 = vunpack.c.0.s8 %v1039
      %v1041 = vlaneseq
      %v1042 = vshrl.u32 %v1041, 7
      %v1043 = vsub.s32 %v1040, %v1042
      %v1044 = vrot.slane %v1030, %v1043
      %v1045 = vcombine.low %v1037, %v1044
      %v1046 = vcombine.low %v653, %v661
      %v1047 = vcombine.low %v669, %v668
      %v1049 = vunpack.c.l.s4 1983009808
      %v1050 = vunpack.c.0.s8 %v1049
      %v1051 = vlaneseq
      %v1052 = vshrl.u32 %v1051, 7
      %v1053 = vsub.s32 %v1050, %v1052
      %v1054 = vrot.slane %v1046, %v1053
      %v1056 = vunpack.c.l.s4 1983009808
      %v1057 = vunpack.c.0.s8 %v1056
      %v1058 = vlaneseq
      %v1059 = vshrl.u32 %v1058, 7
      %v1060 = vsub.s32 %v1057, %v1059
      %v1061 = vrot.slane %v1047, %v1060
      %v1062 = vcombine.low %v1054, %v1061
      %v1063 = vcombine.low %v670, %v678
      %v1064 = vcombine.low %v686, %v685
      %v1066 = vunpack.c.l.s4 1983009808
      %v1067 = vunpack.c.0.s8 %v1066
      %v1068 = vlaneseq
      %v1069 = vshrl.u32 %v1068, 7
      %v1070 = vsub.s32 %v1067, %v1069
      %v1071 = vrot.slane %v1063, %v1070
      %v1073 = vunpack.c.l.s4 1983009808
      %v1074 = vunpack.c.0.s8 %v1073
      %v1075 = vlaneseq
      %v1076 = vshrl.u32 %v1075, 7
      %v1077 = vsub.s32 %v1074, %v1076
      %v1078 = vrot.slane %v1064, %v1077
      %v1079 = vcombine.low %v1071, %v1078
      %v1080 = vcombine.low %v687, %v694
      %v1081 = vcombine.low %v702, %v710
      %v1083 = vunpack.c.l.s4 1983009808
      %v1084 = vunpack.c.0.s8 %v1083
      %v1085 = vlaneseq
      %v1086 = vshrl.u32 %v1085, 7
      %v1087 = vsub.s32 %v1084, %v1086
      %v1088 = vrot.slane %v1080, %v1087
      %v1090 = vunpack.c.l.s4 1983009808
      %v1091 = vunpack.c.0.s8 %v1090
      %v1092 = vlaneseq
      %v1093 = vshrl.u32 %v1092, 7
      %v1094 = vsub.s32 %v1091, %v1093
      %v1095 = vrot.slane %v1081, %v1094
      %v1096 = vcombine.low %v1088, %v1095
      %v1097 = vcombine.low %v709, %v711
      %v1098 = vcombine.low %v719, %v727
      %v1100 = vunpack.c.l.s4 1983009808
      %v1101 = vunpack.c.0.s8 %v1100
      %v1102 = vlaneseq
      %v1103 = vshrl.u32 %v1102, 7
      %v1104 = vsub.s32 %v1101, %v1103
      %v1105 = vrot.slane %v1097, %v1104
      %v1107 = vunpack.c.l.s4 1983009808
      %v1108 = vunpack.c.0.s8 %v1107
      %v1109 = vlaneseq
      %v1110 = vshrl.u32 %v1109, 7
      %v1111 = vsub.s32 %v1108, %v1110
      %v1112 = vrot.slane %v1098, %v1111
      %v1113 = vcombine.low %v1105, %v1112
      %v1114 = vcombine.low %v726, %v728
      %v1115 = vcombine.low %v735, %v743
      %v1117 = vunpack.c.l.s4 1983009808
      %v1118 = vunpack.c.0.s8 %v1117
      %v1119 = vlaneseq
      %v1120 = vshrl.u32 %v1119, 7
      %v1121 = vsub.s32 %v1118, %v1120
      %v1122 = vrot.slane %v1114, %v1121
      %v1124 = vunpack.c.l.s4 1983009808
      %v1125 = vunpack.c.0.s8 %v1124
      %v1126 = vlaneseq
      %v1127 = vshrl.u32 %v1126, 7
      %v1128 = vsub.s32 %v1125, %v1127
      %v1129 = vrot.slane %v1115, %v1128
      %v1130 = vcombine.low %v1122, %v1129
      %v1131 = vcombine.low %v751, %v750
      %v1132 = vcombine.low %v752, %v760
      %v1134 = vunpack.c.l.s4 1983009808
      %v1135 = vunpack.c.0.s8 %v1134
      %v1136 = vlaneseq
      %v1137 = vshrl.u32 %v1136, 7
      %v1138 = vsub.s32 %v1135, %v1137
      %v1139 = vrot.slane %v1131, %v1138
      %v1141 = vunpack.c.l.s4 1983009808
      %v1142 = vunpack.c.0.s8 %v1141
      %v1143 = vlaneseq
      %v1144 = vshrl.u32 %v1143, 7
      %v1145 = vsub.s32 %v1142, %v1144
      %v1146 = vrot.slane %v1132, %v1145
      %v1147 = vcombine.low %v1139, %v1146
      %v1148 = vcombine.low %v768, %v767
      %v1149 = vcombine.low %v769, %v776
      %v1151 = vunpack.c.l.s4 1983009808
      %v1152 = vunpack.c.0.s8 %v1151
      %v1153 = vlaneseq
      %v1154 = vshrl.u32 %v1153, 7
      %v1155 = vsub.s32 %v1152, %v1154
      %v1156 = vrot.slane %v1148, %v1155
      %v1158 = vunpack.c.l.s4 1983009808
      %v1159 = vunpack.c.0.s8 %v1158
      %v1160 = vlaneseq
      %v1161 = vshrl.u32 %v1160, 7
      %v1162 = vsub.s32 %v1159, %v1161
      %v1163 = vrot.slane %v1149, %v1162
      %v1164 = vcombine.low %v1156, %v1163
      %v1165 = vcombine.low %v784, %v792
      %v1166 = vcombine.low %v791, %v793
      %v1168 = vunpack.c.l.s4 1983009808
      %v1169 = vunpack.c.0.s8 %v1168
      %v1170 = vlaneseq
      %v1171 = vshrl.u32 %v1170, 7
      %v1172 = vsub.s32 %v1169, %v1171
      %v1173 = vrot.slane %v1165, %v1172
      %v1175 = vunpack.c.l.s4 1983009808
      %v1176 = vunpack.c.0.s8 %v1175
      %v1177 = vlaneseq
      %v1178 = vshrl.u32 %v1177, 7
      %v1179 = vsub.s32 %v1176, %v1178
      %v1180 = vrot.slane %v1166, %v1179
      %v1181 = vcombine.low %v1173, %v1180
      %v1182 = vcombine.low %v801, %v809
      %v1183 = vcombine.low %v808, %v810
      %v1185 = vunpack.c.l.s4 1983009808
      %v1186 = vunpack.c.0.s8 %v1185
      %v1187 = vlaneseq
      %v1188 = vshrl.u32 %v1187, 7
      %v1189 = vsub.s32 %v1186, %v1188
      %v1190 = vrot.slane %v1182, %v1189
      %v1192 = vunpack.c.l.s4 1983009808
      %v1193 = vunpack.c.0.s8 %v1192
      %v1194 = vlaneseq
      %v1195 = vshrl.u32 %v1194, 7
      %v1196 = vsub.s32 %v1193, %v1195
      %v1197 = vrot.slane %v1183, %v1196
      %v1198 = vcombine.low %v1190, %v1197
      %v1199 = vcombine.low %v817, %v825
      %v1200 = vcombine.low %v833, %v832
      %v1202 = vunpack.c.l.s4 1983009808
      %v1203 = vunpack.c.0.s8 %v1202
      %v1204 = vlaneseq
      %v1205 = vshrl.u32 %v1204, 7
      %v1206 = vsub.s32 %v1203, %v1205
      %v1207 = vrot.slane %v1199, %v1206
      %v1209 = vunpack.c.l.s4 1983009808
      %v1210 = vunpack.c.0.s8 %v1209
      %v1211 = vlaneseq
      %v1212 = vshrl.u32 %v1211, 7
      %v1213 = vsub.s32 %v1210, %v1212
      %v1214 = vrot.slane %v1200, %v1213
      %v1215 = vcombine.low %v1207, %v1214
      %v1216 = vcombine.low %v834, %v842
      %v1217 = vcombine.low %v850, %v849
      %v1219 = vunpack.c.l.s4 1983009808
      %v1220 = vunpack.c.0.s8 %v1219
      %v1221 = vlaneseq
      %v1222 = vshrl.u32 %v1221, 7
      %v1223 = vsub.s32 %v1220, %v1222
      %v1224 = vrot.slane %v1216, %v1223
      %v1226 = vunpack.c.l.s4 1983009808
      %v1227 = vunpack.c.0.s8 %v1226
      %v1228 = vlaneseq
      %v1229 = vshrl.u32 %v1228, 7
      %v1230 = vsub.s32 %v1227, %v1229
      %v1231 = vrot.slane %v1217, %v1230
      %v1232 = vcombine.low %v1224, %v1231
      %v1233 = vcombine.low %v851, %v858
      %v1235 = vunpack.c.l.s4 1983009808
      %v1236 = vunpack.c.0.s8 %v1235
      %v1237 = vlaneseq
      %v1238 = vshrl.u32 %v1237, 7
      %v1239 = vsub.s32 %v1236, %v1238
      %v1240 = vrot.slane %v1233, %v1239
      %v1264 = vpack.c.bf16 %v892, %v875
      %v1265 = vpack.c.bf16 %v926, %v909
      %v1266 = vpack.c.bf16 %v960, %v943
      %v1267 = vpack.c.bf16 %v994, %v977
      %v1268 = vpack.c.bf16 %v1028, %v1011
      %v1269 = vpack.c.bf16 %v1062, %v1045
      %v1270 = vpack.c.bf16 %v1096, %v1079
      %v1271 = vpack.c.bf16 %v1130, %v1113
      %v1272 = vpack.c.bf16 %v1164, %v1147
      %v1273 = vpack.c.bf16 %v1198, %v1181
      %v1274 = vpack.c.bf16 %v1232, %v1215
      %v1275 = vpack.c.bf16 %v1240, %v1240
      %v1276 = vld [vmem:[%s1] sm:$0xf]
      %v1277 = vld [vmem:[%s1 + $0x4] sm:$0xf]
      %v1278 = vld [vmem:[%s1 + $0x8] sm:$0xf]
      %v1279 = vld [vmem:[%s1 + $0xc] sm:$0xf]
      %v1280 = vld [vmem:[%s1 + $0x10] sm:$0xf]
      %v1281 = vld [vmem:[%s1 + $0x14] sm:$0xf]
      %v1282 = vld [vmem:[%s1 + $0x18] sm:$0xf]
      %v1283 = vld [vmem:[%s1 + $0x1c] sm:$0xf]
      %v1284 = vld [vmem:[%s1 + $0x20] sm:$0xf]
      %v1285 = vld [vmem:[%s1 + $0x24] sm:$0xf]
      %v1286 = vld [vmem:[%s1 + $0x28] sm:$0xf]
      %v1287 = vld [vmem:[%s1 + $0x2c] sm:$0xf]
      %v1288 = vld [vmem:[%s1 + $0x30] sm:$0xf]
      %v1289 = vld [vmem:[%s1 + $0x34] sm:$0xf]
      %v1290 = vld [vmem:[%s1 + $0x38] sm:$0xf]
      %v1291 = vld [vmem:[%s1 + $0x3c] sm:$0xf]
      %v1308 = vunpack.c.l.b16 %v1276
      %v1309 = vunpack.c.l.b16 %v1277
      %v1310 = vunpack.c.l.b16 %v1278
      %v1311 = vunpack.c.l.b16 %v1279
      %v1312 = vunpack.c.l.b16 %v1280
      %v1313 = vunpack.c.l.b16 %v1281
      %v1314 = vunpack.c.l.b16 %v1282
      %v1315 = vunpack.c.l.b16 %v1283
      %v1316 = vunpack.c.l.b16 %v1284
      %v1317 = vunpack.c.l.b16 %v1285
      %v1318 = vunpack.c.l.b16 %v1286
      %v1319 = vunpack.c.l.b16 %v1287
      %v1320 = vunpack.c.l.b16 %v1288
      %v1321 = vunpack.c.l.b16 %v1289
      %v1322 = vunpack.c.l.b16 %v1290
      %v1323 = vunpack.c.l.b16 %v1291
      %v1324 = vpack.c.b16 %v1309, %v1308
      %v1325 = vpack.c.b16 %v1311, %v1310
      %v1326 = vpack.c.b16 %v1313, %v1312
      %v1327 = vpack.c.b16 %v1315, %v1314
      %v1328 = vpack.c.b16 %v1317, %v1316
      %v1329 = vpack.c.b16 %v1319, %v1318
      %v1330 = vpack.c.b16 %v1321, %v1320
      %v1331 = vpack.c.b16 %v1323, %v1322
      %1340 = vmatprep.subr.bf16.mxu0 0
      %1341 = vmatpush1.bf16.msra.mxu0 %v1324
      %1342 = vmatprep.subr.bf16.mxu0 0
      %1343 = vmatpush1.bf16.msra.mxu0 %v1325
      %1344 = vmatprep.subr.bf16.mxu0 0
      %1345 = vmatpush1.bf16.msra.mxu0 %v1326
      %1346 = vmatprep.subr.bf16.mxu0 0
      %1347 = vmatpush1.bf16.msra.mxu0 %v1327
      %1348 = vmatprep.subr.bf16.mxu0 0
      %1349 = vmatpush1.bf16.msra.mxu0 %v1328
      %1350 = vmatprep.subr.bf16.mxu0 0
      %1351 = vmatpush1.bf16.msra.mxu0 %v1329
      %1352 = vmatprep.subr.bf16.mxu0 0
      %1353 = vmatpush1.bf16.msra.mxu0 %v1330
      %1354 = vmatprep.subr.bf16.mxu0 0
      %1355 = vmatpush1.bf16.msra.mxu0 %v1331
      %1356 = vmatprep.subr.bf16.mxu0 0
      %1357 = vmatpush1.bf16.msra.mxu0 0
      %1358 = vmatprep.subr.bf16.mxu0 0
      %1359 = vmatpush1.bf16.msra.mxu0 0
      %1360 = vmatprep.subr.bf16.mxu0 0
      %1361 = vmatpush1.bf16.msra.mxu0 0
      %1362 = vmatprep.subr.bf16.mxu0 0
      %1363 = vmatpush1.bf16.msra.mxu0 0
      %1364 = vmatprep.subr.bf16.mxu0 0
      %1365 = vmatpush1.bf16.msra.mxu0 0
      %1366 = vmatprep.subr.bf16.mxu0 0
      %1367 = vmatpush1.bf16.msra.mxu0 0
      %1368 = vmatprep.subr.bf16.mxu0 0
      %1369 = vmatpush1.bf16.msra.mxu0 0
      %1370 = vmatprep.subr.bf16.mxu0 0
      %1371 = vmatpush1.bf16.msra.mxu0 0
      %1372 = vmatprep.mubr.bf16.mxu0 0
      %1373 = vmatmul.mubr.bf16.gmra.mrb[0].mxu0 %v1264
      %v1374 = vpop.f32.mrb[0].mxu0
      %v1375 = vadd.f32 0.0, %v1374
      %v1376 = vpop.f32.mrb[0].mxu0
      %v1377 = vpop.f32.mrb[0].mxu0
      %v1378 = vadd.f32 0.0, %v1377
      %v1379 = vpop.f32.mrb[0].mxu0
      %1380 = vmatprep.mubr.bf16.mxu0 0
      %1381 = vmatmul.mubr.bf16.gmra.mrb[0].mxu0 %v1265
      %v1382 = vpop.f32.mrb[0].mxu0
      %v1383 = vadd.f32 0.0, %v1382
      %v1384 = vpop.f32.mrb[0].mxu0
      %v1385 = vpop.f32.mrb[0].mxu0
      %v1386 = vadd.f32 0.0, %v1385
      %v1387 = vpop.f32.mrb[0].mxu0
      %1388 = vmatprep.mubr.bf16.mxu0 0
      %1389 = vmatmul.mubr.bf16.gmra.mrb[0].mxu0 %v1266
      %v1390 = vpop.f32.mrb[0].mxu0
      %v1391 = vadd.f32 0.0, %v1390
      %v1392 = vpop.f32.mrb[0].mxu0
      %v1393 = vpop.f32.mrb[0].mxu0
      %v1394 = vadd.f32 0.0, %v1393
      %v1395 = vpop.f32.mrb[0].mxu0
      %1396 = vmatprep.mubr.bf16.mxu0 0
      %1397 = vmatmul.mubr.bf16.gmra.mrb[0].mxu0 %v1267
      %v1398 = vpop.f32.mrb[0].mxu0
      %v1399 = vadd.f32 0.0, %v1398
      %v1400 = vpop.f32.mrb[0].mxu0
      %v1401 = vpop.f32.mrb[0].mxu0
      %v1402 = vadd.f32 0.0, %v1401
      %v1403 = vpop.f32.mrb[0].mxu0
      %1404 = vmatprep.mubr.bf16.mxu0 0
      %1405 = vmatmul.mubr.bf16.gmra.mrb[0].mxu0 %v1268
      %v1406 = vpop.f32.mrb[0].mxu0
      %v1407 = vadd.f32 0.0, %v1406
      %v1408 = vpop.f32.mrb[0].mxu0
      %v1409 = vpop.f32.mrb[0].mxu0
      %v1410 = vadd.f32 0.0, %v1409
      %v1411 = vpop.f32.mrb[0].mxu0
      %1412 = vmatprep.mubr.bf16.mxu0 0
      %1413 = vmatmul.mubr.bf16.gmra.mrb[0].mxu0 %v1269
      %v1414 = vpop.f32.mrb[0].mxu0
      %v1415 = vadd.f32 0.0, %v1414
      %v1416 = vpop.f32.mrb[0].mxu0
      %v1417 = vpop.f32.mrb[0].mxu0
      %v1418 = vadd.f32 0.0, %v1417
      %v1419 = vpop.f32.mrb[0].mxu0
      %1420 = vmatprep.mubr.bf16.mxu0 0
      %1421 = vmatmul.mubr.bf16.gmra.mrb[0].mxu0 %v1270
      %v1422 = vpop.f32.mrb[0].mxu0
      %v1423 = vadd.f32 0.0, %v1422
      %v1424 = vpop.f32.mrb[0].mxu0
      %v1425 = vpop.f32.mrb[0].mxu0
      %v1426 = vadd.f32 0.0, %v1425
      %v1427 = vpop.f32.mrb[0].mxu0
      %1428 = vmatprep.mubr.bf16.mxu0 0
      %1429 = vmatmul.mubr.bf16.gmra.mrb[0].mxu0 %v1271
      %v1430 = vpop.f32.mrb[0].mxu0
      %v1431 = vadd.f32 0.0, %v1430
      %v1432 = vpop.f32.mrb[0].mxu0
      %v1433 = vpop.f32.mrb[0].mxu0
      %v1434 = vadd.f32 0.0, %v1433
      %v1435 = vpop.f32.mrb[0].mxu0
      %1436 = vmatprep.mubr.bf16.mxu0 0
      %1437 = vmatmul.mubr.bf16.gmra.mrb[0].mxu0 %v1272
      %v1438 = vpop.f32.mrb[0].mxu0
      %v1439 = vadd.f32 0.0, %v1438
      %v1440 = vpop.f32.mrb[0].mxu0
      %v1441 = vpop.f32.mrb[0].mxu0
      %v1442 = vadd.f32 0.0, %v1441
      %v1443 = vpop.f32.mrb[0].mxu0
      %1444 = vmatprep.mubr.bf16.mxu0 0
      %1445 = vmatmul.mubr.bf16.gmra.mrb[0].mxu0 %v1273
      %v1446 = vpop.f32.mrb[0].mxu0
      %v1447 = vadd.f32 0.0, %v1446
      %v1448 = vpop.f32.mrb[0].mxu0
      %v1449 = vpop.f32.mrb[0].mxu0
      %v1450 = vadd.f32 0.0, %v1449
      %v1451 = vpop.f32.mrb[0].mxu0
      %1452 = vmatprep.mubr.bf16.mxu0 0
      %1453 = vmatmul.mubr.bf16.gmra.mrb[0].mxu0 %v1274
      %v1454 = vpop.f32.mrb[0].mxu0
      %v1455 = vadd.f32 0.0, %v1454
      %v1456 = vpop.f32.mrb[0].mxu0
      %v1457 = vpop.f32.mrb[0].mxu0
      %v1458 = vadd.f32 0.0, %v1457
      %v1459 = vpop.f32.mrb[0].mxu0
      %1460 = vmatprep.mubr.bf16.mxu0 0
      %1461 = vmatmul.mubr.bf16.gmra.mrb[0].mxu0 %v1275
      %v1462 = vpop.f32.mrb[0].mxu0
      %v1463 = vadd.f32 0.0, %v1462
      %v1464 = vpop.f32.mrb[0].mxu0
      %v1465 = vpop.f32.mrb[0].mxu0
      %v1466 = vpop.f32.mrb[0].mxu0
      %1467 = vdwg.mxu0
      %v1468 = vld [vmem:[%s2] sm:$0x1]
      %v1470 = vlaneseq
      %v1471 = vshrl.u32 %v1470, 7
      %v1472 = vsub.s32 0, %v1471
      %v1473 = vrot.slane %v1468, %v1472
      %v1475 = vmul.f32 %v1375, %v1473
      %v1476 = vmul.f32 %v1378, %v1473
      %v1477 = vmul.f32 %v1383, %v1473
      %v1478 = vmul.f32 %v1386, %v1473
      %v1479 = vmul.f32 %v1391, %v1473
      %v1480 = vmul.f32 %v1394, %v1473
      %v1481 = vmul.f32 %v1399, %v1473
      %v1482 = vmul.f32 %v1402, %v1473
      %v1483 = vmul.f32 %v1407, %v1473
      %v1484 = vmul.f32 %v1410, %v1473
      %v1485 = vmul.f32 %v1415, %v1473
      %v1486 = vmul.f32 %v1418, %v1473
      %v1487 = vmul.f32 %v1423, %v1473
      %v1488 = vmul.f32 %v1426, %v1473
      %v1489 = vmul.f32 %v1431, %v1473
      %v1490 = vmul.f32 %v1434, %v1473
      %v1491 = vmul.f32 %v1439, %v1473
      %v1492 = vmul.f32 %v1442, %v1473
      %v1493 = vmul.f32 %v1447, %v1473
      %v1494 = vmul.f32 %v1450, %v1473
      %v1495 = vmul.f32 %v1455, %v1473
      %v1496 = vmul.f32 %v1458, %v1473
      %v1497 = vmul.f32 %v1463, %v1473
      %v1498 = vld [vmem:[%s3] sm:$0x1]
      %v1500 = vlaneseq
      %v1501 = vshrl.u32 %v1500, 7
      %v1502 = vsub.s32 0, %v1501
      %v1503 = vrot.slane %v1498, %v1502
      %v1505 = vadd.f32 %v1475, %v1503
      %v1506 = vadd.f32 %v1476, %v1503
      %v1507 = vadd.f32 %v1477, %v1503
      %v1508 = vadd.f32 %v1478, %v1503
      %v1509 = vadd.f32 %v1479, %v1503
      %v1510 = vadd.f32 %v1480, %v1503
      %v1511 = vadd.f32 %v1481, %v1503
      %v1512 = vadd.f32 %v1482, %v1503
      %v1513 = vadd.f32 %v1483, %v1503
      %v1514 = vadd.f32 %v1484, %v1503
      %v1515 = vadd.f32 %v1485, %v1503
      %v1516 = vadd.f32 %v1486, %v1503
      %v1517 = vadd.f32 %v1487, %v1503
      %v1518 = vadd.f32 %v1488, %v1503
      %v1519 = vadd.f32 %v1489, %v1503
      %v1520 = vadd.f32 %v1490, %v1503
      %v1521 = vadd.f32 %v1491, %v1503
      %v1522 = vadd.f32 %v1492, %v1503
      %v1523 = vadd.f32 %v1493, %v1503
      %v1524 = vadd.f32 %v1494, %v1503
      %v1525 = vadd.f32 %v1495, %v1503
      %v1526 = vadd.f32 %v1496, %v1503
      %v1527 = vadd.f32 %v1497, %v1503
      %v1528 = vmax.f32 %v1505, 0.0
      %v1529 = vmax.f32 %v1506, 0.0
      %v1530 = vmax.f32 %v1507, 0.0
      %v1531 = vmax.f32 %v1508, 0.0
      %v1532 = vmax.f32 %v1509, 0.0
      %v1533 = vmax.f32 %v1510, 0.0
      %v1534 = vmax.f32 %v1511, 0.0
      %v1535 = vmax.f32 %v1512, 0.0
      %v1536 = vmax.f32 %v1513, 0.0
      %v1537 = vmax.f32 %v1514, 0.0
      %v1538 = vmax.f32 %v1515, 0.0
      %v1539 = vmax.f32 %v1516, 0.0
      %v1540 = vmax.f32 %v1517, 0.0
      %v1541 = vmax.f32 %v1518, 0.0
      %v1542 = vmax.f32 %v1519, 0.0
      %v1543 = vmax.f32 %v1520, 0.0
      %v1544 = vmax.f32 %v1521, 0.0
      %v1545 = vmax.f32 %v1522, 0.0
      %v1546 = vmax.f32 %v1523, 0.0
      %v1547 = vmax.f32 %v1524, 0.0
      %v1548 = vmax.f32 %v1525, 0.0
      %v1549 = vmax.f32 %v1526, 0.0
      %v1550 = vmax.f32 %v1527, 0.0
      %v1574 = vcombine.high %v1528, %v1528
      %v1576 = vunpack.c.l.s4 1983009808
      %v1577 = vunpack.c.0.s8 %v1576
      %v1578 = vlaneseq
      %v1579 = vshrl.u32 %v1578, 7
      %v1580 = vsub.s32 %v1577, %v1579
      %v1581 = vrot.slane %v1528, %v1580
      %v1583 = vunpack.c.l.s4 1983009808
      %v1584 = vunpack.c.0.s8 %v1583
      %v1585 = vlaneseq
      %v1586 = vshrl.u32 %v1585, 7
      %v1587 = vsub.s32 %v1584, %v1586
      %v1588 = vrot.slane %v1574, %v1587
      %v1589 = vcombine.high %v1581, %v1581
      %v1590 = vcombine.high %v1588, %v1588
      %v1591 = vcombine.high %v1529, %v1529
      %v1593 = vunpack.c.l.s4 1983009808
      %v1594 = vunpack.c.0.s8 %v1593
      %v1595 = vlaneseq
      %v1596 = vshrl.u32 %v1595, 7
      %v1597 = vsub.s32 %v1594, %v1596
      %v1598 = vrot.slane %v1529, %v1597
      %v1600 = vunpack.c.l.s4 1983009808
      %v1601 = vunpack.c.0.s8 %v1600
      %v1602 = vlaneseq
      %v1603 = vshrl.u32 %v1602, 7
      %v1604 = vsub.s32 %v1601, %v1603
      %v1605 = vrot.slane %v1591, %v1604
      %v1606 = vcombine.high %v1598, %v1598
      %v1607 = vcombine.high %v1605, %v1605
      %v1608 = vcombine.high %v1530, %v1530
      %v1610 = vunpack.c.l.s4 1983009808
      %v1611 = vunpack.c.0.s8 %v1610
      %v1612 = vlaneseq
      %v1613 = vshrl.u32 %v1612, 7
      %v1614 = vsub.s32 %v1611, %v1613
      %v1615 = vrot.slane %v1530, %v1614
      %v1617 = vunpack.c.l.s4 1983009808
      %v1618 = vunpack.c.0.s8 %v1617
      %v1619 = vlaneseq
      %v1620 = vshrl.u32 %v1619, 7
      %v1621 = vsub.s32 %v1618, %v1620
      %v1622 = vrot.slane %v1608, %v1621
      %v1623 = vcombine.high %v1615, %v1615
      %v1624 = vcombine.high %v1622, %v1622
      %v1625 = vcombine.high %v1531, %v1531
      %v1627 = vunpack.c.l.s4 1983009808
      %v1628 = vunpack.c.0.s8 %v1627
      %v1629 = vlaneseq
      %v1630 = vshrl.u32 %v1629, 7
      %v1631 = vsub.s32 %v1628, %v1630
      %v1632 = vrot.slane %v1531, %v1631
      %v1634 = vunpack.c.l.s4 1983009808
      %v1635 = vunpack.c.0.s8 %v1634
      %v1636 = vlaneseq
      %v1637 = vshrl.u32 %v1636, 7
      %v1638 = vsub.s32 %v1635, %v1637
      %v1639 = vrot.slane %v1625, %v1638
      %v1640 = vcombine.high %v1632, %v1632
      %v1641 = vcombine.high %v1639, %v1639
      %v1642 = vcombine.high %v1532, %v1532
      %v1644 = vunpack.c.l.s4 1983009808
      %v1645 = vunpack.c.0.s8 %v1644
      %v1646 = vlaneseq
      %v1647 = vshrl.u32 %v1646, 7
      %v1648 = vsub.s32 %v1645, %v1647
      %v1649 = vrot.slane %v1532, %v1648
      %v1651 = vunpack.c.l.s4 1983009808
      %v1652 = vunpack.c.0.s8 %v1651
      %v1653 = vlaneseq
      %v1654 = vshrl.u32 %v1653, 7
      %v1655 = vsub.s32 %v1652, %v1654
      %v1656 = vrot.slane %v1642, %v1655
      %v1657 = vcombine.high %v1649, %v1649
      %v1658 = vcombine.high %v1656, %v1656
      %v1659 = vcombine.high %v1533, %v1533
      %v1661 = vunpack.c.l.s4 1983009808
      %v1662 = vunpack.c.0.s8 %v1661
      %v1663 = vlaneseq
      %v1664 = vshrl.u32 %v1663, 7
      %v1665 = vsub.s32 %v1662, %v1664
      %v1666 = vrot.slane %v1533, %v1665
      %v1668 = vunpack.c.l.s4 1983009808
      %v1669 = vunpack.c.0.s8 %v1668
      %v1670 = vlaneseq
      %v1671 = vshrl.u32 %v1670, 7
      %v1672 = vsub.s32 %v1669, %v1671
      %v1673 = vrot.slane %v1659, %v1672
      %v1674 = vcombine.high %v1666, %v1666
      %v1675 = vcombine.high %v1673, %v1673
      %v1676 = vcombine.high %v1534, %v1534
      %v1678 = vunpack.c.l.s4 1983009808
      %v1679 = vunpack.c.0.s8 %v1678
      %v1680 = vlaneseq
      %v1681 = vshrl.u32 %v1680, 7
      %v1682 = vsub.s32 %v1679, %v1681
      %v1683 = vrot.slane %v1534, %v1682
      %v1685 = vunpack.c.l.s4 1983009808
      %v1686 = vunpack.c.0.s8 %v1685
      %v1687 = vlaneseq
      %v1688 = vshrl.u32 %v1687, 7
      %v1689 = vsub.s32 %v1686, %v1688
      %v1690 = vrot.slane %v1676, %v1689
      %v1691 = vcombine.high %v1683, %v1683
      %v1692 = vcombine.high %v1690, %v1690
      %v1693 = vcombine.high %v1535, %v1535
      %v1695 = vunpack.c.l.s4 1983009808
      %v1696 = vunpack.c.0.s8 %v1695
      %v1697 = vlaneseq
      %v1698 = vshrl.u32 %v1697, 7
      %v1699 = vsub.s32 %v1696, %v1698
      %v1700 = vrot.slane %v1535, %v1699
      %v1702 = vunpack.c.l.s4 1983009808
      %v1703 = vunpack.c.0.s8 %v1702
      %v1704 = vlaneseq
      %v1705 = vshrl.u32 %v1704, 7
      %v1706 = vsub.s32 %v1703, %v1705
      %v1707 = vrot.slane %v1693, %v1706
      %v1708 = vcombine.high %v1700, %v1700
      %v1709 = vcombine.high %v1707, %v1707
      %v1710 = vcombine.high %v1536, %v1536
      %v1712 = vunpack.c.l.s4 1983009808
      %v1713 = vunpack.c.0.s8 %v1712
      %v1714 = vlaneseq
      %v1715 = vshrl.u32 %v1714, 7
      %v1716 = vsub.s32 %v1713, %v1715
      %v1717 = vrot.slane %v1536, %v1716
      %v1719 = vunpack.c.l.s4 1983009808
      %v1720 = vunpack.c.0.s8 %v1719
      %v1721 = vlaneseq
      %v1722 = vshrl.u32 %v1721, 7
      %v1723 = vsub.s32 %v1720, %v1722
      %v1724 = vrot.slane %v1710, %v1723
      %v1725 = vcombine.high %v1717, %v1717
      %v1726 = vcombine.high %v1724, %v1724
      %v1727 = vcombine.high %v1537, %v1537
      %v1729 = vunpack.c.l.s4 1983009808
      %v1730 = vunpack.c.0.s8 %v1729
      %v1731 = vlaneseq
      %v1732 = vshrl.u32 %v1731, 7
      %v1733 = vsub.s32 %v1730, %v1732
      %v1734 = vrot.slane %v1537, %v1733
      %v1736 = vunpack.c.l.s4 1983009808
      %v1737 = vunpack.c.0.s8 %v1736
      %v1738 = vlaneseq
      %v1739 = vshrl.u32 %v1738, 7
      %v1740 = vsub.s32 %v1737, %v1739
      %v1741 = vrot.slane %v1727, %v1740
      %v1742 = vcombine.high %v1734, %v1734
      %v1743 = vcombine.high %v1741, %v1741
      %v1744 = vcombine.high %v1538, %v1538
      %v1746 = vunpack.c.l.s4 1983009808
      %v1747 = vunpack.c.0.s8 %v1746
      %v1748 = vlaneseq
      %v1749 = vshrl.u32 %v1748, 7
      %v1750 = vsub.s32 %v1747, %v1749
      %v1751 = vrot.slane %v1538, %v1750
      %v1753 = vunpack.c.l.s4 1983009808
      %v1754 = vunpack.c.0.s8 %v1753
      %v1755 = vlaneseq
      %v1756 = vshrl.u32 %v1755, 7
      %v1757 = vsub.s32 %v1754, %v1756
      %v1758 = vrot.slane %v1744, %v1757
      %v1759 = vcombine.high %v1751, %v1751
      %v1760 = vcombine.high %v1758, %v1758
      %v1761 = vcombine.high %v1539, %v1539
      %v1763 = vunpack.c.l.s4 1983009808
      %v1764 = vunpack.c.0.s8 %v1763
      %v1765 = vlaneseq
      %v1766 = vshrl.u32 %v1765, 7
      %v1767 = vsub.s32 %v1764, %v1766
      %v1768 = vrot.slane %v1539, %v1767
      %v1770 = vunpack.c.l.s4 1983009808
      %v1771 = vunpack.c.0.s8 %v1770
      %v1772 = vlaneseq
      %v1773 = vshrl.u32 %v1772, 7
      %v1774 = vsub.s32 %v1771, %v1773
      %v1775 = vrot.slane %v1761, %v1774
      %v1776 = vcombine.high %v1768, %v1768
      %v1777 = vcombine.high %v1775, %v1775
      %v1778 = vcombine.high %v1540, %v1540
      %v1780 = vunpack.c.l.s4 1983009808
      %v1781 = vunpack.c.0.s8 %v1780
      %v1782 = vlaneseq
      %v1783 = vshrl.u32 %v1782, 7
      %v1784 = vsub.s32 %v1781, %v1783
      %v1785 = vrot.slane %v1540, %v1784
      %v1787 = vunpack.c.l.s4 1983009808
      %v1788 = vunpack.c.0.s8 %v1787
      %v1789 = vlaneseq
      %v1790 = vshrl.u32 %v1789, 7
      %v1791 = vsub.s32 %v1788, %v1790
      %v1792 = vrot.slane %v1778, %v1791
      %v1793 = vcombine.high %v1785, %v1785
      %v1794 = vcombine.high %v1792, %v1792
      %v1795 = vcombine.high %v1541, %v1541
      %v1797 = vunpack.c.l.s4 1983009808
      %v1798 = vunpack.c.0.s8 %v1797
      %v1799 = vlaneseq
      %v1800 = vshrl.u32 %v1799, 7
      %v1801 = vsub.s32 %v1798, %v1800
      %v1802 = vrot.slane %v1541, %v1801
      %v1804 = vunpack.c.l.s4 1983009808
      %v1805 = vunpack.c.0.s8 %v1804
      %v1806 = vlaneseq
      %v1807 = vshrl.u32 %v1806, 7
      %v1808 = vsub.s32 %v1805, %v1807
      %v1809 = vrot.slane %v1795, %v1808
      %v1810 = vcombine.high %v1802, %v1802
      %v1811 = vcombine.high %v1809, %v1809
      %v1812 = vcombine.high %v1542, %v1542
      %v1814 = vunpack.c.l.s4 1983009808
      %v1815 = vunpack.c.0.s8 %v1814
      %v1816 = vlaneseq
      %v1817 = vshrl.u32 %v1816, 7
      %v1818 = vsub.s32 %v1815, %v1817
      %v1819 = vrot.slane %v1542, %v1818
      %v1821 = vunpack.c.l.s4 1983009808
      %v1822 = vunpack.c.0.s8 %v1821
      %v1823 = vlaneseq
      %v1824 = vshrl.u32 %v1823, 7
      %v1825 = vsub.s32 %v1822, %v1824
      %v1826 = vrot.slane %v1812, %v1825
      %v1827 = vcombine.high %v1819, %v1819
      %v1828 = vcombine.high %v1826, %v1826
      %v1829 = vcombine.high %v1543, %v1543
      %v1831 = vunpack.c.l.s4 1983009808
      %v1832 = vunpack.c.0.s8 %v1831
      %v1833 = vlaneseq
      %v1834 = vshrl.u32 %v1833, 7
      %v1835 = vsub.s32 %v1832, %v1834
      %v1836 = vrot.slane %v1543, %v1835
      %v1838 = vunpack.c.l.s4 1983009808
      %v1839 = vunpack.c.0.s8 %v1838
      %v1840 = vlaneseq
      %v1841 = vshrl.u32 %v1840, 7
      %v1842 = vsub.s32 %v1839, %v1841
      %v1843 = vrot.slane %v1829, %v1842
      %v1844 = vcombine.high %v1836, %v1836
      %v1845 = vcombine.high %v1843, %v1843
      %v1846 = vcombine.high %v1544, %v1544
      %v1848 = vunpack.c.l.s4 1983009808
      %v1849 = vunpack.c.0.s8 %v1848
      %v1850 = vlaneseq
      %v1851 = vshrl.u32 %v1850, 7
      %v1852 = vsub.s32 %v1849, %v1851
      %v1853 = vrot.slane %v1544, %v1852
      %v1855 = vunpack.c.l.s4 1983009808
      %v1856 = vunpack.c.0.s8 %v1855
      %v1857 = vlaneseq
      %v1858 = vshrl.u32 %v1857, 7
      %v1859 = vsub.s32 %v1856, %v1858
      %v1860 = vrot.slane %v1846, %v1859
      %v1861 = vcombine.high %v1853, %v1853
      %v1862 = vcombine.high %v1860, %v1860
      %v1863 = vcombine.high %v1545, %v1545
      %v1865 = vunpack.c.l.s4 1983009808
      %v1866 = vunpack.c.0.s8 %v1865
      %v1867 = vlaneseq
      %v1868 = vshrl.u32 %v1867, 7
      %v1869 = vsub.s32 %v1866, %v1868
      %v1870 = vrot.slane %v1545, %v1869
      %v1872 = vunpack.c.l.s4 1983009808
      %v1873 = vunpack.c.0.s8 %v1872
      %v1874 = vlaneseq
      %v1875 = vshrl.u32 %v1874, 7
      %v1876 = vsub.s32 %v1873, %v1875
      %v1877 = vrot.slane %v1863, %v1876
      %v1878 = vcombine.high %v1870, %v1870
      %v1879 = vcombine.high %v1877, %v1877
      %v1880 = vcombine.high %v1546, %v1546
      %v1882 = vunpack.c.l.s4 1983009808
      %v1883 = vunpack.c.0.s8 %v1882
      %v1884 = vlaneseq
      %v1885 = vshrl.u32 %v1884, 7
      %v1886 = vsub.s32 %v1883, %v1885
      %v1887 = vrot.slane %v1546, %v1886
      %v1889 = vunpack.c.l.s4 1983009808
      %v1890 = vunpack.c.0.s8 %v1889
      %v1891 = vlaneseq
      %v1892 = vshrl.u32 %v1891, 7
      %v1893 = vsub.s32 %v1890, %v1892
      %v1894 = vrot.slane %v1880, %v1893
      %v1895 = vcombine.high %v1887, %v1887
      %v1896 = vcombine.high %v1894, %v1894
      %v1897 = vcombine.high %v1547, %v1547
      %v1899 = vunpack.c.l.s4 1983009808
      %v1900 = vunpack.c.0.s8 %v1899
      %v1901 = vlaneseq
      %v1902 = vshrl.u32 %v1901, 7
      %v1903 = vsub.s32 %v1900, %v1902
      %v1904 = vrot.slane %v1547, %v1903
      %v1906 = vunpack.c.l.s4 1983009808
      %v1907 = vunpack.c.0.s8 %v1906
      %v1908 = vlaneseq
      %v1909 = vshrl.u32 %v1908, 7
      %v1910 = vsub.s32 %v1907, %v1909
      %v1911 = vrot.slane %v1897, %v1910
      %v1912 = vcombine.high %v1904, %v1904
      %v1913 = vcombine.high %v1911, %v1911
      %v1914 = vcombine.high %v1548, %v1548
      %v1916 = vunpack.c.l.s4 1983009808
      %v1917 = vunpack.c.0.s8 %v1916
      %v1918 = vlaneseq
      %v1919 = vshrl.u32 %v1918, 7
      %v1920 = vsub.s32 %v1917, %v1919
      %v1921 = vrot.slane %v1548, %v1920
      %v1923 = vunpack.c.l.s4 1983009808
      %v1924 = vunpack.c.0.s8 %v1923
      %v1925 = vlaneseq
      %v1926 = vshrl.u32 %v1925, 7
      %v1927 = vsub.s32 %v1924, %v1926
      %v1928 = vrot.slane %v1914, %v1927
      %v1929 = vcombine.high %v1921, %v1921
      %v1930 = vcombine.high %v1928, %v1928
      %v1931 = vcombine.high %v1549, %v1549
      %v1933 = vunpack.c.l.s4 1983009808
      %v1934 = vunpack.c.0.s8 %v1933
      %v1935 = vlaneseq
      %v1936 = vshrl.u32 %v1935, 7
      %v1937 = vsub.s32 %v1934, %v1936
      %v1938 = vrot.slane %v1549, %v1937
      %v1940 = vunpack.c.l.s4 1983009808
      %v1941 = vunpack.c.0.s8 %v1940
      %v1942 = vlaneseq
      %v1943 = vshrl.u32 %v1942, 7
      %v1944 = vsub.s32 %v1941, %v1943
      %v1945 = vrot.slane %v1931, %v1944
      %v1946 = vcombine.high %v1938, %v1938
      %v1947 = vcombine.high %v1945, %v1945
      %v1949 = vunpack.c.l.s4 1983009808
      %v1950 = vunpack.c.0.s8 %v1949
      %v1951 = vlaneseq
      %v1952 = vshrl.u32 %v1951, 7
      %v1953 = vsub.s32 %v1950, %v1952
      %v1954 = vrot.slane %v1550, %v1953
      %v1955 = vcombine.high %v1954, %v1954
      %p1956 = scmp.eq.s32.totalorder %s26, 0
      %s1957 = scalar_select %p1956, 1, 0
      %p1958 = scmp.eq.s32.totalorder %s26, 1
      %s1959 = scalar_select %p1958, 8, 9
      %v1960 = vlaneseq
      %v1961 = vshrl.u32 %v1960, 7
      %v1962 = vadd.s32 %v1961, 8
      %v1963 = vadd.s32 %v1961, 16
      %vm1964 = vcmp.ge.s32.totalorder %v1961, 1
      %vm1965 = vcmp.ge.s32.totalorder %v1962, 1
      %vm1966 = vcmp.ge.s32.totalorder %v1963, 1
      %vm1967 = vcmp.le.s32.totalorder %v1961, 16
      %vm1968 = vcmp.le.s32.totalorder %v1962, 16
      %vm1969 = vcmp.le.s32.totalorder %v1963, 16
      %vm1970 = vmand %vm1964, %vm1967
      %vm1971 = vmand %vm1965, %vm1968
      %vm1972 = vmand %vm1966, %vm1969
      %v1973 = vstv %s1957
      %vm1974 = vcmp.le.s32.totalorder %v1973, 0
      %vm1975 = vcmp.le.s32.totalorder %v1973, 1
      %vm1976 = vcmp.le.s32.totalorder %v1973, 2
      %vm1977 = vcmp.le.s32.totalorder %v1973, 3
      %vm1978 = vcmp.le.s32.totalorder %v1973, 4
      %vm1979 = vcmp.le.s32.totalorder %v1973, 5
      %vm1980 = vcmp.le.s32.totalorder %v1973, 6
      %vm1981 = vcmp.le.s32.totalorder %v1973, 7
      %vm1982 = vcmp.le.s32.totalorder %v1973, 8
      %vm1983 = vcmp.le.s32.totalorder %v1973, 9
      %vm1984 = vmand %vm1970, %vm1974
      %vm1985 = vmand %vm1971, %vm1974
      %vm1986 = vmand %vm1972, %vm1974
      %vm1987 = vmand %vm1970, %vm1975
      %vm1988 = vmand %vm1971, %vm1975
      %vm1989 = vmand %vm1972, %vm1975
      %vm1990 = vmand %vm1970, %vm1976
      %vm1991 = vmand %vm1971, %vm1976
      %vm1992 = vmand %vm1972, %vm1976
      %vm1993 = vmand %vm1970, %vm1977
      %vm1994 = vmand %vm1971, %vm1977
      %vm1995 = vmand %vm1972, %vm1977
      %vm1996 = vmand %vm1970, %vm1978
      %vm1997 = vmand %vm1971, %vm1978
      %vm1998 = vmand %vm1972, %vm1978
      %vm1999 = vmand %vm1970, %vm1979
      %vm2000 = vmand %vm1971, %vm1979
      %vm2001 = vmand %vm1972, %vm1979
      %vm2002 = vmand %vm1970, %vm1980
      %vm2003 = vmand %vm1971, %vm1980
      %vm2004 = vmand %vm1972, %vm1980
      %vm2005 = vmand %vm1970, %vm1981
      %vm2006 = vmand %vm1971, %vm1981
      %vm2007 = vmand %vm1972, %vm1981
      %vm2008 = vmand %vm1970, %vm1982
      %vm2009 = vmand %vm1971, %vm1982
      %vm2010 = vmand %vm1972, %vm1982
      %vm2011 = vmand %vm1970, %vm1983
      %vm2012 = vmand %vm1971, %vm1983
      %vm2013 = vmand %vm1972, %vm1983
      %v2014 = vstv %s1959
      %vm2015 = vcmp.ge.s32.totalorder %v2014, 0
      %vm2016 = vcmp.ge.s32.totalorder %v2014, 1
      %vm2017 = vcmp.ge.s32.totalorder %v2014, 2
      %vm2018 = vcmp.ge.s32.totalorder %v2014, 3
      %vm2019 = vcmp.ge.s32.totalorder %v2014, 4
      %vm2020 = vcmp.ge.s32.totalorder %v2014, 5
      %vm2021 = vcmp.ge.s32.totalorder %v2014, 6
      %vm2022 = vcmp.ge.s32.totalorder %v2014, 7
      %vm2023 = vcmp.ge.s32.totalorder %v2014, 8
      %vm2024 = vcmp.ge.s32.totalorder %v2014, 9
      %vm2025 = vmand %vm1984, %vm2015
      %vm2026 = vmand %vm1985, %vm2015
      %vm2027 = vmand %vm1986, %vm2015
      %vm2028 = vmand %vm1987, %vm2016
      %vm2029 = vmand %vm1988, %vm2016
      %vm2030 = vmand %vm1989, %vm2016
      %vm2031 = vmand %vm1990, %vm2017
      %vm2032 = vmand %vm1991, %vm2017
      %vm2033 = vmand %vm1992, %vm2017
      %vm2034 = vmand %vm1993, %vm2018
      %vm2035 = vmand %vm1994, %vm2018
      %vm2036 = vmand %vm1995, %vm2018
      %vm2037 = vmand %vm1996, %vm2019
      %vm2038 = vmand %vm1997, %vm2019
      %vm2039 = vmand %vm1998, %vm2019
      %vm2040 = vmand %vm1999, %vm2020
      %vm2041 = vmand %vm2000, %vm2020
      %vm2042 = vmand %vm2001, %vm2020
      %vm2043 = vmand %vm2002, %vm2021
      %vm2044 = vmand %vm2003, %vm2021
      %vm2045 = vmand %vm2004, %vm2021
      %vm2046 = vmand %vm2005, %vm2022
      %vm2047 = vmand %vm2006, %vm2022
      %vm2048 = vmand %vm2007, %vm2022
      %vm2049 = vmand %vm2008, %vm2023
      %vm2050 = vmand %vm2009, %vm2023
      %vm2051 = vmand %vm2010, %vm2023
      %vm2052 = vmand %vm2011, %vm2024
      %vm2053 = vmand %vm2012, %vm2024
      %vm2054 = vmand %vm2013, %vm2024
      %v2055 = vcombine.low %v1581, %v1589
      %v2056 = vcombine.low %v1588, %v1590
      %v2058 = vunpack.c.l.s4 1983009808
      %v2059 = vunpack.c.0.s8 %v2058
      %v2060 = vlaneseq
      %v2061 = vshrl.u32 %v2060, 7
      %v2062 = vsub.s32 %v2059, %v2061
      %v2063 = vrot.slane %v2055, %v2062
      %v2065 = vunpack.c.l.s4 1983009808
      %v2066 = vunpack.c.0.s8 %v2065
      %v2067 = vlaneseq
      %v2068 = vshrl.u32 %v2067, 7
      %v2069 = vsub.s32 %v2066, %v2068
      %v2070 = vrot.slane %v2056, %v2069
      %v2071 = vcombine.low %v2063, %v2070
      %v2072 = vcombine.low %v1598, %v1606
      %v2073 = vcombine.low %v1605, %v1607
      %v2075 = vunpack.c.l.s4 1983009808
      %v2076 = vunpack.c.0.s8 %v2075
      %v2077 = vlaneseq
      %v2078 = vshrl.u32 %v2077, 7
      %v2079 = vsub.s32 %v2076, %v2078
      %v2080 = vrot.slane %v2072, %v2079
      %v2082 = vunpack.c.l.s4 1983009808
      %v2083 = vunpack.c.0.s8 %v2082
      %v2084 = vlaneseq
      %v2085 = vshrl.u32 %v2084, 7
      %v2086 = vsub.s32 %v2083, %v2085
      %v2087 = vrot.slane %v2073, %v2086
      %v2088 = vcombine.low %v2080, %v2087
      %v2090 = vunpack.c.l.s4 1983009808
      %v2091 = vunpack.c.0.s8 %v2090
      %v2092 = vlaneseq
      %v2093 = vshrl.u32 %v2092, 7
      %v2094 = vsub.s32 %v2091, %v2093
      %v2095 = vrot.slane %v1615, %v2094
      %v2096 = vcombine.low %v1623, %v1622
      %v2097 = vcombine.low %v1624, %v1632
      %v2099 = vunpack.c.l.s4 1983009808
      %v2100 = vunpack.c.0.s8 %v2099
      %v2101 = vlaneseq
      %v2102 = vshrl.u32 %v2101, 7
      %v2103 = vsub.s32 %v2100, %v2102
      %v2104 = vrot.slane %v2096, %v2103
      %v2106 = vunpack.c.l.s4 1983009808
      %v2107 = vunpack.c.0.s8 %v2106
      %v2108 = vlaneseq
      %v2109 = vshrl.u32 %v2108, 7
      %v2110 = vsub.s32 %v2107, %v2109
      %v2111 = vrot.slane %v2097, %v2110
      %v2112 = vcombine.low %v2104, %v2111
      %v2113 = vcombine.low %v1640, %v1639
      %v2114 = vcombine.low %v1641, %v1649
      %v2116 = vunpack.c.l.s4 1983009808
      %v2117 = vunpack.c.0.s8 %v2116
      %v2118 = vlaneseq
      %v2119 = vshrl.u32 %v2118, 7
      %v2120 = vsub.s32 %v2117, %v2119
      %v2121 = vrot.slane %v2113, %v2120
      %v2123 = vunpack.c.l.s4 1983009808
      %v2124 = vunpack.c.0.s8 %v2123
      %v2125 = vlaneseq
      %v2126 = vshrl.u32 %v2125, 7
      %v2127 = vsub.s32 %v2124, %v2126
      %v2128 = vrot.slane %v2114, %v2127
      %v2129 = vcombine.low %v2121, %v2128
      %v2131 = vunpack.c.l.s4 1983009808
      %v2132 = vunpack.c.0.s8 %v2131
      %v2133 = vlaneseq
      %v2134 = vshrl.u32 %v2133, 7
      %v2135 = vsub.s32 %v2132, %v2134
      %v2136 = vrot.slane %v1657, %v2135
      %v2137 = vcombine.low %v1656, %v1658
      %v2138 = vcombine.low %v1666, %v1674
      %v2140 = vunpack.c.l.s4 1983009808
      %v2141 = vunpack.c.0.s8 %v2140
      %v2142 = vlaneseq
      %v2143 = vshrl.u32 %v2142, 7
      %v2144 = vsub.s32 %v2141, %v2143
      %v2145 = vrot.slane %v2137, %v2144
      %v2147 = vunpack.c.l.s4 1983009808
      %v2148 = vunpack.c.0.s8 %v2147
      %v2149 = vlaneseq
      %v2150 = vshrl.u32 %v2149, 7
      %v2151 = vsub.s32 %v2148, %v2150
      %v2152 = vrot.slane %v2138, %v2151
      %v2153 = vcombine.low %v2145, %v2152
      %v2154 = vcombine.low %v1673, %v1675
      %v2155 = vcombine.low %v1683, %v1691
      %v2157 = vunpack.c.l.s4 1983009808
      %v2158 = vunpack.c.0.s8 %v2157
      %v2159 = vlaneseq
      %v2160 = vshrl.u32 %v2159, 7
      %v2161 = vsub.s32 %v2158, %v2160
      %v2162 = vrot.slane %v2154, %v2161
      %v2164 = vunpack.c.l.s4 1983009808
      %v2165 = vunpack.c.0.s8 %v2164
      %v2166 = vlaneseq
      %v2167 = vshrl.u32 %v2166, 7
      %v2168 = vsub.s32 %v2165, %v2167
      %v2169 = vrot.slane %v2155, %v2168
      %v2170 = vcombine.low %v2162, %v2169
      %v2172 = vunpack.c.l.s4 1983009808
      %v2173 = vunpack.c.0.s8 %v2172
      %v2174 = vlaneseq
      %v2175 = vshrl.u32 %v2174, 7
      %v2176 = vsub.s32 %v2173, %v2175
      %v2177 = vrot.slane %v1690, %v2176
      %v2178 = vcombine.low %v1692, %v1700
      %v2179 = vcombine.low %v1708, %v1707
      %v2181 = vunpack.c.l.s4 1983009808
      %v2182 = vunpack.c.0.s8 %v2181
      %v2183 = vlaneseq
      %v2184 = vshrl.u32 %v2183, 7
      %v2185 = vsub.s32 %v2182, %v2184
      %v2186 = vrot.slane %v2178, %v2185
      %v2188 = vunpack.c.l.s4 1983009808
      %v2189 = vunpack.c.0.s8 %v2188
      %v2190 = vlaneseq
      %v2191 = vshrl.u32 %v2190, 7
      %v2192 = vsub.s32 %v2189, %v2191
      %v2193 = vrot.slane %v2179, %v2192
      %v2194 = vcombine.low %v2186, %v2193
      %v2195 = vcombine.low %v1709, %v1717
      %v2196 = vcombine.low %v1725, %v1724
      %v2198 = vunpack.c.l.s4 1983009808
      %v2199 = vunpack.c.0.s8 %v2198
      %v2200 = vlaneseq
      %v2201 = vshrl.u32 %v2200, 7
      %v2202 = vsub.s32 %v2199, %v2201
      %v2203 = vrot.slane %v2195, %v2202
      %v2205 = vunpack.c.l.s4 1983009808
      %v2206 = vunpack.c.0.s8 %v2205
      %v2207 = vlaneseq
      %v2208 = vshrl.u32 %v2207, 7
      %v2209 = vsub.s32 %v2206, %v2208
      %v2210 = vrot.slane %v2196, %v2209
      %v2211 = vcombine.low %v2203, %v2210
      %v2213 = vunpack.c.l.s4 1983009808
      %v2214 = vunpack.c.0.s8 %v2213
      %v2215 = vlaneseq
      %v2216 = vshrl.u32 %v2215, 7
      %v2217 = vsub.s32 %v2214, %v2216
      %v2218 = vrot.slane %v1726, %v2217
      %v2219 = vcombine.low %v1734, %v1742
      %v2220 = vcombine.low %v1741, %v1743
      %v2222 = vunpack.c.l.s4 1983009808
      %v2223 = vunpack.c.0.s8 %v2222
      %v2224 = vlaneseq
      %v2225 = vshrl.u32 %v2224, 7
      %v2226 = vsub.s32 %v2223, %v2225
      %v2227 = vrot.slane %v2219, %v2226
      %v2229 = vunpack.c.l.s4 1983009808
      %v2230 = vunpack.c.0.s8 %v2229
      %v2231 = vlaneseq
      %v2232 = vshrl.u32 %v2231, 7
      %v2233 = vsub.s32 %v2230, %v2232
      %v2234 = vrot.slane %v2220, %v2233
      %v2235 = vcombine.low %v2227, %v2234
      %v2236 = vcombine.low %v1751, %v1759
      %v2237 = vcombine.low %v1758, %v1760
      %v2239 = vunpack.c.l.s4 1983009808
      %v2240 = vunpack.c.0.s8 %v2239
      %v2241 = vlaneseq
      %v2242 = vshrl.u32 %v2241, 7
      %v2243 = vsub.s32 %v2240, %v2242
      %v2244 = vrot.slane %v2236, %v2243
      %v2246 = vunpack.c.l.s4 1983009808
      %v2247 = vunpack.c.0.s8 %v2246
      %v2248 = vlaneseq
      %v2249 = vshrl.u32 %v2248, 7
      %v2250 = vsub.s32 %v2247, %v2249
      %v2251 = vrot.slane %v2237, %v2250
      %v2252 = vcombine.low %v2244, %v2251
      %v2254 = vunpack.c.l.s4 1983009808
      %v2255 = vunpack.c.0.s8 %v2254
      %v2256 = vlaneseq
      %v2257 = vshrl.u32 %v2256, 7
      %v2258 = vsub.s32 %v2255, %v2257
      %v2259 = vrot.slane %v1768, %v2258
      %v2260 = vcombine.low %v1776, %v1775
      %v2261 = vcombine.low %v1777, %v1785
      %v2263 = vunpack.c.l.s4 1983009808
      %v2264 = vunpack.c.0.s8 %v2263
      %v2265 = vlaneseq
      %v2266 = vshrl.u32 %v2265, 7
      %v2267 = vsub.s32 %v2264, %v2266
      %v2268 = vrot.slane %v2260, %v2267
      %v2270 = vunpack.c.l.s4 1983009808
      %v2271 = vunpack.c.0.s8 %v2270
      %v2272 = vlaneseq
      %v2273 = vshrl.u32 %v2272, 7
      %v2274 = vsub.s32 %v2271, %v2273
      %v2275 = vrot.slane %v2261, %v2274
      %v2276 = vcombine.low %v2268, %v2275
      %v2277 = vcombine.low %v1793, %v1792
      %v2278 = vcombine.low %v1794, %v1802
      %v2280 = vunpack.c.l.s4 1983009808
      %v2281 = vunpack.c.0.s8 %v2280
      %v2282 = vlaneseq
      %v2283 = vshrl.u32 %v2282, 7
      %v2284 = vsub.s32 %v2281, %v2283
      %v2285 = vrot.slane %v2277, %v2284
      %v2287 = vunpack.c.l.s4 1983009808
      %v2288 = vunpack.c.0.s8 %v2287
      %v2289 = vlaneseq
      %v2290 = vshrl.u32 %v2289, 7
      %v2291 = vsub.s32 %v2288, %v2290
      %v2292 = vrot.slane %v2278, %v2291
      %v2293 = vcombine.low %v2285, %v2292
      %v2295 = vunpack.c.l.s4 1983009808
      %v2296 = vunpack.c.0.s8 %v2295
      %v2297 = vlaneseq
      %v2298 = vshrl.u32 %v2297, 7
      %v2299 = vsub.s32 %v2296, %v2298
      %v2300 = vrot.slane %v1810, %v2299
      %v2301 = vcombine.low %v1809, %v1811
      %v2302 = vcombine.low %v1819, %v1827
      %v2304 = vunpack.c.l.s4 1983009808
      %v2305 = vunpack.c.0.s8 %v2304
      %v2306 = vlaneseq
      %v2307 = vshrl.u32 %v2306, 7
      %v2308 = vsub.s32 %v2305, %v2307
      %v2309 = vrot.slane %v2301, %v2308
      %v2311 = vunpack.c.l.s4 1983009808
      %v2312 = vunpack.c.0.s8 %v2311
      %v2313 = vlaneseq
      %v2314 = vshrl.u32 %v2313, 7
      %v2315 = vsub.s32 %v2312, %v2314
      %v2316 = vrot.slane %v2302, %v2315
      %v2317 = vcombine.low %v2309, %v2316
      %v2318 = vcombine.low %v1826, %v1828
      %v2319 = vcombine.low %v1836, %v1844
      %v2321 = vunpack.c.l.s4 1983009808
      %v2322 = vunpack.c.0.s8 %v2321
      %v2323 = vlaneseq
      %v2324 = vshrl.u32 %v2323, 7
      %v2325 = vsub.s32 %v2322, %v2324
      %v2326 = vrot.slane %v2318, %v2325
      %v2328 = vunpack.c.l.s4 1983009808
      %v2329 = vunpack.c.0.s8 %v2328
      %v2330 = vlaneseq
      %v2331 = vshrl.u32 %v2330, 7
      %v2332 = vsub.s32 %v2329, %v2331
      %v2333 = vrot.slane %v2319, %v2332
      %v2334 = vcombine.low %v2326, %v2333
      %v2336 = vunpack.c.l.s4 1983009808
      %v2337 = vunpack.c.0.s8 %v2336
      %v2338 = vlaneseq
      %v2339 = vshrl.u32 %v2338, 7
      %v2340 = vsub.s32 %v2337, %v2339
      %v2341 = vrot.slane %v1843, %v2340
      %v2342 = vcombine.low %v1845, %v1853
      %v2343 = vcombine.low %v1861, %v1860
      %v2345 = vunpack.c.l.s4 1983009808
      %v2346 = vunpack.c.0.s8 %v2345
      %v2347 = vlaneseq
      %v2348 = vshrl.u32 %v2347, 7
      %v2349 = vsub.s32 %v2346, %v2348
      %v2350 = vrot.slane %v2342, %v2349
      %v2352 = vunpack.c.l.s4 1983009808
      %v2353 = vunpack.c.0.s8 %v2352
      %v2354 = vlaneseq
      %v2355 = vshrl.u32 %v2354, 7
      %v2356 = vsub.s32 %v2353, %v2355
      %v2357 = vrot.slane %v2343, %v2356
      %v2358 = vcombine.low %v2350, %v2357
      %v2359 = vcombine.low %v1862, %v1870
      %v2360 = vcombine.low %v1878, %v1877
      %v2362 = vunpack.c.l.s4 1983009808
      %v2363 = vunpack.c.0.s8 %v2362
      %v2364 = vlaneseq
      %v2365 = vshrl.u32 %v2364, 7
      %v2366 = vsub.s32 %v2363, %v2365
      %v2367 = vrot.slane %v2359, %v2366
      %v2369 = vunpack.c.l.s4 1983009808
      %v2370 = vunpack.c.0.s8 %v2369
      %v2371 = vlaneseq
      %v2372 = vshrl.u32 %v2371, 7
      %v2373 = vsub.s32 %v2370, %v2372
      %v2374 = vrot.slane %v2360, %v2373
      %v2375 = vcombine.low %v2367, %v2374
      %v2377 = vunpack.c.l.s4 1983009808
      %v2378 = vunpack.c.0.s8 %v2377
      %v2379 = vlaneseq
      %v2380 = vshrl.u32 %v2379, 7
      %v2381 = vsub.s32 %v2378, %v2380
      %v2382 = vrot.slane %v1879, %v2381
      %v2383 = vcombine.low %v1887, %v1895
      %v2384 = vcombine.low %v1894, %v1896
      %v2386 = vunpack.c.l.s4 1983009808
      %v2387 = vunpack.c.0.s8 %v2386
      %v2388 = vlaneseq
      %v2389 = vshrl.u32 %v2388, 7
      %v2390 = vsub.s32 %v2387, %v2389
      %v2391 = vrot.slane %v2383, %v2390
      %v2393 = vunpack.c.l.s4 1983009808
      %v2394 = vunpack.c.0.s8 %v2393
      %v2395 = vlaneseq
      %v2396 = vshrl.u32 %v2395, 7
      %v2397 = vsub.s32 %v2394, %v2396
      %v2398 = vrot.slane %v2384, %v2397
      %v2399 = vcombine.low %v2391, %v2398
      %v2400 = vcombine.low %v1904, %v1912
      %v2401 = vcombine.low %v1911, %v1913
      %v2403 = vunpack.c.l.s4 1983009808
      %v2404 = vunpack.c.0.s8 %v2403
      %v2405 = vlaneseq
      %v2406 = vshrl.u32 %v2405, 7
      %v2407 = vsub.s32 %v2404, %v2406
      %v2408 = vrot.slane %v2400, %v2407
      %v2410 = vunpack.c.l.s4 1983009808
      %v2411 = vunpack.c.0.s8 %v2410
      %v2412 = vlaneseq
      %v2413 = vshrl.u32 %v2412, 7
      %v2414 = vsub.s32 %v2411, %v2413
      %v2415 = vrot.slane %v2401, %v2414
      %v2416 = vcombine.low %v2408, %v2415
      %v2418 = vunpack.c.l.s4 1983009808
      %v2419 = vunpack.c.0.s8 %v2418
      %v2420 = vlaneseq
      %v2421 = vshrl.u32 %v2420, 7
      %v2422 = vsub.s32 %v2419, %v2421
      %v2423 = vrot.slane %v1921, %v2422
      %v2424 = vcombine.low %v1929, %v1928
      %v2425 = vcombine.low %v1930, %v1938
      %v2427 = vunpack.c.l.s4 1983009808
      %v2428 = vunpack.c.0.s8 %v2427
      %v2429 = vlaneseq
      %v2430 = vshrl.u32 %v2429, 7
      %v2431 = vsub.s32 %v2428, %v2430
      %v2432 = vrot.slane %v2424, %v2431
      %v2434 = vunpack.c.l.s4 1983009808
      %v2435 = vunpack.c.0.s8 %v2434
      %v2436 = vlaneseq
      %v2437 = vshrl.u32 %v2436, 7
      %v2438 = vsub.s32 %v2435, %v2437
      %v2439 = vrot.slane %v2425, %v2438
      %v2440 = vcombine.low %v2432, %v2439
      %v2441 = vcombine.low %v1946, %v1945
      %v2442 = vcombine.low %v1947, %v1954
      %v2444 = vunpack.c.l.s4 1983009808
      %v2445 = vunpack.c.0.s8 %v2444
      %v2446 = vlaneseq
      %v2447 = vshrl.u32 %v2446, 7
      %v2448 = vsub.s32 %v2445, %v2447
      %v2449 = vrot.slane %v2441, %v2448
      %v2451 = vunpack.c.l.s4 1983009808
      %v2452 = vunpack.c.0.s8 %v2451
      %v2453 = vlaneseq
      %v2454 = vshrl.u32 %v2453, 7
      %v2455 = vsub.s32 %v2452, %v2454
      %v2456 = vrot.slane %v2442, %v2455
      %v2457 = vcombine.low %v2449, %v2456
      %v2459 = vunpack.c.l.s4 1983009808
      %v2460 = vunpack.c.0.s8 %v2459
      %v2461 = vlaneseq
      %v2462 = vshrl.u32 %v2461, 7
      %v2463 = vsub.s32 %v2460, %v2462
      %v2464 = vrot.slane %v1955, %v2463
      %v2495 = vsel %vm2025, %v2071, 0.0
      %v2496 = vsel %vm2026, %v2088, 0.0
      %v2497 = vsel %vm2027, %v2095, 0.0
      %v2498 = vsel %vm2028, %v2112, 0.0
      %v2499 = vsel %vm2029, %v2129, 0.0
      %v2500 = vsel %vm2030, %v2136, 0.0
      %v2501 = vsel %vm2031, %v2153, 0.0
      %v2502 = vsel %vm2032, %v2170, 0.0
      %v2503 = vsel %vm2033, %v2177, 0.0
      %v2504 = vsel %vm2034, %v2194, 0.0
      %v2505 = vsel %vm2035, %v2211, 0.0
      %v2506 = vsel %vm2036, %v2218, 0.0
      %v2507 = vsel %vm2037, %v2235, 0.0
      %v2508 = vsel %vm2038, %v2252, 0.0
      %v2509 = vsel %vm2039, %v2259, 0.0
      %v2510 = vsel %vm2040, %v2276, 0.0
      %v2511 = vsel %vm2041, %v2293, 0.0
      %v2512 = vsel %vm2042, %v2300, 0.0
      %v2513 = vsel %vm2043, %v2317, 0.0
      %v2514 = vsel %vm2044, %v2334, 0.0
      %v2515 = vsel %vm2045, %v2341, 0.0
      %v2516 = vsel %vm2046, %v2358, 0.0
      %v2517 = vsel %vm2047, %v2375, 0.0
      %v2518 = vsel %vm2048, %v2382, 0.0
      %v2519 = vsel %vm2049, %v2399, 0.0
      %v2520 = vsel %vm2050, %v2416, 0.0
      %v2521 = vsel %vm2051, %v2423, 0.0
      %v2522 = vsel %vm2052, %v2440, 0.0
      %v2523 = vsel %vm2053, %v2457, 0.0
      %v2524 = vsel %vm2054, %v2464, 0.0
      %v2525 = vpack.c.bf16 %v2496, %v2495
      %v2526 = vpack.c.bf16 %v2497, %v2497
      %v2527 = vpack.c.bf16 %v2499, %v2498
      %v2528 = vpack.c.bf16 %v2500, %v2500
      %v2529 = vpack.c.bf16 %v2502, %v2501
      %v2530 = vpack.c.bf16 %v2503, %v2503
      %v2531 = vpack.c.bf16 %v2505, %v2504
      %v2532 = vpack.c.bf16 %v2506, %v2506
      %v2533 = vpack.c.bf16 %v2508, %v2507
      %v2534 = vpack.c.bf16 %v2509, %v2509
      %v2535 = vpack.c.bf16 %v2511, %v2510
      %v2536 = vpack.c.bf16 %v2512, %v2512
      %v2537 = vpack.c.bf16 %v2514, %v2513
      %v2538 = vpack.c.bf16 %v2515, %v2515
      %v2539 = vpack.c.bf16 %v2517, %v2516
      %v2540 = vpack.c.bf16 %v2518, %v2518
      %v2541 = vpack.c.bf16 %v2520, %v2519
      %v2542 = vpack.c.bf16 %v2521, %v2521
      %v2543 = vpack.c.bf16 %v2523, %v2522
      %v2544 = vpack.c.bf16 %v2524, %v2524
      %v2545 = vld [vmem:[%s4] sm:$0xf]
      %v2546 = vld [vmem:[%s4 + $0x4] sm:$0xf]
      %v2547 = vld [vmem:[%s4 + $0x8] sm:$0xf]
      %v2548 = vld [vmem:[%s4 + $0xc] sm:$0xf]
      %v2549 = vld [vmem:[%s4 + $0x10] sm:$0xf]
      %v2550 = vld [vmem:[%s4 + $0x14] sm:$0xf]
      %v2551 = vld [vmem:[%s4 + $0x18] sm:$0xf]
      %v2552 = vld [vmem:[%s4 + $0x1c] sm:$0xf]
      %v2553 = vld [vmem:[%s4 + $0x20] sm:$0xf]
      %v2554 = vld [vmem:[%s4 + $0x24] sm:$0xf]
      %v2555 = vld [vmem:[%s4 + $0x28] sm:$0xf]
      %v2556 = vld [vmem:[%s4 + $0x2c] sm:$0xf]
      %v2557 = vld [vmem:[%s4 + $0x30] sm:$0xf]
      %v2558 = vld [vmem:[%s4 + $0x34] sm:$0xf]
      %v2559 = vld [vmem:[%s4 + $0x38] sm:$0xf]
      %v2560 = vld [vmem:[%s4 + $0x3c] sm:$0xf]
      %vm2561 = vsmask.f32 7424
      %v2563 = vshrl.u32 %v2525, 16
      %v2565 = vshll.u32 %v2525, 16
      %v2567 = vrot.slane %v2565, 1
      %v2568 = vor.u32 %v2563, %v2567
      %v2570 = vshll.u32 %v2526, 16
      %v2572 = vrot.slane %v2570, 1
      %v2573 = vsel %vm2561, %v2568, %v2572
      %v2575 = vshrl.u32 %v2527, 16
      %v2577 = vshll.u32 %v2527, 16
      %v2579 = vrot.slane %v2577, 1
      %v2580 = vor.u32 %v2575, %v2579
      %v2582 = vshll.u32 %v2528, 16
      %v2584 = vrot.slane %v2582, 1
      %v2585 = vsel %vm2561, %v2580, %v2584
      %v2587 = vshrl.u32 %v2529, 16
      %v2589 = vshll.u32 %v2529, 16
      %v2591 = vrot.slane %v2589, 1
      %v2592 = vor.u32 %v2587, %v2591
      %v2594 = vshll.u32 %v2530, 16
      %v2596 = vrot.slane %v2594, 1
      %v2597 = vsel %vm2561, %v2592, %v2596
      %v2599 = vshrl.u32 %v2531, 16
      %v2601 = vshll.u32 %v2531, 16
      %v2603 = vrot.slane %v2601, 1
      %v2604 = vor.u32 %v2599, %v2603
      %v2606 = vshll.u32 %v2532, 16
      %v2608 = vrot.slane %v2606, 1
      %v2609 = vsel %vm2561, %v2604, %v2608
      %v2611 = vshrl.u32 %v2533, 16
      %v2613 = vshll.u32 %v2533, 16
      %v2615 = vrot.slane %v2613, 1
      %v2616 = vor.u32 %v2611, %v2615
      %v2618 = vshll.u32 %v2534, 16
      %v2620 = vrot.slane %v2618, 1
      %v2621 = vsel %vm2561, %v2616, %v2620
      %v2623 = vshrl.u32 %v2535, 16
      %v2625 = vshll.u32 %v2535, 16
      %v2627 = vrot.slane %v2625, 1
      %v2628 = vor.u32 %v2623, %v2627
      %v2630 = vshll.u32 %v2536, 16
      %v2632 = vrot.slane %v2630, 1
      %v2633 = vsel %vm2561, %v2628, %v2632
      %v2635 = vshrl.u32 %v2537, 16
      %v2637 = vshll.u32 %v2537, 16
      %v2639 = vrot.slane %v2637, 1
      %v2640 = vor.u32 %v2635, %v2639
      %v2642 = vshll.u32 %v2538, 16
      %v2644 = vrot.slane %v2642, 1
      %v2645 = vsel %vm2561, %v2640, %v2644
      %v2647 = vshrl.u32 %v2539, 16
      %v2649 = vshll.u32 %v2539, 16
      %v2651 = vrot.slane %v2649, 1
      %v2652 = vor.u32 %v2647, %v2651
      %v2654 = vshll.u32 %v2540, 16
      %v2656 = vrot.slane %v2654, 1
      %v2657 = vsel %vm2561, %v2652, %v2656
      %s2666 = scalar_lea.vmem %s4, 64
      %v2667 = vld [vmem:[%s2666] sm:$0xf]
      %v2668 = vld [vmem:[%s2666 + $0x4] sm:$0xf]
      %v2669 = vld [vmem:[%s2666 + $0x8] sm:$0xf]
      %v2670 = vld [vmem:[%s2666 + $0xc] sm:$0xf]
      %v2671 = vld [vmem:[%s2666 + $0x10] sm:$0xf]
      %v2672 = vld [vmem:[%s2666 + $0x14] sm:$0xf]
      %v2673 = vld [vmem:[%s2666 + $0x18] sm:$0xf]
      %v2674 = vld [vmem:[%s2666 + $0x1c] sm:$0xf]
      %v2675 = vld [vmem:[%s2666 + $0x20] sm:$0xf]
      %v2676 = vld [vmem:[%s2666 + $0x24] sm:$0xf]
      %v2677 = vld [vmem:[%s2666 + $0x28] sm:$0xf]
      %v2678 = vld [vmem:[%s2666 + $0x2c] sm:$0xf]
      %v2679 = vld [vmem:[%s2666 + $0x30] sm:$0xf]
      %v2680 = vld [vmem:[%s2666 + $0x34] sm:$0xf]
      %v2681 = vld [vmem:[%s2666 + $0x38] sm:$0xf]
      %v2682 = vld [vmem:[%s2666 + $0x3c] sm:$0xf]
      %v2699 = vunpack.c.l.b16 %v2667
      %v2700 = vunpack.c.l.b16 %v2668
      %v2701 = vunpack.c.l.b16 %v2669
      %v2702 = vunpack.c.l.b16 %v2670
      %v2703 = vunpack.c.l.b16 %v2671
      %v2704 = vunpack.c.l.b16 %v2672
      %v2705 = vunpack.c.l.b16 %v2673
      %v2706 = vunpack.c.l.b16 %v2674
      %v2707 = vunpack.c.l.b16 %v2675
      %v2708 = vunpack.c.l.b16 %v2676
      %v2709 = vunpack.c.l.b16 %v2677
      %v2710 = vunpack.c.l.b16 %v2678
      %v2711 = vunpack.c.l.b16 %v2679
      %v2712 = vunpack.c.l.b16 %v2680
      %v2713 = vunpack.c.l.b16 %v2681
      %v2714 = vunpack.c.l.b16 %v2682
      %v2715 = vpack.c.b16 %v2700, %v2699
      %v2716 = vpack.c.b16 %v2702, %v2701
      %v2717 = vpack.c.b16 %v2704, %v2703
      %v2718 = vpack.c.b16 %v2706, %v2705
      %v2719 = vpack.c.b16 %v2708, %v2707
      %v2720 = vpack.c.b16 %v2710, %v2709
      %v2721 = vpack.c.b16 %v2712, %v2711
      %v2722 = vpack.c.b16 %v2714, %v2713
      %2731 = vmatprep.subr.bf16.mxu0 0
      %2732 = vmatpush1.bf16.msra.mxu0 %v2715
      %2733 = vmatprep.subr.bf16.mxu0 0
      %2734 = vmatpush1.bf16.msra.mxu0 %v2716
      %2735 = vmatprep.subr.bf16.mxu0 0
      %2736 = vmatpush1.bf16.msra.mxu0 %v2717
      %2737 = vmatprep.subr.bf16.mxu0 0
      %2738 = vmatpush1.bf16.msra.mxu0 %v2718
      %2739 = vmatprep.subr.bf16.mxu0 0
      %2740 = vmatpush1.bf16.msra.mxu0 %v2719
      %2741 = vmatprep.subr.bf16.mxu0 0
      %2742 = vmatpush1.bf16.msra.mxu0 %v2720
      %2743 = vmatprep.subr.bf16.mxu0 0
      %2744 = vmatpush1.bf16.msra.mxu0 %v2721
      %2745 = vmatprep.subr.bf16.mxu0 0
      %2746 = vmatpush1.bf16.msra.mxu0 %v2722
      %2747 = vmatprep.subr.bf16.mxu0 0
      %2748 = vmatpush1.bf16.msra.mxu0 0
      %2749 = vmatprep.subr.bf16.mxu0 0
      %2750 = vmatpush1.bf16.msra.mxu0 0
      %2751 = vmatprep.subr.bf16.mxu0 0
      %2752 = vmatpush1.bf16.msra.mxu0 0
      %2753 = vmatprep.subr.bf16.mxu0 0
      %2754 = vmatpush1.bf16.msra.mxu0 0
      %2755 = vmatprep.subr.bf16.mxu0 0
      %2756 = vmatpush1.bf16.msra.mxu0 0
      %2757 = vmatprep.subr.bf16.mxu0 0
      %2758 = vmatpush1.bf16.msra.mxu0 0
      %2759 = vmatprep.subr.bf16.mxu0 0
      %2760 = vmatpush1.bf16.msra.mxu0 0
      %2761 = vmatprep.subr.bf16.mxu0 0
      %2762 = vmatpush1.bf16.msra.mxu0 0
      %2763 = vmatprep.mubr.bf16.mxu0 0
      %2764 = vmatmul.mubr.bf16.gmra.mrb[0].mxu0 %v2573
      %v2765 = vpop.f32.mrb[0].mxu0
      %v2766 = vadd.f32 0.0, %v2765
      %v2767 = vpop.f32.mrb[0].mxu0
      %v2768 = vpop.f32.mrb[0].mxu0
      %v2769 = vadd.f32 0.0, %v2768
      %v2770 = vpop.f32.mrb[0].mxu0
      %2771 = vmatprep.mubr.bf16.mxu0 0
      %2772 = vmatmul.mubr.bf16.gmra.mrb[0].mxu0 %v2585
      %v2773 = vpop.f32.mrb[0].mxu0
      %v2774 = vadd.f32 0.0, %v2773
      %v2775 = vpop.f32.mrb[0].mxu0
      %v2776 = vpop.f32.mrb[0].mxu0
      %v2777 = vadd.f32 0.0, %v2776
      %v2778 = vpop.f32.mrb[0].mxu0
      %2779 = vmatprep.mubr.bf16.mxu0 0
      %2780 = vmatmul.mubr.bf16.gmra.mrb[0].mxu0 %v2597
      %v2781 = vpop.f32.mrb[0].mxu0
      %v2782 = vadd.f32 0.0, %v2781
      %v2783 = vpop.f32.mrb[0].mxu0
      %v2784 = vpop.f32.mrb[0].mxu0
      %v2785 = vadd.f32 0.0, %v2784
      %v2786 = vpop.f32.mrb[0].mxu0
      %2787 = vmatprep.mubr.bf16.mxu0 0
      %2788 = vmatmul.mubr.bf16.gmra.mrb[0].mxu0 %v2609
      %v2789 = vpop.f32.mrb[0].mxu0
      %v2790 = vadd.f32 0.0, %v2789
      %v2791 = vpop.f32.mrb[0].mxu0
      %v2792 = vpop.f32.mrb[0].mxu0
      %v2793 = vadd.f32 0.0, %v2792
      %v2794 = vpop.f32.mrb[0].mxu0
      %2795 = vmatprep.mubr.bf16.mxu0 0
      %2796 = vmatmul.mubr.bf16.gmra.mrb[0].mxu0 %v2621
      %v2797 = vpop.f32.mrb[0].mxu0
      %v2798 = vadd.f32 0.0, %v2797
      %v2799 = vpop.f32.mrb[0].mxu0
      %v2800 = vpop.f32.mrb[0].mxu0
      %v2801 = vadd.f32 0.0, %v2800
      %v2802 = vpop.f32.mrb[0].mxu0
      %2803 = vmatprep.mubr.bf16.mxu0 0
      %2804 = vmatmul.mubr.bf16.gmra.mrb[0].mxu0 %v2633
      %v2805 = vpop.f32.mrb[0].mxu0
      %v2806 = vadd.f32 0.0, %v2805
      %v2807 = vpop.f32.mrb[0].mxu0
      %v2808 = vpop.f32.mrb[0].mxu0
      %v2809 = vadd.f32 0.0, %v2808
      %v2810 = vpop.f32.mrb[0].mxu0
      %2811 = vmatprep.mubr.bf16.mxu0 0
      %2812 = vmatmul.mubr.bf16.gmra.mrb[0].mxu0 %v2645
      %v2813 = vpop.f32.mrb[0].mxu0
      %v2814 = vadd.f32 0.0, %v2813
      %v2815 = vpop.f32.mrb[0].mxu0
      %v2816 = vpop.f32.mrb[0].mxu0
      %v2817 = vadd.f32 0.0, %v2816
      %v2818 = vpop.f32.mrb[0].mxu0
      %2819 = vmatprep.mubr.bf16.mxu0 0
      %2820 = vmatmul.mubr.bf16.gmra.mrb[0].mxu0 %v2657
      %v2821 = vpop.f32.mrb[0].mxu0
      %v2822 = vadd.f32 0.0, %v2821
      %v2823 = vpop.f32.mrb[0].mxu0
      %v2824 = vpop.f32.mrb[0].mxu0
      %v2825 = vadd.f32 0.0, %v2824
      %v2826 = vpop.f32.mrb[0].mxu0
      %2827 = vdwg.mxu0
      %v2844 = vunpack.c.l.b16 %v2545
      %v2845 = vunpack.c.l.b16 %v2546
      %v2846 = vunpack.c.l.b16 %v2547
      %v2847 = vunpack.c.l.b16 %v2548
      %v2848 = vunpack.c.l.b16 %v2549
      %v2849 = vunpack.c.l.b16 %v2550
      %v2850 = vunpack.c.l.b16 %v2551
      %v2851 = vunpack.c.l.b16 %v2552
      %v2852 = vunpack.c.l.b16 %v2553
      %v2853 = vunpack.c.l.b16 %v2554
      %v2854 = vunpack.c.l.b16 %v2555
      %v2855 = vunpack.c.l.b16 %v2556
      %v2856 = vunpack.c.l.b16 %v2557
      %v2857 = vunpack.c.l.b16 %v2558
      %v2858 = vunpack.c.l.b16 %v2559
      %v2859 = vunpack.c.l.b16 %v2560
      %v2860 = vpack.c.b16 %v2845, %v2844
      %v2861 = vpack.c.b16 %v2847, %v2846
      %v2862 = vpack.c.b16 %v2849, %v2848
      %v2863 = vpack.c.b16 %v2851, %v2850
      %v2864 = vpack.c.b16 %v2853, %v2852
      %v2865 = vpack.c.b16 %v2855, %v2854
      %v2866 = vpack.c.b16 %v2857, %v2856
      %v2867 = vpack.c.b16 %v2859, %v2858
      %2876 = vmatprep.subr.bf16.mxu0 0
      %2877 = vmatpush1.bf16.msra.mxu0 %v2860
      %2878 = vmatprep.subr.bf16.mxu0 0
      %2879 = vmatpush1.bf16.msra.mxu0 %v2861
      %2880 = vmatprep.subr.bf16.mxu0 0
      %2881 = vmatpush1.bf16.msra.mxu0 %v2862
      %2882 = vmatprep.subr.bf16.mxu0 0
      %2883 = vmatpush1.bf16.msra.mxu0 %v2863
      %2884 = vmatprep.subr.bf16.mxu0 0
      %2885 = vmatpush1.bf16.msra.mxu0 %v2864
      %2886 = vmatprep.subr.bf16.mxu0 0
      %2887 = vmatpush1.bf16.msra.mxu0 %v2865
      %2888 = vmatprep.subr.bf16.mxu0 0
      %2889 = vmatpush1.bf16.msra.mxu0 %v2866
      %2890 = vmatprep.subr.bf16.mxu0 0
      %2891 = vmatpush1.bf16.msra.mxu0 %v2867
      %2892 = vmatprep.subr.bf16.mxu0 0
      %2893 = vmatpush1.bf16.msra.mxu0 0
      %2894 = vmatprep.subr.bf16.mxu0 0
      %2895 = vmatpush1.bf16.msra.mxu0 0
      %2896 = vmatprep.subr.bf16.mxu0 0
      %2897 = vmatpush1.bf16.msra.mxu0 0
      %2898 = vmatprep.subr.bf16.mxu0 0
      %2899 = vmatpush1.bf16.msra.mxu0 0
      %2900 = vmatprep.subr.bf16.mxu0 0
      %2901 = vmatpush1.bf16.msra.mxu0 0
      %2902 = vmatprep.subr.bf16.mxu0 0
      %2903 = vmatpush1.bf16.msra.mxu0 0
      %2904 = vmatprep.subr.bf16.mxu0 0
      %2905 = vmatpush1.bf16.msra.mxu0 0
      %2906 = vmatprep.subr.bf16.mxu0 0
      %2907 = vmatpush1.bf16.msra.mxu0 0
      %2908 = vmatprep.mubr.bf16.mxu0 0
      %2909 = vmatmul.mubr.bf16.gmra.mrb[0].mxu0 %v2525
      %v2910 = vpop.f32.mrb[0].mxu0
      %v2911 = vadd.f32 %v2766, %v2910
      %v2912 = vpop.f32.mrb[0].mxu0
      %v2913 = vpop.f32.mrb[0].mxu0
      %v2914 = vadd.f32 %v2769, %v2913
      %v2915 = vpop.f32.mrb[0].mxu0
      %2916 = vmatprep.mubr.bf16.mxu0 0
      %2917 = vmatmul.mubr.bf16.gmra.mrb[0].mxu0 %v2527
      %v2918 = vpop.f32.mrb[0].mxu0
      %v2919 = vadd.f32 %v2774, %v2918
      %v2920 = vpop.f32.mrb[0].mxu0
      %v2921 = vpop.f32.mrb[0].mxu0
      %v2922 = vadd.f32 %v2777, %v2921
      %v2923 = vpop.f32.mrb[0].mxu0
      %2924 = vmatprep.mubr.bf16.mxu0 0
      %2925 = vmatmul.mubr.bf16.gmra.mrb[0].mxu0 %v2529
      %v2926 = vpop.f32.mrb[0].mxu0
      %v2927 = vadd.f32 %v2782, %v2926
      %v2928 = vpop.f32.mrb[0].mxu0
      %v2929 = vpop.f32.mrb[0].mxu0
      %v2930 = vadd.f32 %v2785, %v2929
      %v2931 = vpop.f32.mrb[0].mxu0
      %2932 = vmatprep.mubr.bf16.mxu0 0
      %2933 = vmatmul.mubr.bf16.gmra.mrb[0].mxu0 %v2531
      %v2934 = vpop.f32.mrb[0].mxu0
      %v2935 = vadd.f32 %v2790, %v2934
      %v2936 = vpop.f32.mrb[0].mxu0
      %v2937 = vpop.f32.mrb[0].mxu0
      %v2938 = vadd.f32 %v2793, %v2937
      %v2939 = vpop.f32.mrb[0].mxu0
      %2940 = vmatprep.mubr.bf16.mxu0 0
      %2941 = vmatmul.mubr.bf16.gmra.mrb[0].mxu0 %v2533
      %v2942 = vpop.f32.mrb[0].mxu0
      %v2943 = vadd.f32 %v2798, %v2942
      %v2944 = vpop.f32.mrb[0].mxu0
      %v2945 = vpop.f32.mrb[0].mxu0
      %v2946 = vadd.f32 %v2801, %v2945
      %v2947 = vpop.f32.mrb[0].mxu0
      %2948 = vmatprep.mubr.bf16.mxu0 0
      %2949 = vmatmul.mubr.bf16.gmra.mrb[0].mxu0 %v2535
      %v2950 = vpop.f32.mrb[0].mxu0
      %v2951 = vadd.f32 %v2806, %v2950
      %v2952 = vpop.f32.mrb[0].mxu0
      %v2953 = vpop.f32.mrb[0].mxu0
      %v2954 = vadd.f32 %v2809, %v2953
      %v2955 = vpop.f32.mrb[0].mxu0
      %2956 = vmatprep.mubr.bf16.mxu0 0
      %2957 = vmatmul.mubr.bf16.gmra.mrb[0].mxu0 %v2537
      %v2958 = vpop.f32.mrb[0].mxu0
      %v2959 = vadd.f32 %v2814, %v2958
      %v2960 = vpop.f32.mrb[0].mxu0
      %v2961 = vpop.f32.mrb[0].mxu0
      %v2962 = vadd.f32 %v2817, %v2961
      %v2963 = vpop.f32.mrb[0].mxu0
      %2964 = vmatprep.mubr.bf16.mxu0 0
      %2965 = vmatmul.mubr.bf16.gmra.mrb[0].mxu0 %v2539
      %v2966 = vpop.f32.mrb[0].mxu0
      %v2967 = vadd.f32 %v2822, %v2966
      %v2968 = vpop.f32.mrb[0].mxu0
      %v2969 = vpop.f32.mrb[0].mxu0
      %v2970 = vadd.f32 %v2825, %v2969
      %v2971 = vpop.f32.mrb[0].mxu0
      %2972 = vdwg.mxu0
      %vm2989 = vcmask 1046528
      %v2990 = vrot.slane %v2525, 1
      %v2991 = vrot.slane %v2526, 1
      %v2992 = vsel %vm2989, %v2990, %v2991
      %v2993 = vrot.slane %v2527, 1
      %v2994 = vrot.slane %v2528, 1
      %v2995 = vsel %vm2989, %v2993, %v2994
      %v2996 = vrot.slane %v2529, 1
      %v2997 = vrot.slane %v2530, 1
      %v2998 = vsel %vm2989, %v2996, %v2997
      %v2999 = vrot.slane %v2531, 1
      %v3000 = vrot.slane %v2532, 1
      %v3001 = vsel %vm2989, %v2999, %v3000
      %v3002 = vrot.slane %v2533, 1
      %v3003 = vrot.slane %v2534, 1
      %v3004 = vsel %vm2989, %v3002, %v3003
      %v3005 = vrot.slane %v2535, 1
      %v3006 = vrot.slane %v2536, 1
      %v3007 = vsel %vm2989, %v3005, %v3006
      %v3008 = vrot.slane %v2537, 1
      %v3009 = vrot.slane %v2538, 1
      %v3010 = vsel %vm2989, %v3008, %v3009
      %v3011 = vrot.slane %v2539, 1
      %v3012 = vrot.slane %v2540, 1
      %v3013 = vsel %vm2989, %v3011, %v3012
      %s3022 = scalar_lea.vmem %s4, 128
      %v3023 = vld [vmem:[%s3022] sm:$0xf]
      %v3024 = vld [vmem:[%s3022 + $0x4] sm:$0xf]
      %v3025 = vld [vmem:[%s3022 + $0x8] sm:$0xf]
      %v3026 = vld [vmem:[%s3022 + $0xc] sm:$0xf]
      %v3027 = vld [vmem:[%s3022 + $0x10] sm:$0xf]
      %v3028 = vld [vmem:[%s3022 + $0x14] sm:$0xf]
      %v3029 = vld [vmem:[%s3022 + $0x18] sm:$0xf]
      %v3030 = vld [vmem:[%s3022 + $0x1c] sm:$0xf]
      %v3031 = vld [vmem:[%s3022 + $0x20] sm:$0xf]
      %v3032 = vld [vmem:[%s3022 + $0x24] sm:$0xf]
      %v3033 = vld [vmem:[%s3022 + $0x28] sm:$0xf]
      %v3034 = vld [vmem:[%s3022 + $0x2c] sm:$0xf]
      %v3035 = vld [vmem:[%s3022 + $0x30] sm:$0xf]
      %v3036 = vld [vmem:[%s3022 + $0x34] sm:$0xf]
      %v3037 = vld [vmem:[%s3022 + $0x38] sm:$0xf]
      %v3038 = vld [vmem:[%s3022 + $0x3c] sm:$0xf]
      %v3055 = vunpack.c.l.b16 %v3023
      %v3056 = vunpack.c.l.b16 %v3024
      %v3057 = vunpack.c.l.b16 %v3025
      %v3058 = vunpack.c.l.b16 %v3026
      %v3059 = vunpack.c.l.b16 %v3027
      %v3060 = vunpack.c.l.b16 %v3028
      %v3061 = vunpack.c.l.b16 %v3029
      %v3062 = vunpack.c.l.b16 %v3030
      %v3063 = vunpack.c.l.b16 %v3031
      %v3064 = vunpack.c.l.b16 %v3032
      %v3065 = vunpack.c.l.b16 %v3033
      %v3066 = vunpack.c.l.b16 %v3034
      %v3067 = vunpack.c.l.b16 %v3035
      %v3068 = vunpack.c.l.b16 %v3036
      %v3069 = vunpack.c.l.b16 %v3037
      %v3070 = vunpack.c.l.b16 %v3038
      %v3071 = vpack.c.b16 %v3056, %v3055
      %v3072 = vpack.c.b16 %v3058, %v3057
      %v3073 = vpack.c.b16 %v3060, %v3059
      %v3074 = vpack.c.b16 %v3062, %v3061
      %v3075 = vpack.c.b16 %v3064, %v3063
      %v3076 = vpack.c.b16 %v3066, %v3065
      %v3077 = vpack.c.b16 %v3068, %v3067
      %v3078 = vpack.c.b16 %v3070, %v3069
      %3087 = vmatprep.subr.bf16.mxu0 0
      %3088 = vmatpush1.bf16.msra.mxu0 %v3071
      %3089 = vmatprep.subr.bf16.mxu0 0
      %3090 = vmatpush1.bf16.msra.mxu0 %v3072
      %3091 = vmatprep.subr.bf16.mxu0 0
      %3092 = vmatpush1.bf16.msra.mxu0 %v3073
      %3093 = vmatprep.subr.bf16.mxu0 0
      %3094 = vmatpush1.bf16.msra.mxu0 %v3074
      %3095 = vmatprep.subr.bf16.mxu0 0
      %3096 = vmatpush1.bf16.msra.mxu0 %v3075
      %3097 = vmatprep.subr.bf16.mxu0 0
      %3098 = vmatpush1.bf16.msra.mxu0 %v3076
      %3099 = vmatprep.subr.bf16.mxu0 0
      %3100 = vmatpush1.bf16.msra.mxu0 %v3077
      %3101 = vmatprep.subr.bf16.mxu0 0
      %3102 = vmatpush1.bf16.msra.mxu0 %v3078
      %3103 = vmatprep.subr.bf16.mxu0 0
      %3104 = vmatpush1.bf16.msra.mxu0 0
      %3105 = vmatprep.subr.bf16.mxu0 0
      %3106 = vmatpush1.bf16.msra.mxu0 0
      %3107 = vmatprep.subr.bf16.mxu0 0
      %3108 = vmatpush1.bf16.msra.mxu0 0
      %3109 = vmatprep.subr.bf16.mxu0 0
      %3110 = vmatpush1.bf16.msra.mxu0 0
      %3111 = vmatprep.subr.bf16.mxu0 0
      %3112 = vmatpush1.bf16.msra.mxu0 0
      %3113 = vmatprep.subr.bf16.mxu0 0
      %3114 = vmatpush1.bf16.msra.mxu0 0
      %3115 = vmatprep.subr.bf16.mxu0 0
      %3116 = vmatpush1.bf16.msra.mxu0 0
      %3117 = vmatprep.subr.bf16.mxu0 0
      %3118 = vmatpush1.bf16.msra.mxu0 0
      %3119 = vmatprep.mubr.bf16.mxu0 0
      %3120 = vmatmul.mubr.bf16.gmra.mrb[0].mxu0 %v2992
      %v3121 = vpop.f32.mrb[0].mxu0
      %v3122 = vadd.f32 0.0, %v3121
      %v3123 = vpop.f32.mrb[0].mxu0
      %v3124 = vpop.f32.mrb[0].mxu0
      %v3125 = vadd.f32 0.0, %v3124
      %v3126 = vpop.f32.mrb[0].mxu0
      %3127 = vmatprep.mubr.bf16.mxu0 0
      %3128 = vmatmul.mubr.bf16.gmra.mrb[0].mxu0 %v2995
      %v3129 = vpop.f32.mrb[0].mxu0
      %v3130 = vadd.f32 0.0, %v3129
      %v3131 = vpop.f32.mrb[0].mxu0
      %v3132 = vpop.f32.mrb[0].mxu0
      %v3133 = vadd.f32 0.0, %v3132
      %v3134 = vpop.f32.mrb[0].mxu0
      %3135 = vmatprep.mubr.bf16.mxu0 0
      %3136 = vmatmul.mubr.bf16.gmra.mrb[0].mxu0 %v2998
      %v3137 = vpop.f32.mrb[0].mxu0
      %v3138 = vadd.f32 0.0, %v3137
      %v3139 = vpop.f32.mrb[0].mxu0
      %v3140 = vpop.f32.mrb[0].mxu0
      %v3141 = vadd.f32 0.0, %v3140
      %v3142 = vpop.f32.mrb[0].mxu0
      %3143 = vmatprep.mubr.bf16.mxu0 0
      %3144 = vmatmul.mubr.bf16.gmra.mrb[0].mxu0 %v3001
      %v3145 = vpop.f32.mrb[0].mxu0
      %v3146 = vadd.f32 0.0, %v3145
      %v3147 = vpop.f32.mrb[0].mxu0
      %v3148 = vpop.f32.mrb[0].mxu0
      %v3149 = vadd.f32 0.0, %v3148
      %v3150 = vpop.f32.mrb[0].mxu0
      %3151 = vmatprep.mubr.bf16.mxu0 0
      %3152 = vmatmul.mubr.bf16.gmra.mrb[0].mxu0 %v3004
      %v3153 = vpop.f32.mrb[0].mxu0
      %v3154 = vadd.f32 0.0, %v3153
      %v3155 = vpop.f32.mrb[0].mxu0
      %v3156 = vpop.f32.mrb[0].mxu0
      %v3157 = vadd.f32 0.0, %v3156
      %v3158 = vpop.f32.mrb[0].mxu0
      %3159 = vmatprep.mubr.bf16.mxu0 0
      %3160 = vmatmul.mubr.bf16.gmra.mrb[0].mxu0 %v3007
      %v3161 = vpop.f32.mrb[0].mxu0
      %v3162 = vadd.f32 0.0, %v3161
      %v3163 = vpop.f32.mrb[0].mxu0
      %v3164 = vpop.f32.mrb[0].mxu0
      %v3165 = vadd.f32 0.0, %v3164
      %v3166 = vpop.f32.mrb[0].mxu0
      %3167 = vmatprep.mubr.bf16.mxu0 0
      %3168 = vmatmul.mubr.bf16.gmra.mrb[0].mxu0 %v3010
      %v3169 = vpop.f32.mrb[0].mxu0
      %v3170 = vadd.f32 0.0, %v3169
      %v3171 = vpop.f32.mrb[0].mxu0
      %v3172 = vpop.f32.mrb[0].mxu0
      %v3173 = vadd.f32 0.0, %v3172
      %v3174 = vpop.f32.mrb[0].mxu0
      %3175 = vmatprep.mubr.bf16.mxu0 0
      %3176 = vmatmul.mubr.bf16.gmra.mrb[0].mxu0 %v3013
      %v3177 = vpop.f32.mrb[0].mxu0
      %v3178 = vadd.f32 0.0, %v3177
      %v3179 = vpop.f32.mrb[0].mxu0
      %v3180 = vpop.f32.mrb[0].mxu0
      %v3181 = vadd.f32 0.0, %v3180
      %v3182 = vpop.f32.mrb[0].mxu0
      %3183 = vdwg.mxu0
      %v3184 = vadd.f32 %v2911, %v3122
      %v3185 = vadd.f32 %v2914, %v3125
      %v3186 = vadd.f32 %v2919, %v3130
      %v3187 = vadd.f32 %v2922, %v3133
      %v3188 = vadd.f32 %v2927, %v3138
      %v3189 = vadd.f32 %v2930, %v3141
      %v3190 = vadd.f32 %v2935, %v3146
      %v3191 = vadd.f32 %v2938, %v3149
      %v3192 = vadd.f32 %v2943, %v3154
      %v3193 = vadd.f32 %v2946, %v3157
      %v3194 = vadd.f32 %v2951, %v3162
      %v3195 = vadd.f32 %v2954, %v3165
      %v3196 = vadd.f32 %v2959, %v3170
      %v3197 = vadd.f32 %v2962, %v3173
      %v3198 = vadd.f32 %v2967, %v3178
      %v3199 = vadd.f32 %v2970, %v3181
      %s3200 = scalar_lea.vmem %s4, 192
      %v3201 = vld [vmem:[%s3200] sm:$0xf]
      %v3202 = vld [vmem:[%s3200 + $0x4] sm:$0xf]
      %v3203 = vld [vmem:[%s3200 + $0x8] sm:$0xf]
      %v3204 = vld [vmem:[%s3200 + $0xc] sm:$0xf]
      %v3205 = vld [vmem:[%s3200 + $0x10] sm:$0xf]
      %v3206 = vld [vmem:[%s3200 + $0x14] sm:$0xf]
      %v3207 = vld [vmem:[%s3200 + $0x18] sm:$0xf]
      %v3208 = vld [vmem:[%s3200 + $0x1c] sm:$0xf]
      %v3209 = vld [vmem:[%s3200 + $0x20] sm:$0xf]
      %v3210 = vld [vmem:[%s3200 + $0x24] sm:$0xf]
      %v3211 = vld [vmem:[%s3200 + $0x28] sm:$0xf]
      %v3212 = vld [vmem:[%s3200 + $0x2c] sm:$0xf]
      %v3213 = vld [vmem:[%s3200 + $0x30] sm:$0xf]
      %v3214 = vld [vmem:[%s3200 + $0x34] sm:$0xf]
      %v3215 = vld [vmem:[%s3200 + $0x38] sm:$0xf]
      %v3216 = vld [vmem:[%s3200 + $0x3c] sm:$0xf]
      %v3233 = vunpack.c.l.b16 %v3201
      %v3234 = vunpack.c.l.b16 %v3202
      %v3235 = vunpack.c.l.b16 %v3203
      %v3236 = vunpack.c.l.b16 %v3204
      %v3237 = vunpack.c.l.b16 %v3205
      %v3238 = vunpack.c.l.b16 %v3206
      %v3239 = vunpack.c.l.b16 %v3207
      %v3240 = vunpack.c.l.b16 %v3208
      %v3241 = vunpack.c.l.b16 %v3209
      %v3242 = vunpack.c.l.b16 %v3210
      %v3243 = vunpack.c.l.b16 %v3211
      %v3244 = vunpack.c.l.b16 %v3212
      %v3245 = vunpack.c.l.b16 %v3213
      %v3246 = vunpack.c.l.b16 %v3214
      %v3247 = vunpack.c.l.b16 %v3215
      %v3248 = vunpack.c.l.b16 %v3216
      %v3249 = vpack.c.b16 %v3234, %v3233
      %v3250 = vpack.c.b16 %v3236, %v3235
      %v3251 = vpack.c.b16 %v3238, %v3237
      %v3252 = vpack.c.b16 %v3240, %v3239
      %v3253 = vpack.c.b16 %v3242, %v3241
      %v3254 = vpack.c.b16 %v3244, %v3243
      %v3255 = vpack.c.b16 %v3246, %v3245
      %v3256 = vpack.c.b16 %v3248, %v3247
      %3265 = vmatprep.subr.bf16.mxu0 0
      %3266 = vmatpush1.bf16.msra.mxu0 %v3249
      %3267 = vmatprep.subr.bf16.mxu0 0
      %3268 = vmatpush1.bf16.msra.mxu0 %v3250
      %3269 = vmatprep.subr.bf16.mxu0 0
      %3270 = vmatpush1.bf16.msra.mxu0 %v3251
      %3271 = vmatprep.subr.bf16.mxu0 0
      %3272 = vmatpush1.bf16.msra.mxu0 %v3252
      %3273 = vmatprep.subr.bf16.mxu0 0
      %3274 = vmatpush1.bf16.msra.mxu0 %v3253
      %3275 = vmatprep.subr.bf16.mxu0 0
      %3276 = vmatpush1.bf16.msra.mxu0 %v3254
      %3277 = vmatprep.subr.bf16.mxu0 0
      %3278 = vmatpush1.bf16.msra.mxu0 %v3255
      %3279 = vmatprep.subr.bf16.mxu0 0
      %3280 = vmatpush1.bf16.msra.mxu0 %v3256
      %3281 = vmatprep.subr.bf16.mxu0 0
      %3282 = vmatpush1.bf16.msra.mxu0 0
      %3283 = vmatprep.subr.bf16.mxu0 0
      %3284 = vmatpush1.bf16.msra.mxu0 0
      %3285 = vmatprep.subr.bf16.mxu0 0
      %3286 = vmatpush1.bf16.msra.mxu0 0
      %3287 = vmatprep.subr.bf16.mxu0 0
      %3288 = vmatpush1.bf16.msra.mxu0 0
      %3289 = vmatprep.subr.bf16.mxu0 0
      %3290 = vmatpush1.bf16.msra.mxu0 0
      %3291 = vmatprep.subr.bf16.mxu0 0
      %3292 = vmatpush1.bf16.msra.mxu0 0
      %3293 = vmatprep.subr.bf16.mxu0 0
      %3294 = vmatpush1.bf16.msra.mxu0 0
      %3295 = vmatprep.subr.bf16.mxu0 0
      %3296 = vmatpush1.bf16.msra.mxu0 0
      %3297 = vmatprep.mubr.bf16.mxu0 0
      %3298 = vmatmul.mubr.bf16.gmra.mrb[0].mxu0 %v2527
      %v3299 = vpop.f32.mrb[0].mxu0
      %v3300 = vadd.f32 0.0, %v3299
      %v3301 = vpop.f32.mrb[0].mxu0
      %v3302 = vpop.f32.mrb[0].mxu0
      %v3303 = vadd.f32 0.0, %v3302
      %v3304 = vpop.f32.mrb[0].mxu0
      %3305 = vmatprep.mubr.bf16.mxu0 0
      %3306 = vmatmul.mubr.bf16.gmra.mrb[0].mxu0 %v2529
      %v3307 = vpop.f32.mrb[0].mxu0
      %v3308 = vadd.f32 0.0, %v3307
      %v3309 = vpop.f32.mrb[0].mxu0
      %v3310 = vpop.f32.mrb[0].mxu0
      %v3311 = vadd.f32 0.0, %v3310
      %v3312 = vpop.f32.mrb[0].mxu0
      %3313 = vmatprep.mubr.bf16.mxu0 0
      %3314 = vmatmul.mubr.bf16.gmra.mrb[0].mxu0 %v2531
      %v3315 = vpop.f32.mrb[0].mxu0
      %v3316 = vadd.f32 0.0, %v3315
      %v3317 = vpop.f32.mrb[0].mxu0
      %v3318 = vpop.f32.mrb[0].mxu0
      %v3319 = vadd.f32 0.0, %v3318
      %v3320 = vpop.f32.mrb[0].mxu0
      %3321 = vmatprep.mubr.bf16.mxu0 0
      %3322 = vmatmul.mubr.bf16.gmra.mrb[0].mxu0 %v2533
      %v3323 = vpop.f32.mrb[0].mxu0
      %v3324 = vadd.f32 0.0, %v3323
      %v3325 = vpop.f32.mrb[0].mxu0
      %v3326 = vpop.f32.mrb[0].mxu0
      %v3327 = vadd.f32 0.0, %v3326
      %v3328 = vpop.f32.mrb[0].mxu0
      %3329 = vmatprep.mubr.bf16.mxu0 0
      %3330 = vmatmul.mubr.bf16.gmra.mrb[0].mxu0 %v2535
      %v3331 = vpop.f32.mrb[0].mxu0
      %v3332 = vadd.f32 0.0, %v3331
      %v3333 = vpop.f32.mrb[0].mxu0
      %v3334 = vpop.f32.mrb[0].mxu0
      %v3335 = vadd.f32 0.0, %v3334
      %v3336 = vpop.f32.mrb[0].mxu0
      %3337 = vmatprep.mubr.bf16.mxu0 0
      %3338 = vmatmul.mubr.bf16.gmra.mrb[0].mxu0 %v2537
      %v3339 = vpop.f32.mrb[0].mxu0
      %v3340 = vadd.f32 0.0, %v3339
      %v3341 = vpop.f32.mrb[0].mxu0
      %v3342 = vpop.f32.mrb[0].mxu0
      %v3343 = vadd.f32 0.0, %v3342
      %v3344 = vpop.f32.mrb[0].mxu0
      %3345 = vmatprep.mubr.bf16.mxu0 0
      %3346 = vmatmul.mubr.bf16.gmra.mrb[0].mxu0 %v2539
      %v3347 = vpop.f32.mrb[0].mxu0
      %v3348 = vadd.f32 0.0, %v3347
      %v3349 = vpop.f32.mrb[0].mxu0
      %v3350 = vpop.f32.mrb[0].mxu0
      %v3351 = vadd.f32 0.0, %v3350
      %v3352 = vpop.f32.mrb[0].mxu0
      %3353 = vmatprep.mubr.bf16.mxu0 0
      %3354 = vmatmul.mubr.bf16.gmra.mrb[0].mxu0 %v2541
      %v3355 = vpop.f32.mrb[0].mxu0
      %v3356 = vadd.f32 0.0, %v3355
      %v3357 = vpop.f32.mrb[0].mxu0
      %v3358 = vpop.f32.mrb[0].mxu0
      %v3359 = vadd.f32 0.0, %v3358
      %v3360 = vpop.f32.mrb[0].mxu0
      %3361 = vdwg.mxu0
      %v3362 = vadd.f32 %v3184, %v3300
      %v3363 = vadd.f32 %v3185, %v3303
      %v3364 = vadd.f32 %v3186, %v3308
      %v3365 = vadd.f32 %v3187, %v3311
      %v3366 = vadd.f32 %v3188, %v3316
      %v3367 = vadd.f32 %v3189, %v3319
      %v3368 = vadd.f32 %v3190, %v3324
      %v3369 = vadd.f32 %v3191, %v3327
      %v3370 = vadd.f32 %v3192, %v3332
      %v3371 = vadd.f32 %v3193, %v3335
      %v3372 = vadd.f32 %v3194, %v3340
      %v3373 = vadd.f32 %v3195, %v3343
      %v3374 = vadd.f32 %v3196, %v3348
      %v3375 = vadd.f32 %v3197, %v3351
      %v3376 = vadd.f32 %v3198, %v3356
      %v3377 = vadd.f32 %v3199, %v3359
      %v3379 = vshrl.u32 %v2541, 16
      %v3381 = vshll.u32 %v2541, 16
      %v3383 = vrot.slane %v3381, 1
      %v3384 = vor.u32 %v3379, %v3383
      %v3386 = vshll.u32 %v2542, 16
      %v3388 = vrot.slane %v3386, 1
      %v3389 = vsel %vm2561, %v3384, %v3388
      %s3391 = scalar_lea.vmem %s4, 256
      %v3392 = vld [vmem:[%s3391] sm:$0xf]
      %v3393 = vld [vmem:[%s3391 + $0x4] sm:$0xf]
      %v3394 = vld [vmem:[%s3391 + $0x8] sm:$0xf]
      %v3395 = vld [vmem:[%s3391 + $0xc] sm:$0xf]
      %v3396 = vld [vmem:[%s3391 + $0x10] sm:$0xf]
      %v3397 = vld [vmem:[%s3391 + $0x14] sm:$0xf]
      %v3398 = vld [vmem:[%s3391 + $0x18] sm:$0xf]
      %v3399 = vld [vmem:[%s3391 + $0x1c] sm:$0xf]
      %v3400 = vld [vmem:[%s3391 + $0x20] sm:$0xf]
      %v3401 = vld [vmem:[%s3391 + $0x24] sm:$0xf]
      %v3402 = vld [vmem:[%s3391 + $0x28] sm:$0xf]
      %v3403 = vld [vmem:[%s3391 + $0x2c] sm:$0xf]
      %v3404 = vld [vmem:[%s3391 + $0x30] sm:$0xf]
      %v3405 = vld [vmem:[%s3391 + $0x34] sm:$0xf]
      %v3406 = vld [vmem:[%s3391 + $0x38] sm:$0xf]
      %v3407 = vld [vmem:[%s3391 + $0x3c] sm:$0xf]
      %v3424 = vunpack.c.l.b16 %v3392
      %v3425 = vunpack.c.l.b16 %v3393
      %v3426 = vunpack.c.l.b16 %v3394
      %v3427 = vunpack.c.l.b16 %v3395
      %v3428 = vunpack.c.l.b16 %v3396
      %v3429 = vunpack.c.l.b16 %v3397
      %v3430 = vunpack.c.l.b16 %v3398
      %v3431 = vunpack.c.l.b16 %v3399
      %v3432 = vunpack.c.l.b16 %v3400
      %v3433 = vunpack.c.l.b16 %v3401
      %v3434 = vunpack.c.l.b16 %v3402
      %v3435 = vunpack.c.l.b16 %v3403
      %v3436 = vunpack.c.l.b16 %v3404
      %v3437 = vunpack.c.l.b16 %v3405
      %v3438 = vunpack.c.l.b16 %v3406
      %v3439 = vunpack.c.l.b16 %v3407
      %v3440 = vpack.c.b16 %v3425, %v3424
      %v3441 = vpack.c.b16 %v3427, %v3426
      %v3442 = vpack.c.b16 %v3429, %v3428
      %v3443 = vpack.c.b16 %v3431, %v3430
      %v3444 = vpack.c.b16 %v3433, %v3432
      %v3445 = vpack.c.b16 %v3435, %v3434
      %v3446 = vpack.c.b16 %v3437, %v3436
      %v3447 = vpack.c.b16 %v3439, %v3438
      %3456 = vmatprep.subr.bf16.mxu0 0
      %3457 = vmatpush1.bf16.msra.mxu0 %v3440
      %3458 = vmatprep.subr.bf16.mxu0 0
      %3459 = vmatpush1.bf16.msra.mxu0 %v3441
      %3460 = vmatprep.subr.bf16.mxu0 0
      %3461 = vmatpush1.bf16.msra.mxu0 %v3442
      %3462 = vmatprep.subr.bf16.mxu0 0
      %3463 = vmatpush1.bf16.msra.mxu0 %v3443
      %3464 = vmatprep.subr.bf16.mxu0 0
      %3465 = vmatpush1.bf16.msra.mxu0 %v3444
      %3466 = vmatprep.subr.bf16.mxu0 0
      %3467 = vmatpush1.bf16.msra.mxu0 %v3445
      %3468 = vmatprep.subr.bf16.mxu0 0
      %3469 = vmatpush1.bf16.msra.mxu0 %v3446
      %3470 = vmatprep.subr.bf16.mxu0 0
      %3471 = vmatpush1.bf16.msra.mxu0 %v3447
      %3472 = vmatprep.subr.bf16.mxu0 0
      %3473 = vmatpush1.bf16.msra.mxu0 0
      %3474 = vmatprep.subr.bf16.mxu0 0
      %3475 = vmatpush1.bf16.msra.mxu0 0
      %3476 = vmatprep.subr.bf16.mxu0 0
      %3477 = vmatpush1.bf16.msra.mxu0 0
      %3478 = vmatprep.subr.bf16.mxu0 0
      %3479 = vmatpush1.bf16.msra.mxu0 0
      %3480 = vmatprep.subr.bf16.mxu0 0
      %3481 = vmatpush1.bf16.msra.mxu0 0
      %3482 = vmatprep.subr.bf16.mxu0 0
      %3483 = vmatpush1.bf16.msra.mxu0 0
      %3484 = vmatprep.subr.bf16.mxu0 0
      %3485 = vmatpush1.bf16.msra.mxu0 0
      %3486 = vmatprep.subr.bf16.mxu0 0
      %3487 = vmatpush1.bf16.msra.mxu0 0
      %3488 = vmatprep.mubr.bf16.mxu0 0
      %3489 = vmatmul.mubr.bf16.gmra.mrb[0].mxu0 %v2585
      %v3490 = vpop.f32.mrb[0].mxu0
      %v3491 = vadd.f32 0.0, %v3490
      %v3492 = vpop.f32.mrb[0].mxu0
      %v3493 = vpop.f32.mrb[0].mxu0
      %v3494 = vadd.f32 0.0, %v3493
      %v3495 = vpop.f32.mrb[0].mxu0
      %3496 = vmatprep.mubr.bf16.mxu0 0
      %3497 = vmatmul.mubr.bf16.gmra.mrb[0].mxu0 %v2597
      %v3498 = vpop.f32.mrb[0].mxu0
      %v3499 = vadd.f32 0.0, %v3498
      %v3500 = vpop.f32.mrb[0].mxu0
      %v3501 = vpop.f32.mrb[0].mxu0
      %v3502 = vadd.f32 0.0, %v3501
      %v3503 = vpop.f32.mrb[0].mxu0
      %3504 = vmatprep.mubr.bf16.mxu0 0
      %3505 = vmatmul.mubr.bf16.gmra.mrb[0].mxu0 %v2609
      %v3506 = vpop.f32.mrb[0].mxu0
      %v3507 = vadd.f32 0.0, %v3506
      %v3508 = vpop.f32.mrb[0].mxu0
      %v3509 = vpop.f32.mrb[0].mxu0
      %v3510 = vadd.f32 0.0, %v3509
      %v3511 = vpop.f32.mrb[0].mxu0
      %3512 = vmatprep.mubr.bf16.mxu0 0
      %3513 = vmatmul.mubr.bf16.gmra.mrb[0].mxu0 %v2621
      %v3514 = vpop.f32.mrb[0].mxu0
      %v3515 = vadd.f32 0.0, %v3514
      %v3516 = vpop.f32.mrb[0].mxu0
      %v3517 = vpop.f32.mrb[0].mxu0
      %v3518 = vadd.f32 0.0, %v3517
      %v3519 = vpop.f32.mrb[0].mxu0
      %3520 = vmatprep.mubr.bf16.mxu0 0
      %3521 = vmatmul.mubr.bf16.gmra.mrb[0].mxu0 %v2633
      %v3522 = vpop.f32.mrb[0].mxu0
      %v3523 = vadd.f32 0.0, %v3522
      %v3524 = vpop.f32.mrb[0].mxu0
      %v3525 = vpop.f32.mrb[0].mxu0
      %v3526 = vadd.f32 0.0, %v3525
      %v3527 = vpop.f32.mrb[0].mxu0
      %3528 = vmatprep.mubr.bf16.mxu0 0
      %3529 = vmatmul.mubr.bf16.gmra.mrb[0].mxu0 %v2645
      %v3530 = vpop.f32.mrb[0].mxu0
      %v3531 = vadd.f32 0.0, %v3530
      %v3532 = vpop.f32.mrb[0].mxu0
      %v3533 = vpop.f32.mrb[0].mxu0
      %v3534 = vadd.f32 0.0, %v3533
      %v3535 = vpop.f32.mrb[0].mxu0
      %3536 = vmatprep.mubr.bf16.mxu0 0
      %3537 = vmatmul.mubr.bf16.gmra.mrb[0].mxu0 %v2657
      %v3538 = vpop.f32.mrb[0].mxu0
      %v3539 = vadd.f32 0.0, %v3538
      %v3540 = vpop.f32.mrb[0].mxu0
      %v3541 = vpop.f32.mrb[0].mxu0
      %v3542 = vadd.f32 0.0, %v3541
      %v3543 = vpop.f32.mrb[0].mxu0
      %3544 = vmatprep.mubr.bf16.mxu0 0
      %3545 = vmatmul.mubr.bf16.gmra.mrb[0].mxu0 %v3389
      %v3546 = vpop.f32.mrb[0].mxu0
      %v3547 = vadd.f32 0.0, %v3546
      %v3548 = vpop.f32.mrb[0].mxu0
      %v3549 = vpop.f32.mrb[0].mxu0
      %v3550 = vadd.f32 0.0, %v3549
      %v3551 = vpop.f32.mrb[0].mxu0
      %3552 = vdwg.mxu0
      %v3553 = vadd.f32 %v3362, %v3491
      %v3554 = vadd.f32 %v3363, %v3494
      %v3555 = vadd.f32 %v3364, %v3499
      %v3556 = vadd.f32 %v3365, %v3502
      %v3557 = vadd.f32 %v3366, %v3507
      %v3558 = vadd.f32 %v3367, %v3510
      %v3559 = vadd.f32 %v3368, %v3515
      %v3560 = vadd.f32 %v3369, %v3518
      %v3561 = vadd.f32 %v3370, %v3523
      %v3562 = vadd.f32 %v3371, %v3526
      %v3563 = vadd.f32 %v3372, %v3531
      %v3564 = vadd.f32 %v3373, %v3534
      %v3565 = vadd.f32 %v3374, %v3539
      %v3566 = vadd.f32 %v3375, %v3542
      %v3567 = vadd.f32 %v3376, %v3547
      %v3568 = vadd.f32 %v3377, %v3550
      %v3571 = vrot.slane %v2541, 1
      %v3572 = vrot.slane %v2542, 1
      %v3573 = vsel %vm2989, %v3571, %v3572
      %s3575 = scalar_lea.vmem %s4, 320
      %v3576 = vld [vmem:[%s3575] sm:$0xf]
      %v3577 = vld [vmem:[%s3575 + $0x4] sm:$0xf]
      %v3578 = vld [vmem:[%s3575 + $0x8] sm:$0xf]
      %v3579 = vld [vmem:[%s3575 + $0xc] sm:$0xf]
      %v3580 = vld [vmem:[%s3575 + $0x10] sm:$0xf]
      %v3581 = vld [vmem:[%s3575 + $0x14] sm:$0xf]
      %v3582 = vld [vmem:[%s3575 + $0x18] sm:$0xf]
      %v3583 = vld [vmem:[%s3575 + $0x1c] sm:$0xf]
      %v3584 = vld [vmem:[%s3575 + $0x20] sm:$0xf]
      %v3585 = vld [vmem:[%s3575 + $0x24] sm:$0xf]
      %v3586 = vld [vmem:[%s3575 + $0x28] sm:$0xf]
      %v3587 = vld [vmem:[%s3575 + $0x2c] sm:$0xf]
      %v3588 = vld [vmem:[%s3575 + $0x30] sm:$0xf]
      %v3589 = vld [vmem:[%s3575 + $0x34] sm:$0xf]
      %v3590 = vld [vmem:[%s3575 + $0x38] sm:$0xf]
      %v3591 = vld [vmem:[%s3575 + $0x3c] sm:$0xf]
      %v3608 = vunpack.c.l.b16 %v3576
      %v3609 = vunpack.c.l.b16 %v3577
      %v3610 = vunpack.c.l.b16 %v3578
      %v3611 = vunpack.c.l.b16 %v3579
      %v3612 = vunpack.c.l.b16 %v3580
      %v3613 = vunpack.c.l.b16 %v3581
      %v3614 = vunpack.c.l.b16 %v3582
      %v3615 = vunpack.c.l.b16 %v3583
      %v3616 = vunpack.c.l.b16 %v3584
      %v3617 = vunpack.c.l.b16 %v3585
      %v3618 = vunpack.c.l.b16 %v3586
      %v3619 = vunpack.c.l.b16 %v3587
      %v3620 = vunpack.c.l.b16 %v3588
      %v3621 = vunpack.c.l.b16 %v3589
      %v3622 = vunpack.c.l.b16 %v3590
      %v3623 = vunpack.c.l.b16 %v3591
      %v3624 = vpack.c.b16 %v3609, %v3608
      %v3625 = vpack.c.b16 %v3611, %v3610
      %v3626 = vpack.c.b16 %v3613, %v3612
      %v3627 = vpack.c.b16 %v3615, %v3614
      %v3628 = vpack.c.b16 %v3617, %v3616
      %v3629 = vpack.c.b16 %v3619, %v3618
      %v3630 = vpack.c.b16 %v3621, %v3620
      %v3631 = vpack.c.b16 %v3623, %v3622
      %3640 = vmatprep.subr.bf16.mxu0 0
      %3641 = vmatpush1.bf16.msra.mxu0 %v3624
      %3642 = vmatprep.subr.bf16.mxu0 0
      %3643 = vmatpush1.bf16.msra.mxu0 %v3625
      %3644 = vmatprep.subr.bf16.mxu0 0
      %3645 = vmatpush1.bf16.msra.mxu0 %v3626
      %3646 = vmatprep.subr.bf16.mxu0 0
      %3647 = vmatpush1.bf16.msra.mxu0 %v3627
      %3648 = vmatprep.subr.bf16.mxu0 0
      %3649 = vmatpush1.bf16.msra.mxu0 %v3628
      %3650 = vmatprep.subr.bf16.mxu0 0
      %3651 = vmatpush1.bf16.msra.mxu0 %v3629
      %3652 = vmatprep.subr.bf16.mxu0 0
      %3653 = vmatpush1.bf16.msra.mxu0 %v3630
      %3654 = vmatprep.subr.bf16.mxu0 0
      %3655 = vmatpush1.bf16.msra.mxu0 %v3631
      %3656 = vmatprep.subr.bf16.mxu0 0
      %3657 = vmatpush1.bf16.msra.mxu0 0
      %3658 = vmatprep.subr.bf16.mxu0 0
      %3659 = vmatpush1.bf16.msra.mxu0 0
      %3660 = vmatprep.subr.bf16.mxu0 0
      %3661 = vmatpush1.bf16.msra.mxu0 0
      %3662 = vmatprep.subr.bf16.mxu0 0
      %3663 = vmatpush1.bf16.msra.mxu0 0
      %3664 = vmatprep.subr.bf16.mxu0 0
      %3665 = vmatpush1.bf16.msra.mxu0 0
      %3666 = vmatprep.subr.bf16.mxu0 0
      %3667 = vmatpush1.bf16.msra.mxu0 0
      %3668 = vmatprep.subr.bf16.mxu0 0
      %3669 = vmatpush1.bf16.msra.mxu0 0
      %3670 = vmatprep.subr.bf16.mxu0 0
      %3671 = vmatpush1.bf16.msra.mxu0 0
      %3672 = vmatprep.mubr.bf16.mxu0 0
      %3673 = vmatmul.mubr.bf16.gmra.mrb[0].mxu0 %v2995
      %v3674 = vpop.f32.mrb[0].mxu0
      %v3675 = vadd.f32 0.0, %v3674
      %v3676 = vpop.f32.mrb[0].mxu0
      %v3677 = vpop.f32.mrb[0].mxu0
      %v3678 = vadd.f32 0.0, %v3677
      %v3679 = vpop.f32.mrb[0].mxu0
      %3680 = vmatprep.mubr.bf16.mxu0 0
      %3681 = vmatmul.mubr.bf16.gmra.mrb[0].mxu0 %v2998
      %v3682 = vpop.f32.mrb[0].mxu0
      %v3683 = vadd.f32 0.0, %v3682
      %v3684 = vpop.f32.mrb[0].mxu0
      %v3685 = vpop.f32.mrb[0].mxu0
      %v3686 = vadd.f32 0.0, %v3685
      %v3687 = vpop.f32.mrb[0].mxu0
      %3688 = vmatprep.mubr.bf16.mxu0 0
      %3689 = vmatmul.mubr.bf16.gmra.mrb[0].mxu0 %v3001
      %v3690 = vpop.f32.mrb[0].mxu0
      %v3691 = vadd.f32 0.0, %v3690
      %v3692 = vpop.f32.mrb[0].mxu0
      %v3693 = vpop.f32.mrb[0].mxu0
      %v3694 = vadd.f32 0.0, %v3693
      %v3695 = vpop.f32.mrb[0].mxu0
      %3696 = vmatprep.mubr.bf16.mxu0 0
      %3697 = vmatmul.mubr.bf16.gmra.mrb[0].mxu0 %v3004
      %v3698 = vpop.f32.mrb[0].mxu0
      %v3699 = vadd.f32 0.0, %v3698
      %v3700 = vpop.f32.mrb[0].mxu0
      %v3701 = vpop.f32.mrb[0].mxu0
      %v3702 = vadd.f32 0.0, %v3701
      %v3703 = vpop.f32.mrb[0].mxu0
      %3704 = vmatprep.mubr.bf16.mxu0 0
      %3705 = vmatmul.mubr.bf16.gmra.mrb[0].mxu0 %v3007
      %v3706 = vpop.f32.mrb[0].mxu0
      %v3707 = vadd.f32 0.0, %v3706
      %v3708 = vpop.f32.mrb[0].mxu0
      %v3709 = vpop.f32.mrb[0].mxu0
      %v3710 = vadd.f32 0.0, %v3709
      %v3711 = vpop.f32.mrb[0].mxu0
      %3712 = vmatprep.mubr.bf16.mxu0 0
      %3713 = vmatmul.mubr.bf16.gmra.mrb[0].mxu0 %v3010
      %v3714 = vpop.f32.mrb[0].mxu0
      %v3715 = vadd.f32 0.0, %v3714
      %v3716 = vpop.f32.mrb[0].mxu0
      %v3717 = vpop.f32.mrb[0].mxu0
      %v3718 = vadd.f32 0.0, %v3717
      %v3719 = vpop.f32.mrb[0].mxu0
      %3720 = vmatprep.mubr.bf16.mxu0 0
      %3721 = vmatmul.mubr.bf16.gmra.mrb[0].mxu0 %v3013
      %v3722 = vpop.f32.mrb[0].mxu0
      %v3723 = vadd.f32 0.0, %v3722
      %v3724 = vpop.f32.mrb[0].mxu0
      %v3725 = vpop.f32.mrb[0].mxu0
      %v3726 = vadd.f32 0.0, %v3725
      %v3727 = vpop.f32.mrb[0].mxu0
      %3728 = vmatprep.mubr.bf16.mxu0 0
      %3729 = vmatmul.mubr.bf16.gmra.mrb[0].mxu0 %v3573
      %v3730 = vpop.f32.mrb[0].mxu0
      %v3731 = vadd.f32 0.0, %v3730
      %v3732 = vpop.f32.mrb[0].mxu0
      %v3733 = vpop.f32.mrb[0].mxu0
      %v3734 = vadd.f32 0.0, %v3733
      %v3735 = vpop.f32.mrb[0].mxu0
      %3736 = vdwg.mxu0
      %v3737 = vadd.f32 %v3553, %v3675
      %v3738 = vadd.f32 %v3554, %v3678
      %v3739 = vadd.f32 %v3555, %v3683
      %v3740 = vadd.f32 %v3556, %v3686
      %v3741 = vadd.f32 %v3557, %v3691
      %v3742 = vadd.f32 %v3558, %v3694
      %v3743 = vadd.f32 %v3559, %v3699
      %v3744 = vadd.f32 %v3560, %v3702
      %v3745 = vadd.f32 %v3561, %v3707
      %v3746 = vadd.f32 %v3562, %v3710
      %v3747 = vadd.f32 %v3563, %v3715
      %v3748 = vadd.f32 %v3564, %v3718
      %v3749 = vadd.f32 %v3565, %v3723
      %v3750 = vadd.f32 %v3566, %v3726
      %v3751 = vadd.f32 %v3567, %v3731
      %v3752 = vadd.f32 %v3568, %v3734
      %s3753 = scalar_lea.vmem %s4, 384
      %v3754 = vld [vmem:[%s3753] sm:$0xf]
      %v3755 = vld [vmem:[%s3753 + $0x4] sm:$0xf]
      %v3756 = vld [vmem:[%s3753 + $0x8] sm:$0xf]
      %v3757 = vld [vmem:[%s3753 + $0xc] sm:$0xf]
      %v3758 = vld [vmem:[%s3753 + $0x10] sm:$0xf]
      %v3759 = vld [vmem:[%s3753 + $0x14] sm:$0xf]
      %v3760 = vld [vmem:[%s3753 + $0x18] sm:$0xf]
      %v3761 = vld [vmem:[%s3753 + $0x1c] sm:$0xf]
      %v3762 = vld [vmem:[%s3753 + $0x20] sm:$0xf]
      %v3763 = vld [vmem:[%s3753 + $0x24] sm:$0xf]
      %v3764 = vld [vmem:[%s3753 + $0x28] sm:$0xf]
      %v3765 = vld [vmem:[%s3753 + $0x2c] sm:$0xf]
      %v3766 = vld [vmem:[%s3753 + $0x30] sm:$0xf]
      %v3767 = vld [vmem:[%s3753 + $0x34] sm:$0xf]
      %v3768 = vld [vmem:[%s3753 + $0x38] sm:$0xf]
      %v3769 = vld [vmem:[%s3753 + $0x3c] sm:$0xf]
      %v3786 = vunpack.c.l.b16 %v3754
      %v3787 = vunpack.c.l.b16 %v3755
      %v3788 = vunpack.c.l.b16 %v3756
      %v3789 = vunpack.c.l.b16 %v3757
      %v3790 = vunpack.c.l.b16 %v3758
      %v3791 = vunpack.c.l.b16 %v3759
      %v3792 = vunpack.c.l.b16 %v3760
      %v3793 = vunpack.c.l.b16 %v3761
      %v3794 = vunpack.c.l.b16 %v3762
      %v3795 = vunpack.c.l.b16 %v3763
      %v3796 = vunpack.c.l.b16 %v3764
      %v3797 = vunpack.c.l.b16 %v3765
      %v3798 = vunpack.c.l.b16 %v3766
      %v3799 = vunpack.c.l.b16 %v3767
      %v3800 = vunpack.c.l.b16 %v3768
      %v3801 = vunpack.c.l.b16 %v3769
      %v3802 = vpack.c.b16 %v3787, %v3786
      %v3803 = vpack.c.b16 %v3789, %v3788
      %v3804 = vpack.c.b16 %v3791, %v3790
      %v3805 = vpack.c.b16 %v3793, %v3792
      %v3806 = vpack.c.b16 %v3795, %v3794
      %v3807 = vpack.c.b16 %v3797, %v3796
      %v3808 = vpack.c.b16 %v3799, %v3798
      %v3809 = vpack.c.b16 %v3801, %v3800
      %3818 = vmatprep.subr.bf16.mxu0 0
      %3819 = vmatpush1.bf16.msra.mxu0 %v3802
      %3820 = vmatprep.subr.bf16.mxu0 0
      %3821 = vmatpush1.bf16.msra.mxu0 %v3803
      %3822 = vmatprep.subr.bf16.mxu0 0
      %3823 = vmatpush1.bf16.msra.mxu0 %v3804
      %3824 = vmatprep.subr.bf16.mxu0 0
      %3825 = vmatpush1.bf16.msra.mxu0 %v3805
      %3826 = vmatprep.subr.bf16.mxu0 0
      %3827 = vmatpush1.bf16.msra.mxu0 %v3806
      %3828 = vmatprep.subr.bf16.mxu0 0
      %3829 = vmatpush1.bf16.msra.mxu0 %v3807
      %3830 = vmatprep.subr.bf16.mxu0 0
      %3831 = vmatpush1.bf16.msra.mxu0 %v3808
      %3832 = vmatprep.subr.bf16.mxu0 0
      %3833 = vmatpush1.bf16.msra.mxu0 %v3809
      %3834 = vmatprep.subr.bf16.mxu0 0
      %3835 = vmatpush1.bf16.msra.mxu0 0
      %3836 = vmatprep.subr.bf16.mxu0 0
      %3837 = vmatpush1.bf16.msra.mxu0 0
      %3838 = vmatprep.subr.bf16.mxu0 0
      %3839 = vmatpush1.bf16.msra.mxu0 0
      %3840 = vmatprep.subr.bf16.mxu0 0
      %3841 = vmatpush1.bf16.msra.mxu0 0
      %3842 = vmatprep.subr.bf16.mxu0 0
      %3843 = vmatpush1.bf16.msra.mxu0 0
      %3844 = vmatprep.subr.bf16.mxu0 0
      %3845 = vmatpush1.bf16.msra.mxu0 0
      %3846 = vmatprep.subr.bf16.mxu0 0
      %3847 = vmatpush1.bf16.msra.mxu0 0
      %3848 = vmatprep.subr.bf16.mxu0 0
      %3849 = vmatpush1.bf16.msra.mxu0 0
      %3850 = vmatprep.mubr.bf16.mxu0 0
      %3851 = vmatmul.mubr.bf16.gmra.mrb[0].mxu0 %v2529
      %v3852 = vpop.f32.mrb[0].mxu0
      %v3853 = vadd.f32 0.0, %v3852
      %v3854 = vpop.f32.mrb[0].mxu0
      %v3855 = vpop.f32.mrb[0].mxu0
      %v3856 = vadd.f32 0.0, %v3855
      %v3857 = vpop.f32.mrb[0].mxu0
      %3858 = vmatprep.mubr.bf16.mxu0 0
      %3859 = vmatmul.mubr.bf16.gmra.mrb[0].mxu0 %v2531
      %v3860 = vpop.f32.mrb[0].mxu0
      %v3861 = vadd.f32 0.0, %v3860
      %v3862 = vpop.f32.mrb[0].mxu0
      %v3863 = vpop.f32.mrb[0].mxu0
      %v3864 = vadd.f32 0.0, %v3863
      %v3865 = vpop.f32.mrb[0].mxu0
      %3866 = vmatprep.mubr.bf16.mxu0 0
      %3867 = vmatmul.mubr.bf16.gmra.mrb[0].mxu0 %v2533
      %v3868 = vpop.f32.mrb[0].mxu0
      %v3869 = vadd.f32 0.0, %v3868
      %v3870 = vpop.f32.mrb[0].mxu0
      %v3871 = vpop.f32.mrb[0].mxu0
      %v3872 = vadd.f32 0.0, %v3871
      %v3873 = vpop.f32.mrb[0].mxu0
      %3874 = vmatprep.mubr.bf16.mxu0 0
      %3875 = vmatmul.mubr.bf16.gmra.mrb[0].mxu0 %v2535
      %v3876 = vpop.f32.mrb[0].mxu0
      %v3877 = vadd.f32 0.0, %v3876
      %v3878 = vpop.f32.mrb[0].mxu0
      %v3879 = vpop.f32.mrb[0].mxu0
      %v3880 = vadd.f32 0.0, %v3879
      %v3881 = vpop.f32.mrb[0].mxu0
      %3882 = vmatprep.mubr.bf16.mxu0 0
      %3883 = vmatmul.mubr.bf16.gmra.mrb[0].mxu0 %v2537
      %v3884 = vpop.f32.mrb[0].mxu0
      %v3885 = vadd.f32 0.0, %v3884
      %v3886 = vpop.f32.mrb[0].mxu0
      %v3887 = vpop.f32.mrb[0].mxu0
      %v3888 = vadd.f32 0.0, %v3887
      %v3889 = vpop.f32.mrb[0].mxu0
      %3890 = vmatprep.mubr.bf16.mxu0 0
      %3891 = vmatmul.mubr.bf16.gmra.mrb[0].mxu0 %v2539
      %v3892 = vpop.f32.mrb[0].mxu0
      %v3893 = vadd.f32 0.0, %v3892
      %v3894 = vpop.f32.mrb[0].mxu0
      %v3895 = vpop.f32.mrb[0].mxu0
      %v3896 = vadd.f32 0.0, %v3895
      %v3897 = vpop.f32.mrb[0].mxu0
      %3898 = vmatprep.mubr.bf16.mxu0 0
      %3899 = vmatmul.mubr.bf16.gmra.mrb[0].mxu0 %v2541
      %v3900 = vpop.f32.mrb[0].mxu0
      %v3901 = vadd.f32 0.0, %v3900
      %v3902 = vpop.f32.mrb[0].mxu0
      %v3903 = vpop.f32.mrb[0].mxu0
      %v3904 = vadd.f32 0.0, %v3903
      %v3905 = vpop.f32.mrb[0].mxu0
      %3906 = vmatprep.mubr.bf16.mxu0 0
      %3907 = vmatmul.mubr.bf16.gmra.mrb[0].mxu0 %v2543
      %v3908 = vpop.f32.mrb[0].mxu0
      %v3909 = vadd.f32 0.0, %v3908
      %v3910 = vpop.f32.mrb[0].mxu0
      %v3911 = vpop.f32.mrb[0].mxu0
      %v3912 = vadd.f32 0.0, %v3911
      %v3913 = vpop.f32.mrb[0].mxu0
      %3914 = vdwg.mxu0
      %v3915 = vadd.f32 %v3737, %v3853
      %v3916 = vadd.f32 %v3738, %v3856
      %v3917 = vadd.f32 %v3739, %v3861
      %v3918 = vadd.f32 %v3740, %v3864
      %v3919 = vadd.f32 %v3741, %v3869
      %v3920 = vadd.f32 %v3742, %v3872
      %v3921 = vadd.f32 %v3743, %v3877
      %v3922 = vadd.f32 %v3744, %v3880
      %v3923 = vadd.f32 %v3745, %v3885
      %v3924 = vadd.f32 %v3746, %v3888
      %v3925 = vadd.f32 %v3747, %v3893
      %v3926 = vadd.f32 %v3748, %v3896
      %v3927 = vadd.f32 %v3749, %v3901
      %v3928 = vadd.f32 %v3750, %v3904
      %v3929 = vadd.f32 %v3751, %v3909
      %v3930 = vadd.f32 %v3752, %v3912
      %v3932 = vshrl.u32 %v2543, 16
      %v3934 = vshll.u32 %v2543, 16
      %v3936 = vrot.slane %v3934, 1
      %v3937 = vor.u32 %v3932, %v3936
      %v3939 = vshll.u32 %v2544, 16
      %v3941 = vrot.slane %v3939, 1
      %v3942 = vsel %vm2561, %v3937, %v3941
      %s3944 = scalar_lea.vmem %s4, 448
      %v3945 = vld [vmem:[%s3944] sm:$0xf]
      %v3946 = vld [vmem:[%s3944 + $0x4] sm:$0xf]
      %v3947 = vld [vmem:[%s3944 + $0x8] sm:$0xf]
      %v3948 = vld [vmem:[%s3944 + $0xc] sm:$0xf]
      %v3949 = vld [vmem:[%s3944 + $0x10] sm:$0xf]
      %v3950 = vld [vmem:[%s3944 + $0x14] sm:$0xf]
      %v3951 = vld [vmem:[%s3944 + $0x18] sm:$0xf]
      %v3952 = vld [vmem:[%s3944 + $0x1c] sm:$0xf]
      %v3953 = vld [vmem:[%s3944 + $0x20] sm:$0xf]
      %v3954 = vld [vmem:[%s3944 + $0x24] sm:$0xf]
      %v3955 = vld [vmem:[%s3944 + $0x28] sm:$0xf]
      %v3956 = vld [vmem:[%s3944 + $0x2c] sm:$0xf]
      %v3957 = vld [vmem:[%s3944 + $0x30] sm:$0xf]
      %v3958 = vld [vmem:[%s3944 + $0x34] sm:$0xf]
      %v3959 = vld [vmem:[%s3944 + $0x38] sm:$0xf]
      %v3960 = vld [vmem:[%s3944 + $0x3c] sm:$0xf]
      %v3977 = vunpack.c.l.b16 %v3945
      %v3978 = vunpack.c.l.b16 %v3946
      %v3979 = vunpack.c.l.b16 %v3947
      %v3980 = vunpack.c.l.b16 %v3948
      %v3981 = vunpack.c.l.b16 %v3949
      %v3982 = vunpack.c.l.b16 %v3950
      %v3983 = vunpack.c.l.b16 %v3951
      %v3984 = vunpack.c.l.b16 %v3952
      %v3985 = vunpack.c.l.b16 %v3953
      %v3986 = vunpack.c.l.b16 %v3954
      %v3987 = vunpack.c.l.b16 %v3955
      %v3988 = vunpack.c.l.b16 %v3956
      %v3989 = vunpack.c.l.b16 %v3957
      %v3990 = vunpack.c.l.b16 %v3958
      %v3991 = vunpack.c.l.b16 %v3959
      %v3992 = vunpack.c.l.b16 %v3960
      %v3993 = vpack.c.b16 %v3978, %v3977
      %v3994 = vpack.c.b16 %v3980, %v3979
      %v3995 = vpack.c.b16 %v3982, %v3981
      %v3996 = vpack.c.b16 %v3984, %v3983
      %v3997 = vpack.c.b16 %v3986, %v3985
      %v3998 = vpack.c.b16 %v3988, %v3987
      %v3999 = vpack.c.b16 %v3990, %v3989
      %v4000 = vpack.c.b16 %v3992, %v3991
      %4009 = vmatprep.subr.bf16.mxu0 0
      %4010 = vmatpush1.bf16.msra.mxu0 %v3993
      %4011 = vmatprep.subr.bf16.mxu0 0
      %4012 = vmatpush1.bf16.msra.mxu0 %v3994
      %4013 = vmatprep.subr.bf16.mxu0 0
      %4014 = vmatpush1.bf16.msra.mxu0 %v3995
      %4015 = vmatprep.subr.bf16.mxu0 0
      %4016 = vmatpush1.bf16.msra.mxu0 %v3996
      %4017 = vmatprep.subr.bf16.mxu0 0
      %4018 = vmatpush1.bf16.msra.mxu0 %v3997
      %4019 = vmatprep.subr.bf16.mxu0 0
      %4020 = vmatpush1.bf16.msra.mxu0 %v3998
      %4021 = vmatprep.subr.bf16.mxu0 0
      %4022 = vmatpush1.bf16.msra.mxu0 %v3999
      %4023 = vmatprep.subr.bf16.mxu0 0
      %4024 = vmatpush1.bf16.msra.mxu0 %v4000
      %4025 = vmatprep.subr.bf16.mxu0 0
      %4026 = vmatpush1.bf16.msra.mxu0 0
      %4027 = vmatprep.subr.bf16.mxu0 0
      %4028 = vmatpush1.bf16.msra.mxu0 0
      %4029 = vmatprep.subr.bf16.mxu0 0
      %4030 = vmatpush1.bf16.msra.mxu0 0
      %4031 = vmatprep.subr.bf16.mxu0 0
      %4032 = vmatpush1.bf16.msra.mxu0 0
      %4033 = vmatprep.subr.bf16.mxu0 0
      %4034 = vmatpush1.bf16.msra.mxu0 0
      %4035 = vmatprep.subr.bf16.mxu0 0
      %4036 = vmatpush1.bf16.msra.mxu0 0
      %4037 = vmatprep.subr.bf16.mxu0 0
      %4038 = vmatpush1.bf16.msra.mxu0 0
      %4039 = vmatprep.subr.bf16.mxu0 0
      %4040 = vmatpush1.bf16.msra.mxu0 0
      %4041 = vmatprep.mubr.bf16.mxu0 0
      %4042 = vmatmul.mubr.bf16.gmra.mrb[0].mxu0 %v2597
      %v4043 = vpop.f32.mrb[0].mxu0
      %v4044 = vadd.f32 0.0, %v4043
      %v4045 = vpop.f32.mrb[0].mxu0
      %v4046 = vpop.f32.mrb[0].mxu0
      %v4047 = vadd.f32 0.0, %v4046
      %v4048 = vpop.f32.mrb[0].mxu0
      %4049 = vmatprep.mubr.bf16.mxu0 0
      %4050 = vmatmul.mubr.bf16.gmra.mrb[0].mxu0 %v2609
      %v4051 = vpop.f32.mrb[0].mxu0
      %v4052 = vadd.f32 0.0, %v4051
      %v4053 = vpop.f32.mrb[0].mxu0
      %v4054 = vpop.f32.mrb[0].mxu0
      %v4055 = vadd.f32 0.0, %v4054
      %v4056 = vpop.f32.mrb[0].mxu0
      %4057 = vmatprep.mubr.bf16.mxu0 0
      %4058 = vmatmul.mubr.bf16.gmra.mrb[0].mxu0 %v2621
      %v4059 = vpop.f32.mrb[0].mxu0
      %v4060 = vadd.f32 0.0, %v4059
      %v4061 = vpop.f32.mrb[0].mxu0
      %v4062 = vpop.f32.mrb[0].mxu0
      %v4063 = vadd.f32 0.0, %v4062
      %v4064 = vpop.f32.mrb[0].mxu0
      %4065 = vmatprep.mubr.bf16.mxu0 0
      %4066 = vmatmul.mubr.bf16.gmra.mrb[0].mxu0 %v2633
      %v4067 = vpop.f32.mrb[0].mxu0
      %v4068 = vadd.f32 0.0, %v4067
      %v4069 = vpop.f32.mrb[0].mxu0
      %v4070 = vpop.f32.mrb[0].mxu0
      %v4071 = vadd.f32 0.0, %v4070
      %v4072 = vpop.f32.mrb[0].mxu0
      %4073 = vmatprep.mubr.bf16.mxu0 0
      %4074 = vmatmul.mubr.bf16.gmra.mrb[0].mxu0 %v2645
      %v4075 = vpop.f32.mrb[0].mxu0
      %v4076 = vadd.f32 0.0, %v4075
      %v4077 = vpop.f32.mrb[0].mxu0
      %v4078 = vpop.f32.mrb[0].mxu0
      %v4079 = vadd.f32 0.0, %v4078
      %v4080 = vpop.f32.mrb[0].mxu0
      %4081 = vmatprep.mubr.bf16.mxu0 0
      %4082 = vmatmul.mubr.bf16.gmra.mrb[0].mxu0 %v2657
      %v4083 = vpop.f32.mrb[0].mxu0
      %v4084 = vadd.f32 0.0, %v4083
      %v4085 = vpop.f32.mrb[0].mxu0
      %v4086 = vpop.f32.mrb[0].mxu0
      %v4087 = vadd.f32 0.0, %v4086
      %v4088 = vpop.f32.mrb[0].mxu0
      %4089 = vmatprep.mubr.bf16.mxu0 0
      %4090 = vmatmul.mubr.bf16.gmra.mrb[0].mxu0 %v3389
      %v4091 = vpop.f32.mrb[0].mxu0
      %v4092 = vadd.f32 0.0, %v4091
      %v4093 = vpop.f32.mrb[0].mxu0
      %v4094 = vpop.f32.mrb[0].mxu0
      %v4095 = vadd.f32 0.0, %v4094
      %v4096 = vpop.f32.mrb[0].mxu0
      %4097 = vmatprep.mubr.bf16.mxu0 0
      %4098 = vmatmul.mubr.bf16.gmra.mrb[0].mxu0 %v3942
      %v4099 = vpop.f32.mrb[0].mxu0
      %v4100 = vadd.f32 0.0, %v4099
      %v4101 = vpop.f32.mrb[0].mxu0
      %v4102 = vpop.f32.mrb[0].mxu0
      %v4103 = vadd.f32 0.0, %v4102
      %v4104 = vpop.f32.mrb[0].mxu0
      %4105 = vdwg.mxu0
      %v4106 = vadd.f32 %v3915, %v4044
      %v4107 = vadd.f32 %v3916, %v4047
      %v4108 = vadd.f32 %v3917, %v4052
      %v4109 = vadd.f32 %v3918, %v4055
      %v4110 = vadd.f32 %v3919, %v4060
      %v4111 = vadd.f32 %v3920, %v4063
      %v4112 = vadd.f32 %v3921, %v4068
      %v4113 = vadd.f32 %v3922, %v4071
      %v4114 = vadd.f32 %v3923, %v4076
      %v4115 = vadd.f32 %v3924, %v4079
      %v4116 = vadd.f32 %v3925, %v4084
      %v4117 = vadd.f32 %v3926, %v4087
      %v4118 = vadd.f32 %v3927, %v4092
      %v4119 = vadd.f32 %v3928, %v4095
      %v4120 = vadd.f32 %v3929, %v4100
      %v4121 = vadd.f32 %v3930, %v4103
      %v4124 = vrot.slane %v2543, 1
      %v4125 = vrot.slane %v2544, 1
      %v4126 = vsel %vm2989, %v4124, %v4125
      %s4128 = scalar_lea.vmem %s4, 512
      %v4129 = vld [vmem:[%s4128] sm:$0xf]
      %v4130 = vld [vmem:[%s4128 + $0x4] sm:$0xf]
      %v4131 = vld [vmem:[%s4128 + $0x8] sm:$0xf]
      %v4132 = vld [vmem:[%s4128 + $0xc] sm:$0xf]
      %v4133 = vld [vmem:[%s4128 + $0x10] sm:$0xf]
      %v4134 = vld [vmem:[%s4128 + $0x14] sm:$0xf]
      %v4135 = vld [vmem:[%s4128 + $0x18] sm:$0xf]
      %v4136 = vld [vmem:[%s4128 + $0x1c] sm:$0xf]
      %v4137 = vld [vmem:[%s4128 + $0x20] sm:$0xf]
      %v4138 = vld [vmem:[%s4128 + $0x24] sm:$0xf]
      %v4139 = vld [vmem:[%s4128 + $0x28] sm:$0xf]
      %v4140 = vld [vmem:[%s4128 + $0x2c] sm:$0xf]
      %v4141 = vld [vmem:[%s4128 + $0x30] sm:$0xf]
      %v4142 = vld [vmem:[%s4128 + $0x34] sm:$0xf]
      %v4143 = vld [vmem:[%s4128 + $0x38] sm:$0xf]
      %v4144 = vld [vmem:[%s4128 + $0x3c] sm:$0xf]
      %v4161 = vunpack.c.l.b16 %v4129
      %v4162 = vunpack.c.l.b16 %v4130
      %v4163 = vunpack.c.l.b16 %v4131
      %v4164 = vunpack.c.l.b16 %v4132
      %v4165 = vunpack.c.l.b16 %v4133
      %v4166 = vunpack.c.l.b16 %v4134
      %v4167 = vunpack.c.l.b16 %v4135
      %v4168 = vunpack.c.l.b16 %v4136
      %v4169 = vunpack.c.l.b16 %v4137
      %v4170 = vunpack.c.l.b16 %v4138
      %v4171 = vunpack.c.l.b16 %v4139
      %v4172 = vunpack.c.l.b16 %v4140
      %v4173 = vunpack.c.l.b16 %v4141
      %v4174 = vunpack.c.l.b16 %v4142
      %v4175 = vunpack.c.l.b16 %v4143
      %v4176 = vunpack.c.l.b16 %v4144
      %v4177 = vpack.c.b16 %v4162, %v4161
      %v4178 = vpack.c.b16 %v4164, %v4163
      %v4179 = vpack.c.b16 %v4166, %v4165
      %v4180 = vpack.c.b16 %v4168, %v4167
      %v4181 = vpack.c.b16 %v4170, %v4169
      %v4182 = vpack.c.b16 %v4172, %v4171
      %v4183 = vpack.c.b16 %v4174, %v4173
      %v4184 = vpack.c.b16 %v4176, %v4175
      %4193 = vmatprep.subr.bf16.mxu0 0
      %4194 = vmatpush1.bf16.msra.mxu0 %v4177
      %4195 = vmatprep.subr.bf16.mxu0 0
      %4196 = vmatpush1.bf16.msra.mxu0 %v4178
      %4197 = vmatprep.subr.bf16.mxu0 0
      %4198 = vmatpush1.bf16.msra.mxu0 %v4179
      %4199 = vmatprep.subr.bf16.mxu0 0
      %4200 = vmatpush1.bf16.msra.mxu0 %v4180
      %4201 = vmatprep.subr.bf16.mxu0 0
      %4202 = vmatpush1.bf16.msra.mxu0 %v4181
      %4203 = vmatprep.subr.bf16.mxu0 0
      %4204 = vmatpush1.bf16.msra.mxu0 %v4182
      %4205 = vmatprep.subr.bf16.mxu0 0
      %4206 = vmatpush1.bf16.msra.mxu0 %v4183
      %4207 = vmatprep.subr.bf16.mxu0 0
      %4208 = vmatpush1.bf16.msra.mxu0 %v4184
      %4209 = vmatprep.subr.bf16.mxu0 0
      %4210 = vmatpush1.bf16.msra.mxu0 0
      %4211 = vmatprep.subr.bf16.mxu0 0
      %4212 = vmatpush1.bf16.msra.mxu0 0
      %4213 = vmatprep.subr.bf16.mxu0 0
      %4214 = vmatpush1.bf16.msra.mxu0 0
      %4215 = vmatprep.subr.bf16.mxu0 0
      %4216 = vmatpush1.bf16.msra.mxu0 0
      %4217 = vmatprep.subr.bf16.mxu0 0
      %4218 = vmatpush1.bf16.msra.mxu0 0
      %4219 = vmatprep.subr.bf16.mxu0 0
      %4220 = vmatpush1.bf16.msra.mxu0 0
      %4221 = vmatprep.subr.bf16.mxu0 0
      %4222 = vmatpush1.bf16.msra.mxu0 0
      %4223 = vmatprep.subr.bf16.mxu0 0
      %4224 = vmatpush1.bf16.msra.mxu0 0
      %4225 = vmatprep.mubr.bf16.mxu0 0
      %4226 = vmatmul.mubr.bf16.gmra.mrb[0].mxu0 %v2998
      %v4227 = vpop.f32.mrb[0].mxu0
      %v4228 = vadd.f32 0.0, %v4227
      %v4229 = vpop.f32.mrb[0].mxu0
      %v4230 = vpop.f32.mrb[0].mxu0
      %v4231 = vadd.f32 0.0, %v4230
      %v4232 = vpop.f32.mrb[0].mxu0
      %4233 = vmatprep.mubr.bf16.mxu0 0
      %4234 = vmatmul.mubr.bf16.gmra.mrb[0].mxu0 %v3001
      %v4235 = vpop.f32.mrb[0].mxu0
      %v4236 = vadd.f32 0.0, %v4235
      %v4237 = vpop.f32.mrb[0].mxu0
      %v4238 = vpop.f32.mrb[0].mxu0
      %v4239 = vadd.f32 0.0, %v4238
      %v4240 = vpop.f32.mrb[0].mxu0
      %4241 = vmatprep.mubr.bf16.mxu0 0
      %4242 = vmatmul.mubr.bf16.gmra.mrb[0].mxu0 %v3004
      %v4243 = vpop.f32.mrb[0].mxu0
      %v4244 = vadd.f32 0.0, %v4243
      %v4245 = vpop.f32.mrb[0].mxu0
      %v4246 = vpop.f32.mrb[0].mxu0
      %v4247 = vadd.f32 0.0, %v4246
      %v4248 = vpop.f32.mrb[0].mxu0
      %4249 = vmatprep.mubr.bf16.mxu0 0
      %4250 = vmatmul.mubr.bf16.gmra.mrb[0].mxu0 %v3007
      %v4251 = vpop.f32.mrb[0].mxu0
      %v4252 = vadd.f32 0.0, %v4251
      %v4253 = vpop.f32.mrb[0].mxu0
      %v4254 = vpop.f32.mrb[0].mxu0
      %v4255 = vadd.f32 0.0, %v4254
      %v4256 = vpop.f32.mrb[0].mxu0
      %4257 = vmatprep.mubr.bf16.mxu0 0
      %4258 = vmatmul.mubr.bf16.gmra.mrb[0].mxu0 %v3010
      %v4259 = vpop.f32.mrb[0].mxu0
      %v4260 = vadd.f32 0.0, %v4259
      %v4261 = vpop.f32.mrb[0].mxu0
      %v4262 = vpop.f32.mrb[0].mxu0
      %v4263 = vadd.f32 0.0, %v4262
      %v4264 = vpop.f32.mrb[0].mxu0
      %4265 = vmatprep.mubr.bf16.mxu0 0
      %4266 = vmatmul.mubr.bf16.gmra.mrb[0].mxu0 %v3013
      %v4267 = vpop.f32.mrb[0].mxu0
      %v4268 = vadd.f32 0.0, %v4267
      %v4269 = vpop.f32.mrb[0].mxu0
      %v4270 = vpop.f32.mrb[0].mxu0
      %v4271 = vadd.f32 0.0, %v4270
      %v4272 = vpop.f32.mrb[0].mxu0
      %4273 = vmatprep.mubr.bf16.mxu0 0
      %4274 = vmatmul.mubr.bf16.gmra.mrb[0].mxu0 %v3573
      %v4275 = vpop.f32.mrb[0].mxu0
      %v4276 = vadd.f32 0.0, %v4275
      %v4277 = vpop.f32.mrb[0].mxu0
      %v4278 = vpop.f32.mrb[0].mxu0
      %v4279 = vadd.f32 0.0, %v4278
      %v4280 = vpop.f32.mrb[0].mxu0
      %4281 = vmatprep.mubr.bf16.mxu0 0
      %4282 = vmatmul.mubr.bf16.gmra.mrb[0].mxu0 %v4126
      %v4283 = vpop.f32.mrb[0].mxu0
      %v4284 = vadd.f32 0.0, %v4283
      %v4285 = vpop.f32.mrb[0].mxu0
      %v4286 = vpop.f32.mrb[0].mxu0
      %v4287 = vadd.f32 0.0, %v4286
      %v4288 = vpop.f32.mrb[0].mxu0
      %4289 = vdwg.mxu0
      %v4290 = vadd.f32 %v4106, %v4228
      %v4291 = vadd.f32 %v4107, %v4231
      %v4292 = vadd.f32 %v4108, %v4236
      %v4293 = vadd.f32 %v4109, %v4239
      %v4294 = vadd.f32 %v4110, %v4244
      %v4295 = vadd.f32 %v4111, %v4247
      %v4296 = vadd.f32 %v4112, %v4252
      %v4297 = vadd.f32 %v4113, %v4255
      %v4298 = vadd.f32 %v4114, %v4260
      %v4299 = vadd.f32 %v4115, %v4263
      %v4300 = vadd.f32 %v4116, %v4268
      %v4301 = vadd.f32 %v4117, %v4271
      %v4302 = vadd.f32 %v4118, %v4276
      %v4303 = vadd.f32 %v4119, %v4279
      %v4304 = vadd.f32 %v4120, %v4284
      %v4305 = vadd.f32 %v4121, %v4287
      %v4306 = vld [vmem:[%s5] sm:$0x1]
      %v4308 = vlaneseq
      %v4309 = vshrl.u32 %v4308, 7
      %v4310 = vsub.s32 0, %v4309
      %v4311 = vrot.slane %v4306, %v4310
      %v4313 = vmul.f32 %v4290, %v4311
      %v4314 = vmul.f32 %v4291, %v4311
      %v4315 = vmul.f32 %v4292, %v4311
      %v4316 = vmul.f32 %v4293, %v4311
      %v4317 = vmul.f32 %v4294, %v4311
      %v4318 = vmul.f32 %v4295, %v4311
      %v4319 = vmul.f32 %v4296, %v4311
      %v4320 = vmul.f32 %v4297, %v4311
      %v4321 = vmul.f32 %v4298, %v4311
      %v4322 = vmul.f32 %v4299, %v4311
      %v4323 = vmul.f32 %v4300, %v4311
      %v4324 = vmul.f32 %v4301, %v4311
      %v4325 = vmul.f32 %v4302, %v4311
      %v4326 = vmul.f32 %v4303, %v4311
      %v4327 = vmul.f32 %v4304, %v4311
      %v4328 = vmul.f32 %v4305, %v4311
      %v4329 = vld [vmem:[%s6] sm:$0x1]
      %v4331 = vlaneseq
      %v4332 = vshrl.u32 %v4331, 7
      %v4333 = vsub.s32 0, %v4332
      %v4334 = vrot.slane %v4329, %v4333
      %v4336 = vadd.f32 %v4313, %v4334
      %v4337 = vadd.f32 %v4314, %v4334
      %v4338 = vadd.f32 %v4315, %v4334
      %v4339 = vadd.f32 %v4316, %v4334
      %v4340 = vadd.f32 %v4317, %v4334
      %v4341 = vadd.f32 %v4318, %v4334
      %v4342 = vadd.f32 %v4319, %v4334
      %v4343 = vadd.f32 %v4320, %v4334
      %v4344 = vadd.f32 %v4321, %v4334
      %v4345 = vadd.f32 %v4322, %v4334
      %v4346 = vadd.f32 %v4323, %v4334
      %v4347 = vadd.f32 %v4324, %v4334
      %v4348 = vadd.f32 %v4325, %v4334
      %v4349 = vadd.f32 %v4326, %v4334
      %v4350 = vadd.f32 %v4327, %v4334
      %v4351 = vadd.f32 %v4328, %v4334
      %v4352 = vmax.f32 %v4336, 0.0
      %v4353 = vmax.f32 %v4337, 0.0
      %v4354 = vmax.f32 %v4338, 0.0
      %v4355 = vmax.f32 %v4339, 0.0
      %v4356 = vmax.f32 %v4340, 0.0
      %v4357 = vmax.f32 %v4341, 0.0
      %v4358 = vmax.f32 %v4342, 0.0
      %v4359 = vmax.f32 %v4343, 0.0
      %v4360 = vmax.f32 %v4344, 0.0
      %v4361 = vmax.f32 %v4345, 0.0
      %v4362 = vmax.f32 %v4346, 0.0
      %v4363 = vmax.f32 %v4347, 0.0
      %v4364 = vmax.f32 %v4348, 0.0
      %v4365 = vmax.f32 %v4349, 0.0
      %v4366 = vmax.f32 %v4350, 0.0
      %v4367 = vmax.f32 %v4351, 0.0
      %v4368 = vpack.c.bf16 %v4353, %v4352
      %v4369 = vpack.c.bf16 %v4355, %v4354
      %v4370 = vpack.c.bf16 %v4357, %v4356
      %v4371 = vpack.c.bf16 %v4359, %v4358
      %v4372 = vpack.c.bf16 %v4361, %v4360
      %v4373 = vpack.c.bf16 %v4363, %v4362
      %v4374 = vpack.c.bf16 %v4365, %v4364
      %v4375 = vpack.c.bf16 %v4367, %v4366
      %v4376 = vld [vmem:[%s7] sm:$0xf]
      %v4377 = vld [vmem:[%s7 + $0x4] sm:$0xf]
      %v4378 = vld [vmem:[%s7 + $0x8] sm:$0xf]
      %v4379 = vld [vmem:[%s7 + $0xc] sm:$0xf]
      %v4380 = vld [vmem:[%s7 + $0x10] sm:$0xf]
      %v4381 = vld [vmem:[%s7 + $0x14] sm:$0xf]
      %v4382 = vld [vmem:[%s7 + $0x18] sm:$0xf]
      %v4383 = vld [vmem:[%s7 + $0x1c] sm:$0xf]
      %v4384 = vld [vmem:[%s7 + $0x20] sm:$0xf]
      %v4385 = vld [vmem:[%s7 + $0x24] sm:$0xf]
      %v4386 = vld [vmem:[%s7 + $0x28] sm:$0xf]
      %v4387 = vld [vmem:[%s7 + $0x2c] sm:$0xf]
      %v4388 = vld [vmem:[%s7 + $0x30] sm:$0xf]
      %v4389 = vld [vmem:[%s7 + $0x34] sm:$0xf]
      %v4390 = vld [vmem:[%s7 + $0x38] sm:$0xf]
      %v4391 = vld [vmem:[%s7 + $0x3c] sm:$0xf]
      %v4408 = vunpack.c.l.b16 %v4376
      %v4409 = vunpack.c.l.b16 %v4377
      %v4410 = vunpack.c.l.b16 %v4378
      %v4411 = vunpack.c.l.b16 %v4379
      %v4412 = vunpack.c.l.b16 %v4380
      %v4413 = vunpack.c.l.b16 %v4381
      %v4414 = vunpack.c.l.b16 %v4382
      %v4415 = vunpack.c.l.b16 %v4383
      %v4416 = vunpack.c.l.b16 %v4384
      %v4417 = vunpack.c.l.b16 %v4385
      %v4418 = vunpack.c.l.b16 %v4386
      %v4419 = vunpack.c.l.b16 %v4387
      %v4420 = vunpack.c.l.b16 %v4388
      %v4421 = vunpack.c.l.b16 %v4389
      %v4422 = vunpack.c.l.b16 %v4390
      %v4423 = vunpack.c.l.b16 %v4391
      %v4424 = vpack.c.b16 %v4409, %v4408
      %v4425 = vpack.c.b16 %v4411, %v4410
      %v4426 = vpack.c.b16 %v4413, %v4412
      %v4427 = vpack.c.b16 %v4415, %v4414
      %v4428 = vpack.c.b16 %v4417, %v4416
      %v4429 = vpack.c.b16 %v4419, %v4418
      %v4430 = vpack.c.b16 %v4421, %v4420
      %v4431 = vpack.c.b16 %v4423, %v4422
      %4440 = vmatprep.subr.bf16.mxu0 0
      %4441 = vmatpush1.bf16.msra.mxu0 %v4424
      %4442 = vmatprep.subr.bf16.mxu0 0
      %4443 = vmatpush1.bf16.msra.mxu0 %v4425
      %4444 = vmatprep.subr.bf16.mxu0 0
      %4445 = vmatpush1.bf16.msra.mxu0 %v4426
      %4446 = vmatprep.subr.bf16.mxu0 0
      %4447 = vmatpush1.bf16.msra.mxu0 %v4427
      %4448 = vmatprep.subr.bf16.mxu0 0
      %4449 = vmatpush1.bf16.msra.mxu0 %v4428
      %4450 = vmatprep.subr.bf16.mxu0 0
      %4451 = vmatpush1.bf16.msra.mxu0 %v4429
      %4452 = vmatprep.subr.bf16.mxu0 0
      %4453 = vmatpush1.bf16.msra.mxu0 %v4430
      %4454 = vmatprep.subr.bf16.mxu0 0
      %4455 = vmatpush1.bf16.msra.mxu0 %v4431
      %4456 = vmatprep.subr.bf16.mxu0 0
      %4457 = vmatpush1.bf16.msra.mxu0 0
      %4458 = vmatprep.subr.bf16.mxu0 0
      %4459 = vmatpush1.bf16.msra.mxu0 0
      %4460 = vmatprep.subr.bf16.mxu0 0
      %4461 = vmatpush1.bf16.msra.mxu0 0
      %4462 = vmatprep.subr.bf16.mxu0 0
      %4463 = vmatpush1.bf16.msra.mxu0 0
      %4464 = vmatprep.subr.bf16.mxu0 0
      %4465 = vmatpush1.bf16.msra.mxu0 0
      %4466 = vmatprep.subr.bf16.mxu0 0
      %4467 = vmatpush1.bf16.msra.mxu0 0
      %4468 = vmatprep.subr.bf16.mxu0 0
      %4469 = vmatpush1.bf16.msra.mxu0 0
      %4470 = vmatprep.subr.bf16.mxu0 0
      %4471 = vmatpush1.bf16.msra.mxu0 0
      %4472 = vmatprep.mubr.bf16.mxu0 0
      %4473 = vmatmul.mubr.bf16.gmra.mrb[0].mxu0 %v4368
      %v4474 = vpop.f32.mrb[0].mxu0
      %v4475 = vadd.f32 0.0, %v4474
      %v4476 = vpop.f32.mrb[0].mxu0
      %v4477 = vpop.f32.mrb[0].mxu0
      %v4478 = vadd.f32 0.0, %v4477
      %v4479 = vpop.f32.mrb[0].mxu0
      %4480 = vmatprep.mubr.bf16.mxu0 0
      %4481 = vmatmul.mubr.bf16.gmra.mrb[0].mxu0 %v4369
      %v4482 = vpop.f32.mrb[0].mxu0
      %v4483 = vadd.f32 0.0, %v4482
      %v4484 = vpop.f32.mrb[0].mxu0
      %v4485 = vpop.f32.mrb[0].mxu0
      %v4486 = vadd.f32 0.0, %v4485
      %v4487 = vpop.f32.mrb[0].mxu0
      %4488 = vmatprep.mubr.bf16.mxu0 0
      %4489 = vmatmul.mubr.bf16.gmra.mrb[0].mxu0 %v4370
      %v4490 = vpop.f32.mrb[0].mxu0
      %v4491 = vadd.f32 0.0, %v4490
      %v4492 = vpop.f32.mrb[0].mxu0
      %v4493 = vpop.f32.mrb[0].mxu0
      %v4494 = vadd.f32 0.0, %v4493
      %v4495 = vpop.f32.mrb[0].mxu0
      %4496 = vmatprep.mubr.bf16.mxu0 0
      %4497 = vmatmul.mubr.bf16.gmra.mrb[0].mxu0 %v4371
      %v4498 = vpop.f32.mrb[0].mxu0
      %v4499 = vadd.f32 0.0, %v4498
      %v4500 = vpop.f32.mrb[0].mxu0
      %v4501 = vpop.f32.mrb[0].mxu0
      %v4502 = vadd.f32 0.0, %v4501
      %v4503 = vpop.f32.mrb[0].mxu0
      %4504 = vmatprep.mubr.bf16.mxu0 0
      %4505 = vmatmul.mubr.bf16.gmra.mrb[0].mxu0 %v4372
      %v4506 = vpop.f32.mrb[0].mxu0
      %v4507 = vadd.f32 0.0, %v4506
      %v4508 = vpop.f32.mrb[0].mxu0
      %v4509 = vpop.f32.mrb[0].mxu0
      %v4510 = vadd.f32 0.0, %v4509
      %v4511 = vpop.f32.mrb[0].mxu0
      %4512 = vmatprep.mubr.bf16.mxu0 0
      %4513 = vmatmul.mubr.bf16.gmra.mrb[0].mxu0 %v4373
      %v4514 = vpop.f32.mrb[0].mxu0
      %v4515 = vadd.f32 0.0, %v4514
      %v4516 = vpop.f32.mrb[0].mxu0
      %v4517 = vpop.f32.mrb[0].mxu0
      %v4518 = vadd.f32 0.0, %v4517
      %v4519 = vpop.f32.mrb[0].mxu0
      %4520 = vmatprep.mubr.bf16.mxu0 0
      %4521 = vmatmul.mubr.bf16.gmra.mrb[0].mxu0 %v4374
      %v4522 = vpop.f32.mrb[0].mxu0
      %v4523 = vadd.f32 0.0, %v4522
      %v4524 = vpop.f32.mrb[0].mxu0
      %v4525 = vpop.f32.mrb[0].mxu0
      %v4526 = vadd.f32 0.0, %v4525
      %v4527 = vpop.f32.mrb[0].mxu0
      %4528 = vmatprep.mubr.bf16.mxu0 0
      %4529 = vmatmul.mubr.bf16.gmra.mrb[0].mxu0 %v4375
      %v4530 = vpop.f32.mrb[0].mxu0
      %v4531 = vadd.f32 0.0, %v4530
      %v4532 = vpop.f32.mrb[0].mxu0
      %v4533 = vpop.f32.mrb[0].mxu0
      %v4534 = vadd.f32 0.0, %v4533
      %v4535 = vpop.f32.mrb[0].mxu0
      %4536 = vdwg.mxu0
      %v4537 = vld [vmem:[%s8] sm:$0x1]
      %v4539 = vlaneseq
      %v4540 = vshrl.u32 %v4539, 7
      %v4541 = vsub.s32 0, %v4540
      %v4542 = vrot.slane %v4537, %v4541
      %v4544 = vmul.f32 %v4475, %v4542
      %v4545 = vmul.f32 %v4478, %v4542
      %v4546 = vmul.f32 %v4483, %v4542
      %v4547 = vmul.f32 %v4486, %v4542
      %v4548 = vmul.f32 %v4491, %v4542
      %v4549 = vmul.f32 %v4494, %v4542
      %v4550 = vmul.f32 %v4499, %v4542
      %v4551 = vmul.f32 %v4502, %v4542
      %v4552 = vmul.f32 %v4507, %v4542
      %v4553 = vmul.f32 %v4510, %v4542
      %v4554 = vmul.f32 %v4515, %v4542
      %v4555 = vmul.f32 %v4518, %v4542
      %v4556 = vmul.f32 %v4523, %v4542
      %v4557 = vmul.f32 %v4526, %v4542
      %v4558 = vmul.f32 %v4531, %v4542
      %v4559 = vmul.f32 %v4534, %v4542
      %v4560 = vld [vmem:[%s9] sm:$0x1]
      %v4562 = vlaneseq
      %v4563 = vshrl.u32 %v4562, 7
      %v4564 = vsub.s32 0, %v4563
      %v4565 = vrot.slane %v4560, %v4564
      %v4567 = vadd.f32 %v4544, %v4565
      %v4568 = vadd.f32 %v4545, %v4565
      %v4569 = vadd.f32 %v4546, %v4565
      %v4570 = vadd.f32 %v4547, %v4565
      %v4571 = vadd.f32 %v4548, %v4565
      %v4572 = vadd.f32 %v4549, %v4565
      %v4573 = vadd.f32 %v4550, %v4565
      %v4574 = vadd.f32 %v4551, %v4565
      %v4575 = vadd.f32 %v4552, %v4565
      %v4576 = vadd.f32 %v4553, %v4565
      %v4577 = vadd.f32 %v4554, %v4565
      %v4578 = vadd.f32 %v4555, %v4565
      %v4579 = vadd.f32 %v4556, %v4565
      %v4580 = vadd.f32 %v4557, %v4565
      %v4581 = vadd.f32 %v4558, %v4565
      %v4582 = vadd.f32 %v4559, %v4565
      %s4583 = sadd.s32 %s386, 1
      %s4584 = smul.u32 %s4583, 24
      %s4585 = scalar_lea.vmem %s373, %s4584
      %v4586 = vld [vmem:[%s4585] sm:$0xff]
      %v4587 = vld [vmem:[%s4585 + $0x8] sm:$0xff]
      %v4588 = vld [vmem:[%s4585 + $0x10] sm:$0x3]
      %v4589 = vld [vmem:[%s4585 + $0x18] sm:$0xff]
      %v4590 = vld [vmem:[%s4585 + $0x20] sm:$0xff]
      %v4591 = vld [vmem:[%s4585 + $0x28] sm:$0x3]
      %v4592 = vld [vmem:[%s4585 + $0x30] sm:$0xff]
      %v4593 = vld [vmem:[%s4585 + $0x38] sm:$0xff]
      %v4594 = vld [vmem:[%s4585 + $0x40] sm:$0x3]
      %v4595 = vld [vmem:[%s4585 + $0x48] sm:$0xff]
      %v4596 = vld [vmem:[%s4585 + $0x50] sm:$0xff]
      %v4597 = vld [vmem:[%s4585 + $0x58] sm:$0x3]
      %v4598 = vld [vmem:[%s4585 + $0x60] sm:$0xff]
      %v4599 = vld [vmem:[%s4585 + $0x68] sm:$0xff]
      %v4600 = vld [vmem:[%s4585 + $0x70] sm:$0x3]
      %v4601 = vld [vmem:[%s4585 + $0x78] sm:$0xff]
      %v4602 = vld [vmem:[%s4585 + $0x80] sm:$0xff]
      %v4603 = vld [vmem:[%s4585 + $0x88] sm:$0x3]
      %v4604 = vld [vmem:[%s4585 + $0x90] sm:$0xff]
      %v4605 = vld [vmem:[%s4585 + $0x98] sm:$0xff]
      %v4606 = vld [vmem:[%s4585 + $0xa0] sm:$0x3]
      %v4607 = vld [vmem:[%s4585 + $0xa8] sm:$0xff]
      %v4608 = vld [vmem:[%s4585 + $0xb0] sm:$0xff]
      %v4609 = vld [vmem:[%s4585 + $0xb8] sm:$0x3]
      %vm4634 = vcmask 1046528
      %v4635 = vrot.slane %v4586, 1
      %v4636 = vrot.slane %v4587, 1
      %v4637 = vsel %vm4634, %v4635, %v4636
      %v4638 = vrot.slane %v4588, 1
      %v4639 = vsel %vm4634, %v4636, %v4638
      %v4640 = vrot.slane %v4589, 1
      %v4641 = vrot.slane %v4590, 1
      %v4642 = vsel %vm4634, %v4640, %v4641
      %v4643 = vrot.slane %v4591, 1
      %v4644 = vsel %vm4634, %v4641, %v4643
      %v4645 = vrot.slane %v4592, 1
      %v4646 = vrot.slane %v4593, 1
      %v4647 = vsel %vm4634, %v4645, %v4646
      %v4648 = vrot.slane %v4594, 1
      %v4649 = vsel %vm4634, %v4646, %v4648
      %v4650 = vrot.slane %v4595, 1
      %v4651 = vrot.slane %v4596, 1
      %v4652 = vsel %vm4634, %v4650, %v4651
      %v4653 = vrot.slane %v4597, 1
      %v4654 = vsel %vm4634, %v4651, %v4653
      %v4655 = vrot.slane %v4598, 1
      %v4656 = vrot.slane %v4599, 1
      %v4657 = vsel %vm4634, %v4655, %v4656
      %v4658 = vrot.slane %v4600, 1
      %v4659 = vsel %vm4634, %v4656, %v4658
      %v4660 = vrot.slane %v4601, 1
      %v4661 = vrot.slane %v4602, 1
      %v4662 = vsel %vm4634, %v4660, %v4661
      %v4663 = vrot.slane %v4603, 1
      %v4664 = vsel %vm4634, %v4661, %v4663
      %v4665 = vrot.slane %v4604, 1
      %v4666 = vrot.slane %v4605, 1
      %v4667 = vsel %vm4634, %v4665, %v4666
      %v4668 = vrot.slane %v4606, 1
      %v4669 = vsel %vm4634, %v4666, %v4668
      %v4670 = vrot.slane %v4607, 1
      %v4671 = vrot.slane %v4608, 1
      %v4672 = vsel %vm4634, %v4670, %v4671
      %v4673 = vrot.slane %v4609, 1
      %v4674 = vsel %vm4634, %v4671, %v4673
      %v4691 = vadd.f32 %v4567, %v4637
      %v4692 = vadd.f32 %v4568, %v4639
      %v4693 = vadd.f32 %v4569, %v4642
      %v4694 = vadd.f32 %v4570, %v4644
      %v4695 = vadd.f32 %v4571, %v4647
      %v4696 = vadd.f32 %v4572, %v4649
      %v4697 = vadd.f32 %v4573, %v4652
      %v4698 = vadd.f32 %v4574, %v4654
      %v4699 = vadd.f32 %v4575, %v4657
      %v4700 = vadd.f32 %v4576, %v4659
      %v4701 = vadd.f32 %v4577, %v4662
      %v4702 = vadd.f32 %v4578, %v4664
      %v4703 = vadd.f32 %v4579, %v4667
      %v4704 = vadd.f32 %v4580, %v4669
      %v4705 = vadd.f32 %v4581, %v4672
      %v4706 = vadd.f32 %v4582, %v4674
      %v4707 = vmax.f32 %v4691, 0.0
      %v4708 = vmax.f32 %v4692, 0.0
      %v4709 = vmax.f32 %v4693, 0.0
      %v4710 = vmax.f32 %v4694, 0.0
      %v4711 = vmax.f32 %v4695, 0.0
      %v4712 = vmax.f32 %v4696, 0.0
      %v4713 = vmax.f32 %v4697, 0.0
      %v4714 = vmax.f32 %v4698, 0.0
      %v4715 = vmax.f32 %v4699, 0.0
      %v4716 = vmax.f32 %v4700, 0.0
      %v4717 = vmax.f32 %v4701, 0.0
      %v4718 = vmax.f32 %v4702, 0.0
      %v4719 = vmax.f32 %v4703, 0.0
      %v4720 = vmax.f32 %v4704, 0.0
      %v4721 = vmax.f32 %v4705, 0.0
      %v4722 = vmax.f32 %v4706, 0.0
      %4723 = vst [vmem:[%s383] sm:$0xff] %v4707
      %4724 = vst [vmem:[%s383 + $0x8] sm:$0xff] %v4708
      %4725 = vst [vmem:[%s383 + $0x10] sm:$0xff] %v4709
      %4726 = vst [vmem:[%s383 + $0x18] sm:$0xff] %v4710
      %4727 = vst [vmem:[%s383 + $0x20] sm:$0xff] %v4711
      %4728 = vst [vmem:[%s383 + $0x28] sm:$0xff] %v4712
      %4729 = vst [vmem:[%s383 + $0x30] sm:$0xff] %v4713
      %4730 = vst [vmem:[%s383 + $0x38] sm:$0xff] %v4714
      %4731 = vst [vmem:[%s383 + $0x40] sm:$0xff] %v4715
      %4732 = vst [vmem:[%s383 + $0x48] sm:$0xff] %v4716
      %4733 = vst [vmem:[%s383 + $0x50] sm:$0xff] %v4717
      %4734 = vst [vmem:[%s383 + $0x58] sm:$0xff] %v4718
      %4735 = vst [vmem:[%s383 + $0x60] sm:$0xff] %v4719
      %4736 = vst [vmem:[%s383 + $0x68] sm:$0xff] %v4720
      %4737 = vst [vmem:[%s383 + $0x70] sm:$0xff] %v4721
      %4738 = vst [vmem:[%s383 + $0x78] sm:$0xff] %v4722
      %s4739 = smul.u32 8, %s26
      %p4740 = scmp.lt.s32.totalorder %s25, 1
      %s4741 = scalar_select %p4740, %s25, 1
      %p4742 = scmp.lt.s32.totalorder %s4739, 15
      %s4743 = scalar_select %p4742, %s4739, 15
      %s4744 = smul.addr %s4743, 2
      %s4745 = smul.addr %s4741, 32
      %s4746 = sadd.s32 %s4744, %s4745
      %s4747 = smul.addr %s4746, 8
      %s4748 = scalar_lea.vmem %s10, %s4747
      // Predicated region
      $region61: #{bottleneck_forward_nchw.1} parent=59 // pred_check
        %p4749 = pneg %p268
      $region62: #{bottleneck_forward_nchw.1} parent=59 // pred_check_branch
        %4751 = sbr.rel (%p4749) target = $region64
      $region63: #{bottleneck_forward_nchw.1} parent=59 // pred_region
        %s4752 = smul.u32 8, %s26
      $region64: #{bottleneck_forward_nchw.1} parent=59 // pred_fallthru
        _
    $region60: #{bottleneck_forward_nchw.1} parent=5 // pred_fallthru
      _
    %p4753 = scmp.le.s32.totalorder 2, %s16
    // Predicated region
    $region65: #{bottleneck_forward_nchw.1} parent=5 // pred_check
      %p4754 = pneg %p4753
    $region66: #{bottleneck_forward_nchw.1} parent=5 // pred_check_branch
      %4756 = sbr.rel (%p4754) target = $region68
    $region67: #{bottleneck_forward_nchw.1} parent=5 // pred_region
      %s4757 = ssub.s32 %s16, 2
      // Predicated region
      $region69: #{bottleneck_forward_nchw.1} parent=67 // pred_check
        %p4758 = pneg %p274
      $region70: #{bottleneck_forward_nchw.1} parent=67 // pred_check_branch
        %4760 = sbr.rel (%p4758) target = $region72
      $region71: #{bottleneck_forward_nchw.1} parent=67 // pred_region
        %s4761 = smul.u32 8, %s28
        %p4762 = scmp.lt.s32.totalorder %s27, 1
        %s4763 = scalar_select %p4762, %s27, 1
        %p4764 = scmp.lt.s32.totalorder %s4761, 15
        %s4765 = scalar_select %p4764, %s4761, 15
        %s4766 = smul.addr %s4765, 2
        %s4767 = smul.addr %s4763, 32
        %s4768 = sadd.s32 %s4766, %s4767
        %s4769 = smul.addr %s4768, 8
        %s4770 = scalar_lea.vmem %s10, %s4769
      $region72: #{bottleneck_forward_nchw.1} parent=67 // pred_fallthru
        _
    $region68: #{bottleneck_forward_nchw.1} parent=5 // pred_fallthru
      _
  $region6: #{bottleneck_forward_nchw.1} parent=0 // loop_footer
    %s20 = sadd.s32 1, %s16
  $region7: #{bottleneck_forward_nchw.1} parent=0 // loop_footer_branch
    %15 = sbr.rel target = $region3
  $region8: #{bottleneck_forward_nchw.1} parent=0 // loop_exit
    _

</llo_original>
